<compile_context>
chip_gen: v7x
topology: tpu7x:2x2x1
jax: 0.10.0
libtpu: 0.0.40
codegen_flags: <defaults>
</compile_context>

<pallas_src>
import functools

import numpy as np

import jax
import jax.numpy as jnp
from jax.experimental import pallas as pl
from jax.experimental.pallas import tpu as pltpu


# ---------------------------------------------------------------------------
# helpers
# ---------------------------------------------------------------------------
def _round_up(x, m):
    return ((x + m - 1) // m) * m


def _largest_divisor(n, candidates):
    for c in candidates:
        if c <= n and n % c == 0:
            return c
    return n


# ---------------------------------------------------------------------------
# Pallas kernel: tiled matmul with fused bias (bf16 operands, f32 accumulate)
# ---------------------------------------------------------------------------
def _matmul_bias_kernel(a_ref, b_ref, bias_ref, o_ref, acc_ref):
    @pl.when(pl.program_id(2) == 0)
    def _():
        acc_ref[...] = jnp.zeros_like(acc_ref)

    acc_ref[...] += jnp.dot(a_ref[...], b_ref[...],
                            preferred_element_type=jnp.float32)

    @pl.when(pl.program_id(2) == pl.num_programs(2) - 1)
    def _():
        o_ref[...] = (acc_ref[...] + bias_ref[...]).astype(o_ref.dtype)


@jax.jit
def matmul_bias(a, b, bias):
    """(M,K) @ (K,N) + bias[N] -> f32.  bf16 operands, f32 MXU accumulation."""
    M, K = a.shape
    _, N = b.shape
    a = a.astype(jnp.bfloat16)
    b = b.astype(jnp.bfloat16)
    bias = bias.astype(jnp.float32).reshape(1, N)

    # Tile selection: avoid padding whenever the shapes are already friendly
    # (full-dim blocks are legal for small trailing dims).
    Mp = _round_up(M, 8)
    bm = Mp if Mp <= 512 else _largest_divisor(Mp, (512, 256, 128, 64, 32, 16, 8))
    if K % 8 == 0 and K <= 2048:
        Kp, bk = K, K
    else:
        Kp = _round_up(K, 128)
        bk = _largest_divisor(Kp, (1024, 512, 256, 128))
    if N % 8 == 0 and N <= 512:
        Np, bn = N, N
    else:
        Np = _round_up(N, 128)
        bn = _largest_divisor(Np, (512, 256, 128))

    if (Mp, Kp) != (M, K):
        a = jnp.pad(a, ((0, Mp - M), (0, Kp - K)))
    if (Kp, Np) != (K, N):
        b = jnp.pad(b, ((0, Kp - K), (0, Np - N)))
    if Np != N:
        bias = jnp.pad(bias, ((0, 0), (0, Np - N)))

    out = pl.pallas_call(
        _matmul_bias_kernel,
        out_shape=jax.ShapeDtypeStruct((Mp, Np), jnp.float32),
        grid_spec=pltpu.PrefetchScalarGridSpec(
            num_scalar_prefetch=0,
            grid=(Mp // bm, Np // bn, Kp // bk),
            in_specs=[
                pl.BlockSpec((bm, bk), lambda i, j, k: (i, k)),
                pl.BlockSpec((bk, bn), lambda i, j, k: (k, j)),
                pl.BlockSpec((1, bn), lambda i, j, k: (0, j)),
            ],
            out_specs=pl.BlockSpec((bm, bn), lambda i, j, k: (i, j)),
            scratch_shapes=[pltpu.VMEM((bm, bn), jnp.float32)],
        ),
        compiler_params=pltpu.CompilerParams(
            dimension_semantics=("parallel", "parallel", "arbitrary")),
    )(a, b, bias)
    if (Mp, Np) != (M, N):
        out = out[:M, :N]
    return out


# ---------------------------------------------------------------------------
# Pallas kernel: direct 3x3 / stride-1 / pad-1 convolution (no HBM im2col).
# The padded input block holds the full spatial extent of one image and a
# Cin chunk; the 9 taps are shifted in-VMEM views fed to the MXU and
# accumulated over the Cin reduction axis of the grid.
# ---------------------------------------------------------------------------
def _conv3x3_kernel(x_ref, w_ref, b_ref, o_ref, acc_ref, *, ho, wo):
    @pl.when(pl.program_id(2) == 0)
    def _():
        acc_ref[...] = jnp.zeros_like(acc_ref)

    acc = acc_ref[...]
    for kh in range(3):
        for kw in range(3):
            a = x_ref[0, kh:kh + ho, kw:kw + wo, :]
            a = a.reshape(ho * wo, a.shape[-1])
            acc = acc + jnp.dot(a, w_ref[kh, kw],
                                preferred_element_type=jnp.float32)
    acc_ref[...] = acc

    @pl.when(pl.program_id(2) == pl.num_programs(2) - 1)
    def _():
        o_ref[0] = (acc_ref[...] + b_ref[...]).astype(o_ref.dtype)


@jax.jit
def _conv3x3_direct(x, w, b):
    N, H, W, Cin = x.shape
    Cout = w.shape[-1]
    wo = _round_up(W, 8)                     # keep the flattened M dim tile-aligned
    hp, wp = H + 2, wo + 2
    xp = jnp.pad(x, ((0, 0), (1, 1), (1, wo - W + 1), (0, 0))).astype(jnp.bfloat16)
    wb = w.astype(jnp.bfloat16)
    bias = b.astype(jnp.float32).reshape(1, Cout)

    bk = Cin if Cin <= 512 else _largest_divisor(Cin, (512, 256, 128))
    bn = Cout if Cout <= 256 else _largest_divisor(Cout, (256, 128))
    mo = H * wo

    out = pl.pallas_call(
        functools.partial(_conv3x3_kernel, ho=H, wo=wo),
        out_shape=jax.ShapeDtypeStruct((N, mo, Cout), jnp.float32),
        grid_spec=pltpu.PrefetchScalarGridSpec(
            num_scalar_prefetch=0,
            grid=(N, Cout // bn, Cin // bk),
            in_specs=[
                pl.BlockSpec((1, hp, wp, bk), lambda n, j, k: (n, 0, 0, k)),
                pl.BlockSpec((3, 3, bk, bn), lambda n, j, k: (0, 0, k, j)),
                pl.BlockSpec((1, bn), lambda n, j, k: (0, j)),
            ],
            out_specs=pl.BlockSpec((1, mo, bn), lambda n, j, k: (n, 0, j)),
            scratch_shapes=[pltpu.VMEM((mo, bn), jnp.float32)],
        ),
        compiler_params=pltpu.CompilerParams(
            dimension_semantics=("parallel", "parallel", "arbitrary")),
    )(xp, wb, bias)

    out = out.reshape(N, H, wo, Cout)
    if wo != W:
        out = out[:, :, :W, :]
    return out


_USE_DIRECT_CONV3X3 = True


@functools.partial(jax.jit, static_argnames=("padding",))
def _conv2d_im2col(x, w, b, padding=0):
    """Fallback: im2col + Pallas matmul (bf16 patches)."""
    N, H, W, Cin = x.shape
    KH, KW, _, Cout = w.shape
    xb = x.astype(jnp.bfloat16)
    if padding:
        xb = jnp.pad(xb, ((0, 0), (padding, padding), (padding, padding), (0, 0)))
    Ho = H + 2 * padding - KH + 1
    Wo = W + 2 * padding - KW + 1
    patches = [xb[:, kh:kh + Ho, kw:kw + Wo, :]
               for kh in range(KH) for kw in range(KW)]
    A = jnp.concatenate(patches, axis=-1).reshape(N * Ho * Wo, KH * KW * Cin)
    B = w.reshape(KH * KW * Cin, Cout)
    y = matmul_bias(A, B, b)
    return y.reshape(N, Ho, Wo, Cout)


def conv2d_nhwc(x, w, b, padding=0):
    """Stride-1 conv2d, NHWC activations / HWIO weights."""
    global _USE_DIRECT_CONV3X3
    KH, KW = int(w.shape[0]), int(w.shape[1])
    if (KH, KW) == (1, 1) and padding == 0:
        N, H, W, Cin = x.shape
        y = matmul_bias(x.reshape(N * H * W, Cin), w.reshape(Cin, -1), b)
        return y.reshape(N, H, W, -1)
    if (KH, KW) == (3, 3) and padding == 1 and _USE_DIRECT_CONV3X3:
        try:
            return _conv3x3_direct(x, w, b)
        except Exception:
            _USE_DIRECT_CONV3X3 = False          # graceful fallback, keep running
    return _conv2d_im2col(x, w, b, padding=padding)


# ---------------------------------------------------------------------------
# ConvTranspose2d(k=3, stride=2, padding=1, output_padding=1): out = 2x.
# Decomposed by output parity into four sub-convolutions packed into a single
# Pallas matmul (no zero-stuffed input; ~2.25x fewer MXU flops and far less
# DMA than the dilated-input im2col formulation).
# HWIO weight w[kh, kw, ci, co] corresponds to torch weight[ci, co, kh, kw].
# ---------------------------------------------------------------------------
@jax.jit
def conv_transpose2d_s2_nhwc(x, w, b):
    N, H, W, Cin = x.shape
    Cout = w.shape[-1]
    xb = x.astype(jnp.bfloat16)
    wb = w.astype(jnp.bfloat16)
    xp = jnp.pad(xb, ((0, 0), (0, 1), (0, 1), (0, 0)))
    x00 = xb
    x01 = xp[:, :H, 1:W + 1, :]
    x10 = xp[:, 1:H + 1, :W, :]
    x11 = xp[:, 1:H + 1, 1:W + 1, :]
    A = jnp.concatenate([x00, x01, x10, x11], axis=-1).reshape(N * H * W, 4 * Cin)

    Z = jnp.zeros((Cin, Cout), wb.dtype)
    B = jnp.concatenate([
        jnp.concatenate([wb[1, 1], wb[1, 2], wb[2, 1], wb[2, 2]], axis=1),
        jnp.concatenate([Z,        wb[1, 0], Z,        wb[2, 0]], axis=1),
        jnp.concatenate([Z,        Z,        wb[0, 1], wb[0, 2]], axis=1),
        jnp.concatenate([Z,        Z,        Z,        wb[0, 0]], axis=1),
    ], axis=0)
    bias4 = jnp.concatenate([b, b, b, b])

    y = matmul_bias(A, B, bias4)                     # (N*H*W, 4*Cout) = [ee|eo|oe|oo]
    y = y.reshape(N, H, W, 2, 2, Cout)
    return jnp.transpose(y, (0, 1, 3, 2, 4, 5)).reshape(N, 2 * H, 2 * W, Cout)


# ---------------------------------------------------------------------------
# BatchNorm (training-mode batch stats) + PReLU, tiled & lane-dense
# ---------------------------------------------------------------------------
def _bn_stats_kernel(x_ref, s_ref, q_ref):
    @pl.when(pl.program_id(0) == 0)
    def _():
        s_ref[...] = jnp.zeros_like(s_ref)
        q_ref[...] = jnp.zeros_like(q_ref)
    x = x_ref[...]
    s_ref[...] += jnp.sum(x, axis=0, keepdims=True)
    q_ref[...] += jnp.sum(x * x, axis=0, keepdims=True)


def _affine_prelu_kernel(x_ref, scale_ref, shift_ref, alpha_ref, o_ref):
    y = x_ref[...] * scale_ref[...] + shift_ref[...]
    o_ref[...] = jnp.where(y >= 0.0, y, alpha_ref[...] * y)


def _row_block(M):
    return M if M <= 256 else _largest_divisor(M, (256, 128, 64, 32, 16, 8))


def _bn_stats(x2d):
    M, Cf = x2d.shape
    bm = _row_block(M)
    return pl.pallas_call(
        _bn_stats_kernel,
        grid=(M // bm,),
        in_specs=[pl.BlockSpec((bm, Cf), lambda i: (i, 0))],
        out_specs=(pl.BlockSpec((1, Cf), lambda i: (0, 0)),
                   pl.BlockSpec((1, Cf), lambda i: (0, 0))),
        out_shape=(jax.ShapeDtypeStruct((1, Cf), jnp.float32),
                   jax.ShapeDtypeStruct((1, Cf), jnp.float32)),
        compiler_params=pltpu.CompilerParams(dimension_semantics=("arbitrary",)),
    )(x2d)


def _affine_prelu(x2d, scale, shift, alpha):
    M, Cf = x2d.shape
    bm = _row_block(M)
    return pl.pallas_call(
        _affine_prelu_kernel,
        grid=(M // bm,),
        in_specs=[pl.BlockSpec((bm, Cf), lambda i: (i, 0))]
        + [pl.BlockSpec((1, Cf), lambda i: (0, 0))] * 3,
        out_specs=pl.BlockSpec((bm, Cf), lambda i: (i, 0)),
        out_shape=jax.ShapeDtypeStruct((M, Cf), jnp.float32),
        compiler_params=pltpu.CompilerParams(dimension_semantics=("parallel",)),
    )(x2d, scale.reshape(1, Cf), shift.reshape(1, Cf), alpha.reshape(1, Cf))


def _bn_prelu_jax(x, gamma, beta, alpha):
    mean = jnp.mean(x, axis=(0, 1, 2))
    var = jnp.maximum(jnp.mean(jnp.square(x), axis=(0, 1, 2)) - mean * mean, 0.0)
    scale = gamma * jax.lax.rsqrt(var + 1e-5)
    shift = beta - mean * scale
    y = x * scale + shift
    return jnp.where(y >= 0.0, y, alpha * y)


@jax.jit
def batchnorm_prelu_nhwc(x, gamma, beta, alpha):
    """BatchNorm2d (training-mode batch stats, eps=1e-5) fused with PReLU."""
    N, H, W, C = x.shape
    count = float(N * H * W)
    if C == 1:
        # 1-channel tail: Pallas would waste 127/128 lanes -> plain JAX.
        return _bn_prelu_jax(x, gamma, beta, alpha)
    # Fold W into lanes when C < 128 so the element-wise kernels stay
    # lane-dense (avoids masked partial stores).
    F = W if C < 128 else 1
    Cf = F * C
    x2 = x.reshape((N * H * W) // F, Cf)
    s, q = _bn_stats(x2)
    s_c = s.reshape(F, C).sum(axis=0)
    q_c = q.reshape(F, C).sum(axis=0)
    mean = s_c / count
    var = jnp.maximum(q_c / count - mean * mean, 0.0)
    scale_c = gamma * jax.lax.rsqrt(var + 1e-5)
    shift_c = beta - mean * scale_c
    y = _affine_prelu(x2, jnp.tile(scale_c, F), jnp.tile(shift_c, F),
                      jnp.tile(alpha, F))
    return y.reshape(N, H, W, C)


@jax.jit
def batchnorm_nhwc(x, gamma, beta):
    # plain BN (used only on the 1-channel attention head)
    return _bn_prelu_jax(x, gamma, beta, jnp.ones_like(gamma))


def prelu(x, alpha):
    return jnp.where(x >= 0.0, x, alpha * x)


# ---------------------------------------------------------------------------
# thin JAX glue
# ---------------------------------------------------------------------------
def _interp_matrix(n_in, n_out):
    if n_in == 1:
        return np.ones((n_out, 1), np.float32)
    src = np.arange(n_out, dtype=np.float64) * (n_in - 1) / (n_out - 1)
    lo = np.clip(np.floor(src).astype(np.int64), 0, n_in - 2)
    frac = (src - lo).astype(np.float32)
    R = np.zeros((n_out, n_in), np.float32)
    R[np.arange(n_out), lo] = 1.0 - frac
    R[np.arange(n_out), lo + 1] = frac
    return R


@jax.jit
def upsample_bilinear_x2(x):
    # nn.Upsample(scale_factor=2, mode='bilinear', align_corners=True),
    # expressed as two small interpolation-matrix contractions (no gathers).
    N, H, W, C = x.shape
    Rh = jnp.asarray(_interp_matrix(H, 2 * H))
    Rw = jnp.asarray(_interp_matrix(W, 2 * W))
    t = jnp.einsum('oh,nhwc->nowc', Rh, x, precision=jax.lax.Precision.HIGHEST)
    return jnp.einsum('pw,nowc->nopc', Rw, t, precision=jax.lax.Precision.HIGHEST)


@jax.jit
def maxpool2x2(x):
    N, H, W, C = x.shape
    return x.reshape(N, H // 2, 2, W // 2, 2, C).max(axis=(2, 4))


# ---------------------------------------------------------------------------
# Parameter initialisation (deterministic, synthetic)
# ---------------------------------------------------------------------------
class ParamGen:
    def __init__(self, seed):
        self._key = jax.random.PRNGKey(seed)

    def normal(self, shape, scale=0.05, dtype=jnp.float32):
        self._key, k = jax.random.split(self._key)
        return (scale * jax.random.normal(k, shape, jnp.float32)).astype(dtype)


def init_cbp(pg, kh, kw, cin, cout):
    """Conv + BatchNorm + PReLU block parameters (conv weight stored bf16)."""
    return {"w": pg.normal((kh, kw, cin, cout), dtype=jnp.bfloat16),
            "b": pg.normal((cout,)),
            "gamma": jnp.ones((cout,), jnp.float32),
            "beta": jnp.zeros((cout,), jnp.float32),
            "alpha": jnp.full((cout,), 0.25, jnp.float32)}


def cbp_apply(p, x, padding=1):
    x = conv2d_nhwc(x, p["w"], p["b"], padding=padding)
    return batchnorm_prelu_nhwc(x, p["gamma"], p["beta"], p["alpha"])


def init_spatial_attention(pg, C):
    return {
        "c1_1": init_cbp(pg, 3, 3, C, C // 2),
        "c1_2": init_cbp(pg, 3, 3, C // 2, C // 2),
        "c2_1": init_cbp(pg, 3, 3, C // 2, C // 4),
        "c2_2": init_cbp(pg, 3, 3, C // 4, C // 4),
        "cb_1": init_cbp(pg, 3, 3, C // 4, C // 8),
        "cb_2": init_cbp(pg, 3, 3, C // 8, C // 8),
        "ct_1": {"w": pg.normal((3, 3, C // 8, C // 16), dtype=jnp.bfloat16),
                 "b": pg.normal((C // 16,))},
        "c3_1": init_cbp(pg, 3, 3, C // 16 + C // 4, C // 16),
        "c3_2": init_cbp(pg, 3, 3, C // 16, C // 16),
        "ct_2": {"w": pg.normal((3, 3, C // 16, C // 32), dtype=jnp.bfloat16),
                 "b": pg.normal((C // 32,))},
        "c4_1": init_cbp(pg, 3, 3, C // 32 + C // 2, C // 32),
        "c4_2": init_cbp(pg, 3, 3, C // 32, C // 32),
        "c5_1": init_cbp(pg, 1, 1, C // 32, C // 64),
        "c5_2": {"w": pg.normal((1, 1, C // 64, 1), dtype=jnp.bfloat16),
                 "b": pg.normal((1,)),
                 "gamma": jnp.ones((1,), jnp.float32),
                 "beta": jnp.zeros((1,), jnp.float32)},
    }


def spatial_attention_forward(p, x):
    residual = x
    x = cbp_apply(p["c1_1"], x)
    x = cbp_apply(p["c1_2"], x)
    skip_1 = x
    x = maxpool2x2(x)
    x = cbp_apply(p["c2_1"], x)
    x = cbp_apply(p["c2_2"], x)
    skip_2 = x
    x = maxpool2x2(x)
    x = cbp_apply(p["cb_1"], x)
    x = cbp_apply(p["cb_2"], x)
    x = conv_transpose2d_s2_nhwc(x, p["ct_1"]["w"], p["ct_1"]["b"])
    x = jnp.concatenate([x, skip_2], axis=-1)
    x = cbp_apply(p["c3_1"], x)
    x = cbp_apply(p["c3_2"], x)
    x = conv_transpose2d_s2_nhwc(x, p["ct_2"]["w"], p["ct_2"]["b"])
    x = jnp.concatenate([x, skip_1], axis=-1)
    x = cbp_apply(p["c4_1"], x)
    x = cbp_apply(p["c4_2"], x)
    x = cbp_apply(p["c5_1"], x, padding=0)
    x = conv2d_nhwc(x, p["c5_2"]["w"], p["c5_2"]["b"], padding=0)
    x = batchnorm_nhwc(x, p["c5_2"]["gamma"], p["c5_2"]["beta"])
    attn = jax.nn.sigmoid(x)                         # (N, H, W, 1)
    return residual + residual * attn


def init_hf_enhancement(pg, C):
    rc = C // 2
    return {"fc1_w": pg.normal((C, rc), dtype=jnp.bfloat16), "fc1_b": pg.normal((rc,)),
            "prelu": jnp.full((rc,), 0.25, jnp.float32),
            "fc2_w": pg.normal((rc, C), dtype=jnp.bfloat16), "fc2_b": pg.normal((C,)),
            "fuse_w": pg.normal((1, 1, 2 * C, C), dtype=jnp.bfloat16),
            "fuse_b": pg.normal((C,))}


def hf_enhancement_forward(p, x):
    residual = x
    C = residual.shape[-1]
    # HighFrequencyModule('Isotropic_Sobel', mode='filtering', smooth=True):
    # the 8 direction kernels are 4 Sobel kernels plus their exact negations
    # and the 8 conv results are summed, so by linearity of convolution the
    # high-frequency branch is identically zero.  Consequently the channel
    # fusion conv over cat([x_out, x_hf]) reduces to the first weight half
    # acting on x_out alone.
    g = jnp.mean(x, axis=(1, 2))                     # global average pooling -> (N, C)
    g = matmul_bias(g, p["fc1_w"], p["fc1_b"])
    g = prelu(g, p["prelu"])
    g = matmul_bias(g, p["fc2_w"], p["fc2_b"])
    g = jax.nn.sigmoid(g)
    x_out = residual + residual * g[:, None, None, :]
    fuse_w = p["fuse_w"][:, :, :C, :]                # x_hf == 0 contributes nothing
    return conv2d_nhwc(x_out, fuse_w, p["fuse_b"], padding=0)


def init_hfab(pg, C):
    return {"sa": init_spatial_attention(pg, C), "hfe": init_hf_enhancement(pg, C)}


def hfab_forward(p, x):
    x = spatial_attention_forward(p["sa"], x)
    return hf_enhancement_forward(p["hfe"], x)


def init_decoder(pg, C, num_classes):
    stages = []
    cin = C
    for _ in range(4):
        cout = cin // 2
        stages.append({
            "us_w": pg.normal((1, 1, cin, cout), dtype=jnp.bfloat16),
            "us_b": pg.normal((cout,)),
            "conv1": init_cbp(pg, 3, 3, cin, cout),
            "hfab1": init_hfab(pg, cout),
            "conv2": init_cbp(pg, 3, 3, cout, cout),
            "hfab2": init_hfab(pg, cout),
        })
        cin = cout
    out = {"conv1": init_cbp(pg, 3, 3, C // 16, C // 32),
           "conv2": init_cbp(pg, 3, 3, C // 32, C // 32),
           "conv3_w": pg.normal((1, 1, C // 32, num_classes), dtype=jnp.bfloat16),
           "conv3_b": pg.normal((num_classes,))}
    return {"stages": stages, "out": out}


def decoder_forward_nhwc(params, x, skip_1, skip_2, skip_3, skip_4):
    skips = [skip_4, skip_3, skip_2, skip_1]
    for st, skip in zip(params["stages"], skips):
        x = conv2d_nhwc(x, st["us_w"], st["us_b"], padding=0)   # _up_sample 1x1 conv
        x = upsample_bilinear_x2(x)
        x = jnp.concatenate([x, skip], axis=-1)
        x = cbp_apply(st["conv1"], x)
        x = hfab_forward(st["hfab1"], x)
        x = cbp_apply(st["conv2"], x)
        x = hfab_forward(st["hfab2"], x)
    out = params["out"]
    x = cbp_apply(out["conv1"], x)
    x = cbp_apply(out["conv2"], x)
    x = conv2d_nhwc(x, out["conv3_w"], out["conv3_b"], padding=0)
    return jax.nn.softmax(x, axis=-1)                # Softmax(dim=1) over channels


def decoder_apply(params, x, skip_1, skip_2, skip_3, skip_4):
    """PyTorch-facing wrapper: NCHW in, NCHW out."""
    to_nhwc = lambda t: jnp.transpose(t, (0, 2, 3, 1))
    y = decoder_forward_nhwc(params, to_nhwc(x), to_nhwc(skip_1), to_nhwc(skip_2),
                             to_nhwc(skip_3), to_nhwc(skip_4))
    return jnp.transpose(y, (0, 3, 1, 2))


# ---------------------------------------------------------------------------
def _self_check_direct_conv():
    """Validate the direct 3x3 conv kernel against the im2col reference once;
    silently disable it (graceful fallback) if it fails or mismatches."""
    global _USE_DIRECT_CONV3X3
    try:
        k0, k1, k2 = jax.random.split(jax.random.PRNGKey(123), 3)
        x = jax.random.normal(k0, (2, 4, 4, 16), jnp.float32)
        w = 0.1 * jax.random.normal(k1, (3, 3, 16, 8), jnp.float32)
        b = jax.random.normal(k2, (8,), jnp.float32)
        y0 = jax.block_until_ready(_conv3x3_direct(x, w, b))
        y1 = jax.block_until_ready(_conv2d_im2col(x, w, b, padding=1))
        if not bool(jnp.max(jnp.abs(y0 - y1)) < 5e-2):
            _USE_DIRECT_CONV3X3 = False
    except Exception:
        _USE_DIRECT_CONV3X3 = False


if __name__ == "__main__":
    B = 2            # BatchNorm (training-mode) needs > 1 value per channel
    C = 1024         # smallest channel count the original module supports ((C//16)//64 >= 1)
    S = 2            # bottleneck spatial size
    NUM_CLASSES = 3

    _self_check_direct_conv()

    params = init_decoder(ParamGen(1), C, NUM_CLASSES)

    key = jax.random.PRNGKey(0)
    k0, k1, k2, k3, k4 = jax.random.split(key, 5)
    x = jax.random.normal(k0, (B, C, S, S), jnp.float32)
    skip_4 = jax.random.normal(k1, (B, C // 2, S * 2, S * 2), jnp.float32)
    skip_3 = jax.random.normal(k2, (B, C // 4, S * 4, S * 4), jnp.float32)
    skip_2 = jax.random.normal(k3, (B, C // 8, S * 8, S * 8), jnp.float32)
    skip_1 = jax.random.normal(k4, (B, C // 16, S * 16, S * 16), jnp.float32)

    out = decoder_apply(params, x, skip_1, skip_2, skip_3, skip_4)
    out = jax.block_until_ready(out)
    assert out.shape == (B, NUM_CLASSES, S * 16, S * 16)
    assert bool(jnp.all(jnp.isfinite(out)))
    print("KERNEL_OK")
</pallas_src>

<mosaic_0001>
module attributes {stable_mosaic.version = 11 : i64} {
  func.func @_conv3x3_kernel(%arg0: i32, %arg1: i32, %arg2: i32, %arg3: memref<1x6x10x16xbf16, #tpu.memory_space<vmem>>, %arg4: memref<3x3x16x8xbf16, #tpu.memory_space<vmem>>, %arg5: memref<1x8xf32, #tpu.memory_space<vmem>>, %arg6: memref<1x32x8xf32, #tpu.memory_space<vmem>>, %arg7: memref<32x8xf32, #tpu.memory_space<vmem>>) attributes {dimension_semantics = [#tpu.dimension_semantics<parallel>, #tpu.dimension_semantics<parallel>, #tpu.dimension_semantics<arbitrary>], iteration_bounds = array<i64: 2, 1, 1>, scalar_prefetch = 0 : i64, scratch_operands = 1 : i64, tpu.core_type = #tpu.core_type<tc>, window_params = [{transform_indices = @transform_0, window_bounds = array<i64: 1, 6, 10, 16>}, {transform_indices = @transform_1, window_bounds = array<i64: 3, 3, 16, 8>}, {transform_indices = @transform_2, window_bounds = array<i64: 1, 8>}, {transform_indices = @transform_3, window_bounds = array<i64: 1, 32, 8>}]} {
    %c0_i32 = arith.constant 0 : i32
    %0 = arith.cmpi eq, %arg2, %c0_i32 : i32
    %1 = arith.extui %0 : i1 to i32
    %c0_i32_0 = arith.constant 0 : i32
    %2 = arith.cmpi ne, %1, %c0_i32_0 : i32
    scf.if %2 {
      %cst_84 = arith.constant 0.000000e+00 : f32
      %71 = vector.broadcast %cst_84 : f32 to vector<32x8xf32>
      %c0_85 = arith.constant 0 : index
      %c0_86 = arith.constant 0 : index
      %72 = vector.load %arg7[%c0_85, %c0_86] : memref<32x8xf32, #tpu.memory_space<vmem>>, vector<32x8xf32>
      tpu.vector_store %arg7[%c0_85, %c0_86], %71 {strides = array<i32>} : memref<32x8xf32, #tpu.memory_space<vmem>>, vector<32x8xf32>,
    } else {
    }
    %c0 = arith.constant 0 : index
    %c0_1 = arith.constant 0 : index
    %3 = vector.load %arg7[%c0, %c0_1] : memref<32x8xf32, #tpu.memory_space<vmem>>, vector<32x8xf32>
    %c0_2 = arith.constant 0 : index
    %c0_3 = arith.constant 0 : index
    %c0_4 = arith.constant 0 : index
    %c0_5 = arith.constant 0 : index
    %4 = vector.load %arg3[%c0_2, %c0_3, %c0_4, %c0_5] : memref<1x6x10x16xbf16, #tpu.memory_space<vmem>>, vector<1x4x8x16xbf16>
    %5 = vector.shape_cast %4 : vector<1x4x8x16xbf16> to vector<4x8x16xbf16>
    %6 = vector.shape_cast %5 : vector<4x8x16xbf16> to vector<32x16xbf16>
    %c0_6 = arith.constant 0 : index
    %c0_7 = arith.constant 0 : index
    %c0_8 = arith.constant 0 : index
    %c0_9 = arith.constant 0 : index
    %7 = vector.load %arg4[%c0_6, %c0_7, %c0_8, %c0_9] : memref<3x3x16x8xbf16, #tpu.memory_space<vmem>>, vector<1x1x16x8xbf16>
    %8 = vector.shape_cast %7 : vector<1x1x16x8xbf16> to vector<16x8xbf16>
    %cst = arith.constant dense<0.000000e+00> : vector<32x8xf32>
    %9 = tpu.matmul %6, %8, %cst {dimension_numbers = #tpu.dot_dimension_numbers<[1], [0], [0], [1], [0, 0, 1, 1], [], []>} : vector<32x16xbf16>, vector<16x8xbf16>, vector<32x8xf32> -> vector<32x8xf32>
    %10 = arith.addf %3, %9 : vector<32x8xf32>
    %c0_10 = arith.constant 0 : index
    %c0_11 = arith.constant 0 : index
    %c1 = arith.constant 1 : index
    %c0_12 = arith.constant 0 : index
    %11 = vector.load %arg3[%c0_10, %c0_11, %c1, %c0_12] : memref<1x6x10x16xbf16, #tpu.memory_space<vmem>>, vector<1x4x8x16xbf16>
    %12 = vector.shape_cast %11 : vector<1x4x8x16xbf16> to vector<4x8x16xbf16>
    %13 = vector.shape_cast %12 : vector<4x8x16xbf16> to vector<32x16xbf16>
    %c0_13 = arith.constant 0 : index
    %c1_14 = arith.constant 1 : index
    %c0_15 = arith.constant 0 : index
    %c0_16 = arith.constant 0 : index
    %14 = vector.load %arg4[%c0_13, %c1_14, %c0_15, %c0_16] : memref<3x3x16x8xbf16, #tpu.memory_space<vmem>>, vector<1x1x16x8xbf16>
    %15 = vector.shape_cast %14 : vector<1x1x16x8xbf16> to vector<16x8xbf16>
    %cst_17 = arith.constant dense<0.000000e+00> : vector<32x8xf32>
    %16 = tpu.matmul %13, %15, %cst_17 {dimension_numbers = #tpu.dot_dimension_numbers<[1], [0], [0], [1], [0, 0, 1, 1], [], []>} : vector<32x16xbf16>, vector<16x8xbf16>, vector<32x8xf32> -> vector<32x8xf32>
    %17 = arith.addf %10, %16 : vector<32x8xf32>
    %c0_18 = arith.constant 0 : index
    %c0_19 = arith.constant 0 : index
    %c2 = arith.constant 2 : index
    %c0_20 = arith.constant 0 : index
    %18 = vector.load %arg3[%c0_18, %c0_19, %c2, %c0_20] : memref<1x6x10x16xbf16, #tpu.memory_space<vmem>>, vector<1x4x8x16xbf16>
    %19 = vector.shape_cast %18 : vector<1x4x8x16xbf16> to vector<4x8x16xbf16>
    %20 = vector.shape_cast %19 : vector<4x8x16xbf16> to vector<32x16xbf16>
    %c0_21 = arith.constant 0 : index
    %c2_22 = arith.constant 2 : index
    %c0_23 = arith.constant 0 : index
    %c0_24 = arith.constant 0 : index
    %21 = vector.load %arg4[%c0_21, %c2_22, %c0_23, %c0_24] : memref<3x3x16x8xbf16, #tpu.memory_space<vmem>>, vector<1x1x16x8xbf16>
    %22 = vector.shape_cast %21 : vector<1x1x16x8xbf16> to vector<16x8xbf16>
    %cst_25 = arith.constant dense<0.000000e+00> : vector<32x8xf32>
    %23 = tpu.matmul %20, %22, %cst_25 {dimension_numbers = #tpu.dot_dimension_numbers<[1], [0], [0], [1], [0, 0, 1, 1], [], []>} : vector<32x16xbf16>, vector<16x8xbf16>, vector<32x8xf32> -> vector<32x8xf32>
    %24 = arith.addf %17, %23 : vector<32x8xf32>
    %c0_26 = arith.constant 0 : index
    %c1_27 = arith.constant 1 : index
    %c0_28 = arith.constant 0 : index
    %c0_29 = arith.constant 0 : index
    %25 = vector.load %arg3[%c0_26, %c1_27, %c0_28, %c0_29] : memref<1x6x10x16xbf16, #tpu.memory_space<vmem>>, vector<1x4x8x16xbf16>
    %26 = vector.shape_cast %25 : vector<1x4x8x16xbf16> to vector<4x8x16xbf16>
    %27 = vector.shape_cast %26 : vector<4x8x16xbf16> to vector<32x16xbf16>
    %c1_30 = arith.constant 1 : index
    %c0_31 = arith.constant 0 : index
    %c0_32 = arith.constant 0 : index
    %c0_33 = arith.constant 0 : index
    %28 = vector.load %arg4[%c1_30, %c0_31, %c0_32, %c0_33] : memref<3x3x16x8xbf16, #tpu.memory_space<vmem>>, vector<1x1x16x8xbf16>
    %29 = vector.shape_cast %28 : vector<1x1x16x8xbf16> to vector<16x8xbf16>
    %cst_34 = arith.constant dense<0.000000e+00> : vector<32x8xf32>
    %30 = tpu.matmul %27, %29, %cst_34 {dimension_numbers = #tpu.dot_dimension_numbers<[1], [0], [0], [1], [0, 0, 1, 1], [], []>} : vector<32x16xbf16>, vector<16x8xbf16>, vector<32x8xf32> -> vector<32x8xf32>
    %31 = arith.addf %24, %30 : vector<32x8xf32>
    %c0_35 = arith.constant 0 : index
    %c1_36 = arith.constant 1 : index
    %c1_37 = arith.constant 1 : index
    %c0_38 = arith.constant 0 : index
    %32 = vector.load %arg3[%c0_35, %c1_36, %c1_37, %c0_38] : memref<1x6x10x16xbf16, #tpu.memory_space<vmem>>, vector<1x4x8x16xbf16>
    %33 = vector.shape_cast %32 : vector<1x4x8x16xbf16> to vector<4x8x16xbf16>
    %34 = vector.shape_cast %33 : vector<4x8x16xbf16> to vector<32x16xbf16>
    %c1_39 = arith.constant 1 : index
    %c1_40 = arith.constant 1 : index
    %c0_41 = arith.constant 0 : index
    %c0_42 = arith.constant 0 : index
    %35 = vector.load %arg4[%c1_39, %c1_40, %c0_41, %c0_42] : memref<3x3x16x8xbf16, #tpu.memory_space<vmem>>, vector<1x1x16x8xbf16>
    %36 = vector.shape_cast %35 : vector<1x1x16x8xbf16> to vector<16x8xbf16>
    %cst_43 = arith.constant dense<0.000000e+00> : vector<32x8xf32>
    %37 = tpu.matmul %34, %36, %cst_43 {dimension_numbers = #tpu.dot_dimension_numbers<[1], [0], [0], [1], [0, 0, 1, 1], [], []>} : vector<32x16xbf16>, vector<16x8xbf16>, vector<32x8xf32> -> vector<32x8xf32>
    %38 = arith.addf %31, %37 : vector<32x8xf32>
    %c0_44 = arith.constant 0 : index
    %c1_45 = arith.constant 1 : index
    %c2_46 = arith.constant 2 : index
    %c0_47 = arith.constant 0 : index
    %39 = vector.load %arg3[%c0_44, %c1_45, %c2_46, %c0_47] : memref<1x6x10x16xbf16, #tpu.memory_space<vmem>>, vector<1x4x8x16xbf16>
    %40 = vector.shape_cast %39 : vector<1x4x8x16xbf16> to vector<4x8x16xbf16>
    %41 = vector.shape_cast %40 : vector<4x8x16xbf16> to vector<32x16xbf16>
    %c1_48 = arith.constant 1 : index
    %c2_49 = arith.constant 2 : index
    %c0_50 = arith.constant 0 : index
    %c0_51 = arith.constant 0 : index
    %42 = vector.load %arg4[%c1_48, %c2_49, %c0_50, %c0_51] : memref<3x3x16x8xbf16, #tpu.memory_space<vmem>>, vector<1x1x16x8xbf16>
    %43 = vector.shape_cast %42 : vector<1x1x16x8xbf16> to vector<16x8xbf16>
    %cst_52 = arith.constant dense<0.000000e+00> : vector<32x8xf32>
    %44 = tpu.matmul %41, %43, %cst_52 {dimension_numbers = #tpu.dot_dimension_numbers<[1], [0], [0], [1], [0, 0, 1, 1], [], []>} : vector<32x16xbf16>, vector<16x8xbf16>, vector<32x8xf32> -> vector<32x8xf32>
    %45 = arith.addf %38, %44 : vector<32x8xf32>
    %c0_53 = arith.constant 0 : index
    %c2_54 = arith.constant 2 : index
    %c0_55 = arith.constant 0 : index
    %c0_56 = arith.constant 0 : index
    %46 = vector.load %arg3[%c0_53, %c2_54, %c0_55, %c0_56] : memref<1x6x10x16xbf16, #tpu.memory_space<vmem>>, vector<1x4x8x16xbf16>
    %47 = vector.shape_cast %46 : vector<1x4x8x16xbf16> to vector<4x8x16xbf16>
    %48 = vector.shape_cast %47 : vector<4x8x16xbf16> to vector<32x16xbf16>
    %c2_57 = arith.constant 2 : index
    %c0_58 = arith.constant 0 : index
    %c0_59 = arith.constant 0 : index
    %c0_60 = arith.constant 0 : index
    %49 = vector.load %arg4[%c2_57, %c0_58, %c0_59, %c0_60] : memref<3x3x16x8xbf16, #tpu.memory_space<vmem>>, vector<1x1x16x8xbf16>
    %50 = vector.shape_cast %49 : vector<1x1x16x8xbf16> to vector<16x8xbf16>
    %cst_61 = arith.constant dense<0.000000e+00> : vector<32x8xf32>
    %51 = tpu.matmul %48, %50, %cst_61 {dimension_numbers = #tpu.dot_dimension_numbers<[1], [0], [0], [1], [0, 0, 1, 1], [], []>} : vector<32x16xbf16>, vector<16x8xbf16>, vector<32x8xf32> -> vector<32x8xf32>
    %52 = arith.addf %45, %51 : vector<32x8xf32>
    %c0_62 = arith.constant 0 : index
    %c2_63 = arith.constant 2 : index
    %c1_64 = arith.constant 1 : index
    %c0_65 = arith.constant 0 : index
    %53 = vector.load %arg3[%c0_62, %c2_63, %c1_64, %c0_65] : memref<1x6x10x16xbf16, #tpu.memory_space<vmem>>, vector<1x4x8x16xbf16>
    %54 = vector.shape_cast %53 : vector<1x4x8x16xbf16> to vector<4x8x16xbf16>
    %55 = vector.shape_cast %54 : vector<4x8x16xbf16> to vector<32x16xbf16>
    %c2_66 = arith.constant 2 : index
    %c1_67 = arith.constant 1 : index
    %c0_68 = arith.constant 0 : index
    %c0_69 = arith.constant 0 : index
    %56 = vector.load %arg4[%c2_66, %c1_67, %c0_68, %c0_69] : memref<3x3x16x8xbf16, #tpu.memory_space<vmem>>, vector<1x1x16x8xbf16>
    %57 = vector.shape_cast %56 : vector<1x1x16x8xbf16> to vector<16x8xbf16>
    %cst_70 = arith.constant dense<0.000000e+00> : vector<32x8xf32>
    %58 = tpu.matmul %55, %57, %cst_70 {dimension_numbers = #tpu.dot_dimension_numbers<[1], [0], [0], [1], [0, 0, 1, 1], [], []>} : vector<32x16xbf16>, vector<16x8xbf16>, vector<32x8xf32> -> vector<32x8xf32>
    %59 = arith.addf %52, %58 : vector<32x8xf32>
    %c0_71 = arith.constant 0 : index
    %c2_72 = arith.constant 2 : index
    %c2_73 = arith.constant 2 : index
    %c0_74 = arith.constant 0 : index
    %60 = vector.load %arg3[%c0_71, %c2_72, %c2_73, %c0_74] : memref<1x6x10x16xbf16, #tpu.memory_space<vmem>>, vector<1x4x8x16xbf16>
    %61 = vector.shape_cast %60 : vector<1x4x8x16xbf16> to vector<4x8x16xbf16>
    %62 = vector.shape_cast %61 : vector<4x8x16xbf16> to vector<32x16xbf16>
    %c2_75 = arith.constant 2 : index
    %c2_76 = arith.constant 2 : index
    %c0_77 = arith.constant 0 : index
    %c0_78 = arith.constant 0 : index
    %63 = vector.load %arg4[%c2_75, %c2_76, %c0_77, %c0_78] : memref<3x3x16x8xbf16, #tpu.memory_space<vmem>>, vector<1x1x16x8xbf16>
    %64 = vector.shape_cast %63 : vector<1x1x16x8xbf16> to vector<16x8xbf16>
    %cst_79 = arith.constant dense<0.000000e+00> : vector<32x8xf32>
    %65 = tpu.matmul %62, %64, %cst_79 {dimension_numbers = #tpu.dot_dimension_numbers<[1], [0], [0], [1], [0, 0, 1, 1], [], []>} : vector<32x16xbf16>, vector<16x8xbf16>, vector<32x8xf32> -> vector<32x8xf32>
    %66 = arith.addf %59, %65 : vector<32x8xf32>
    %c0_80 = arith.constant 0 : index
    %c0_81 = arith.constant 0 : index
    %67 = vector.load %arg7[%c0_80, %c0_81] : memref<32x8xf32, #tpu.memory_space<vmem>>, vector<32x8xf32>
    tpu.vector_store %arg7[%c0_80, %c0_81], %66 {strides = array<i32>} : memref<32x8xf32, #tpu.memory_space<vmem>>, vector<32x8xf32>,
    %c0_i32_82 = arith.constant 0 : i32
    %68 = arith.cmpi eq, %arg2, %c0_i32_82 : i32
    %69 = arith.extui %68 : i1 to i32
    %c0_i32_83 = arith.constant 0 : i32
    %70 = arith.cmpi ne, %69, %c0_i32_83 : i32
    scf.if %70 {
      %c0_84 = arith.constant 0 : index
      %c0_85 = arith.constant 0 : index
      %71 = vector.load %arg7[%c0_84, %c0_85] : memref<32x8xf32, #tpu.memory_space<vmem>>, vector<32x8xf32>
      %c0_86 = arith.constant 0 : index
      %c0_87 = arith.constant 0 : index
      %72 = vector.load %arg5[%c0_86, %c0_87] : memref<1x8xf32, #tpu.memory_space<vmem>>, vector<1x8xf32>
      %73 = vector.broadcast %72 : vector<1x8xf32> to vector<32x8xf32>
      %74 = arith.addf %71, %73 : vector<32x8xf32>
      %c0_88 = arith.constant 0 : index
      %c0_89 = arith.constant 0 : index
      %c0_90 = arith.constant 0 : index
      %75 = vector.load %arg6[%c0_88, %c0_89, %c0_90] : memref<1x32x8xf32, #tpu.memory_space<vmem>>, vector<1x32x8xf32>
      %76 = vector.shape_cast %75 : vector<1x32x8xf32> to vector<32x8xf32>
      %77 = vector.shape_cast %74 : vector<32x8xf32> to vector<1x32x8xf32>
      tpu.vector_store %arg6[%c0_88, %c0_89, %c0_90], %77 {strides = array<i32>} : memref<1x32x8xf32, #tpu.memory_space<vmem>>, vector<1x32x8xf32>,
    } else {
    }
    return
  }
  func.func @transform_0(%arg0: i32, %arg1: i32, %arg2: i32) -> (i32, i32, i32, i32) {
    %c0_i32 = arith.constant 0 : i32
    %c0_i32_0 = arith.constant 0 : i32
    %c0_i32_1 = arith.constant 0 : i32
    return %arg0, %c0_i32, %c0_i32_0, %arg2 : i32, i32, i32, i32
  }
  func.func @transform_1(%arg0: i32, %arg1: i32, %arg2: i32) -> (i32, i32, i32, i32) {
    %c0_i32 = arith.constant 0 : i32
    %c0_i32_0 = arith.constant 0 : i32
    %c0_i32_1 = arith.constant 0 : i32
    return %c0_i32, %c0_i32_0, %arg2, %arg1 : i32, i32, i32, i32
  }
  func.func @transform_2(%arg0: i32, %arg1: i32, %arg2: i32) -> (i32, i32) {
    %c0_i32 = arith.constant 0 : i32
    %c0_i32_0 = arith.constant 0 : i32
    return %c0_i32, %arg1 : i32, i32
  }
  func.func @transform_3(%arg0: i32, %arg1: i32, %arg2: i32) -> (i32, i32, i32) {
    %c0_i32 = arith.constant 0 : i32
    %c0_i32_0 = arith.constant 0 : i32
    return %arg0, %c0_i32, %arg1 : i32, i32, i32
  }
}

module attributes {stable_mosaic.version = 11 : i64} {
  func.func @_matmul_bias_kernel(%arg0: i32, %arg1: i32, %arg2: i32, %arg3: memref<8x1024xbf16, #tpu.memory_space<vmem>>, %arg4: memref<1024x512xbf16, #tpu.memory_space<vmem>>, %arg5: memref<1x512xf32, #tpu.memory_space<vmem>>, %arg6: memref<8x512xf32, #tpu.memory_space<vmem>>, %arg7: memref<8x512xf32, #tpu.memory_space<vmem>>) attributes {dimension_semantics = [#tpu.dimension_semantics<parallel>, #tpu.dimension_semantics<parallel>, #tpu.dimension_semantics<arbitrary>], iteration_bounds = array<i64: 1, 1, 1>, scalar_prefetch = 0 : i64, scratch_operands = 1 : i64, tpu.core_type = #tpu.core_type<tc>, window_params = [{transform_indices = @transform_0, window_bounds = array<i64: 8, 1024>}, {transform_indices = @transform_1, window_bounds = array<i64: 1024, 512>}, {transform_indices = @transform_2, window_bounds = array<i64: 1, 512>}, {transform_indices = @transform_3, window_bounds = array<i64: 8, 512>}]} {
    %c0_i32 = arith.constant 0 : i32
    %0 = arith.cmpi eq, %arg2, %c0_i32 : i32
    %1 = arith.extui %0 : i1 to i32
    %c0_i32_0 = arith.constant 0 : i32
    %2 = arith.cmpi ne, %1, %c0_i32_0 : i32
    scf.if %2 {
      %cst_10 = arith.constant 0.000000e+00 : f32
      %12 = vector.broadcast %cst_10 : f32 to vector<8x512xf32>
      %c0_11 = arith.constant 0 : index
      %c0_12 = arith.constant 0 : index
      %13 = vector.load %arg7[%c0_11, %c0_12] : memref<8x512xf32, #tpu.memory_space<vmem>>, vector<8x512xf32>
      tpu.vector_store %arg7[%c0_11, %c0_12], %12 {strides = array<i32>} : memref<8x512xf32, #tpu.memory_space<vmem>>, vector<8x512xf32>,
    } else {
    }
    %c0 = arith.constant 0 : index
    %c0_1 = arith.constant 0 : index
    %3 = vector.load %arg7[%c0, %c0_1] : memref<8x512xf32, #tpu.memory_space<vmem>>, vector<8x512xf32>
    %c0_2 = arith.constant 0 : index
    %c0_3 = arith.constant 0 : index
    %4 = vector.load %arg3[%c0_2, %c0_3] : memref<8x1024xbf16, #tpu.memory_space<vmem>>, vector<8x1024xbf16>
    %c0_4 = arith.constant 0 : index
    %c0_5 = arith.constant 0 : index
    %5 = vector.load %arg4[%c0_4, %c0_5] : memref<1024x512xbf16, #tpu.memory_space<vmem>>, vector<1024x512xbf16>
    %cst = arith.constant dense<0.000000e+00> : vector<8x512xf32>
    %6 = tpu.matmul %4, %5, %cst {dimension_numbers = #tpu.dot_dimension_numbers<[1], [0], [0], [1], [0, 0, 1, 1], [], []>} : vector<8x1024xbf16>, vector<1024x512xbf16>, vector<8x512xf32> -> vector<8x512xf32>
    %7 = arith.addf %3, %6 : vector<8x512xf32>
    %c0_6 = arith.constant 0 : index
    %c0_7 = arith.constant 0 : index
    %8 = vector.load %arg7[%c0_6, %c0_7] : memref<8x512xf32, #tpu.memory_space<vmem>>, vector<8x512xf32>
    tpu.vector_store %arg7[%c0_6, %c0_7], %7 {strides = array<i32>} : memref<8x512xf32, #tpu.memory_space<vmem>>, vector<8x512xf32>,
    %c0_i32_8 = arith.constant 0 : i32
    %9 = arith.cmpi eq, %arg2, %c0_i32_8 : i32
    %10 = arith.extui %9 : i1 to i32
    %c0_i32_9 = arith.constant 0 : i32
    %11 = arith.cmpi ne, %10, %c0_i32_9 : i32
    scf.if %11 {
      %c0_10 = arith.constant 0 : index
      %c0_11 = arith.constant 0 : index
      %12 = vector.load %arg7[%c0_10, %c0_11] : memref<8x512xf32, #tpu.memory_space<vmem>>, vector<8x512xf32>
      %c0_12 = arith.constant 0 : index
      %c0_13 = arith.constant 0 : index
      %13 = vector.load %arg5[%c0_12, %c0_13] : memref<1x512xf32, #tpu.memory_space<vmem>>, vector<1x512xf32>
      %14 = vector.broadcast %13 : vector<1x512xf32> to vector<8x512xf32>
      %15 = arith.addf %12, %14 : vector<8x512xf32>
      %c0_14 = arith.constant 0 : index
      %c0_15 = arith.constant 0 : index
      %16 = vector.load %arg6[%c0_14, %c0_15] : memref<8x512xf32, #tpu.memory_space<vmem>>, vector<8x512xf32>
      tpu.vector_store %arg6[%c0_14, %c0_15], %15 {strides = array<i32>} : memref<8x512xf32, #tpu.memory_space<vmem>>, vector<8x512xf32>,
    } else {
    }
    return
  }
  func.func @transform_0(%arg0: i32, %arg1: i32, %arg2: i32) -> (i32, i32) {
    %c0_i32 = arith.constant 0 : i32
    return %arg0, %arg2 : i32, i32
  }
  func.func @transform_1(%arg0: i32, %arg1: i32, %arg2: i32) -> (i32, i32) {
    %c0_i32 = arith.constant 0 : i32
    return %arg2, %arg1 : i32, i32
  }
  func.func @transform_2(%arg0: i32, %arg1: i32, %arg2: i32) -> (i32, i32) {
    %c0_i32 = arith.constant 0 : i32
    %c0_i32_0 = arith.constant 0 : i32
    return %c0_i32, %arg1 : i32, i32
  }
  func.func @transform_3(%arg0: i32, %arg1: i32, %arg2: i32) -> (i32, i32) {
    %c0_i32 = arith.constant 0 : i32
    return %arg0, %arg1 : i32, i32
  }
}

</mosaic_0001>

<llo_original>
// kernel: _conv3x3_direct.1
$region0: #{_conv3x3_direct.1}
  #allocation0 [shape = 'u32[]', space=smem, size = 0x4, offset = 0x4, fixed_abs, tag = 'smem constant byte address 0x4 - core index']
  #allocation1 [shape = 'u32[144,128]{1,0:T(1,128)}', space=vmem, size = 0x12000, scoped, tag = 'internal scratch']
  #allocation2 [shape = 'f32[32,8]{1,0:T(8,128)}', space=vmem, size = 0x4000, scoped, tag = 'scratch operand']
  %s0 = inlined_call_operand.vmem [shape: bf16[2,6,10,16], index: 0, kind: input, shape index: {}]
  %s1 = inlined_call_operand.vmem [shape: bf16[3,3,16,8], index: 1, kind: input, shape index: {}]
  %s2 = inlined_call_operand.vmem [shape: f32[1,8], index: 2, kind: input, shape index: {}]
  %s3 = inlined_call_operand.vmem [shape: f32[2,32,8], index: 3, kind: output, shape index: {}]
  %s4 = sld [smem:[#allocation0]]
  $region53: #{_conv3x3_direct.1} parent=0
    _
  %s6 = ssub.s32 1, %s4
  %s7 = scalar_select 0, %s6, %s4
  loop: start=0, step=1, limit=4
  $region2: #{_conv3x3_direct.1} parent=0 // loop_pre_header
    _
  $region3: #{_conv3x3_direct.1} parent=0 // loop_header
    %s9 = sphi 0, %s13
    %p10 = scmp.ge.s32.totalorder %s9, 4
    %s16 = sphi 0, %s35
    %s17 = sphi 0, %s31
    %s18 = sphi 0, %s27
    %s19 = sphi 0, %s16
    %s20 = sphi 0, %s17
    %s21 = sphi 0, %s18
    %s22 = sphi 0, %s19
    %s23 = sphi 0, %s20
    %s24 = sphi 0, %s21
    %s40 = sphi 0, %s42
    %s43 = sphi 0, %s40
    %s44 = sphi 0, %s43
    %s60 = sphi 0, %s44
    %s68 = sphi 0, %s70
    %s71 = sphi 0, %s68
    %s72 = sphi 0, %s71
    %s88 = sphi 0, %s72
    %s94 = sphi 0, %s96
    %s97 = sphi 0, %s94
    %s98 = sphi 0, %s97
    %s114 = sphi 0, %s98
    %s122 = sphi 0, %s124
    %s125 = sphi 0, %s122
    %s126 = sphi 0, %s125
    %s142 = sphi 0, %s126
  $region4: #{_conv3x3_direct.1} parent=0 // loop_header_branch
    %12 = sbr.rel (%p10) target = $region8
  $region5: #{_conv3x3_direct.1} parent=0 // loop_body
    %s14 = ssub.s32 %s9, 1
    %s15 = ssub.s32 %s9, 2
    %s25 = sadd.s32 1, %s18
    %p26 = scmp.ge.s32.totalorder %s25, 1
    %s27 = scalar_select %p26, 0, %s25
    %s28 = sadd.s32 1, %s17
    %s29 = scalar_select %p26, %s28, %s17
    %p30 = scmp.ge.s32.totalorder %s29, 1
    %s31 = scalar_select %p30, 0, %s29
    %s32 = sadd.s32 1, %s16
    %s33 = scalar_select %p30, %s32, %s16
    %p34 = scmp.ge.s32.totalorder %s33, 2
    %s35 = scalar_select %p34, 0, %s33
    %s36 = ssub.s32 %s16, %s35
    %s37 = ssub.s32 %s18, %s27
    %s38 = sor.u32 %s36, %s37
    %p39 = scmp.eq.s32.totalorder %s38, 0
    %s41 = sadd.s32 %s40, 1
    %s42 = scalar_select %p39, %s40, %s41
    %p45 = pneg %p39
    %p46 = scmp.eq.s32.totalorder %s9, 1
    %p47 = por %p45, %p46
    %p48 = scmp.ne.s32.totalorder %s40, %s43
    %p49 = scmp.eq.s32.totalorder %s9, 0
    %p50 = por %p48, %p49
    %p51 = scmp.ne.s32.totalorder %s40, %s43
    %p52 = scmp.eq.s32.totalorder %s14, 1
    %p53 = por %p51, %p52
    %p54 = scmp.ne.s32.totalorder %s43, %s44
    %p55 = scmp.eq.s32.totalorder %s14, 0
    %p56 = por %p54, %p55
    %p57 = scmp.ne.s32.totalorder %s43, %s44
    %p58 = scmp.eq.s32.totalorder %s15, 1
    %p59 = por %p57, %p58
    %p61 = scmp.ne.s32.totalorder %s44, %s60
    %p62 = scmp.eq.s32.totalorder %s15, 0
    %p63 = por %p61, %p62
    %s64 = ssub.s32 %s18, %s27
    %s65 = ssub.s32 %s17, %s31
    %s66 = sor.u32 %s64, %s65
    %p67 = scmp.eq.s32.totalorder %s66, 0
    %s69 = sadd.s32 %s68, 1
    %s70 = scalar_select %p67, %s68, %s69
    %p73 = pneg %p67
    %p74 = scmp.eq.s32.totalorder %s9, 1
    %p75 = por %p73, %p74
    %p76 = scmp.ne.s32.totalorder %s68, %s71
    %p77 = scmp.eq.s32.totalorder %s9, 0
    %p78 = por %p76, %p77
    %p79 = scmp.ne.s32.totalorder %s68, %s71
    %p80 = scmp.eq.s32.totalorder %s14, 1
    %p81 = por %p79, %p80
    %p82 = scmp.ne.s32.totalorder %s71, %s72
    %p83 = scmp.eq.s32.totalorder %s14, 0
    %p84 = por %p82, %p83
    %p85 = scmp.ne.s32.totalorder %s71, %s72
    %p86 = scmp.eq.s32.totalorder %s15, 1
    %p87 = por %p85, %p86
    %p89 = scmp.ne.s32.totalorder %s72, %s88
    %p90 = scmp.eq.s32.totalorder %s15, 0
    %p91 = por %p89, %p90
    %s92 = ssub.s32 %s17, %s31
    %p93 = scmp.eq.s32.totalorder %s92, 0
    %s95 = sadd.s32 %s94, 1
    %s96 = scalar_select %p93, %s94, %s95
    %p99 = pneg %p93
    %p100 = scmp.eq.s32.totalorder %s9, 1
    %p101 = por %p99, %p100
    %p102 = scmp.ne.s32.totalorder %s94, %s97
    %p103 = scmp.eq.s32.totalorder %s9, 0
    %p104 = por %p102, %p103
    %p105 = scmp.ne.s32.totalorder %s94, %s97
    %p106 = scmp.eq.s32.totalorder %s14, 1
    %p107 = por %p105, %p106
    %p108 = scmp.ne.s32.totalorder %s97, %s98
    %p109 = scmp.eq.s32.totalorder %s14, 0
    %p110 = por %p108, %p109
    %p111 = scmp.ne.s32.totalorder %s97, %s98
    %p112 = scmp.eq.s32.totalorder %s15, 1
    %p113 = por %p111, %p112
    %p115 = scmp.ne.s32.totalorder %s98, %s114
    %p116 = scmp.eq.s32.totalorder %s15, 0
    %p117 = por %p115, %p116
    %s118 = ssub.s32 %s16, %s35
    %s119 = ssub.s32 %s17, %s31
    %s120 = sor.u32 %s118, %s119
    %p121 = scmp.eq.s32.totalorder %s120, 0
    %s123 = sadd.s32 %s122, 1
    %s124 = scalar_select %p121, %s122, %s123
    %p127 = pneg %p121
    %p128 = scmp.eq.s32.totalorder %s9, 1
    %p129 = por %p127, %p128
    %p130 = scmp.ne.s32.totalorder %s122, %s125
    %p131 = scmp.eq.s32.totalorder %s9, 0
    %p132 = por %p130, %p131
    %p133 = scmp.ne.s32.totalorder %s122, %s125
    %p134 = scmp.eq.s32.totalorder %s14, 1
    %p135 = por %p133, %p134
    %p136 = scmp.ne.s32.totalorder %s125, %s126
    %p137 = scmp.eq.s32.totalorder %s14, 0
    %p138 = por %p136, %p137
    %p139 = scmp.ne.s32.totalorder %s125, %s126
    %p140 = scmp.eq.s32.totalorder %s15, 1
    %p141 = por %p139, %p140
    %p143 = scmp.ne.s32.totalorder %s126, %s142
    %p144 = scmp.eq.s32.totalorder %s15, 0
    %p145 = por %p143, %p144
    %p146 = scmp.le.s32.totalorder 1, %s9
    %p147 = scmp.lt.s32.totalorder %s9, 3
    %p148 = pnand %p146, %p147
    %p149 = pneg %p148
    // Predicated region
    $region9: #{_conv3x3_direct.1} parent=5 // pred_check
      _
    $region10: #{_conv3x3_direct.1} parent=5 // pred_check_branch
      %151 = sbr.rel (%p148) target = $region12
    $region11: #{_conv3x3_direct.1} parent=5 // pred_region
      %s152 = ssub.s32 %s9, 1
      // Predicated region
      $region13: #{_conv3x3_direct.1} parent=11 // pred_check
        %p153 = pneg %p84
      $region14: #{_conv3x3_direct.1} parent=11 // pred_check_branch
        %155 = sbr.rel (%p153) target = $region16
      $region15: #{_conv3x3_direct.1} parent=11 // pred_region
        %s156 = smul.u32 2, %s21
        %p157 = scmp.lt.s32.totalorder %s156, 1
        %s158 = scalar_select %p157, %s156, 1
        %p159 = scmp.lt.s32.totalorder %s20, 0
        %s160 = scalar_select %p159, %s20, 0
        %s161 = sadd.s32 %s160, %s158
        %s162 = smul.addr %s161, 4
        %s163 = scalar_lea.vmem %s1, %s162
        %s164 = smul.u32 2, %s21
      $region16: #{_conv3x3_direct.1} parent=11 // pred_fallthru
        _
      // Predicated region
      $region17: #{_conv3x3_direct.1} parent=11 // pred_check
        %p165 = pneg %p110
      $region18: #{_conv3x3_direct.1} parent=11 // pred_check_branch
        %167 = sbr.rel (%p165) target = $region20
      $region19: #{_conv3x3_direct.1} parent=11 // pred_region
        %p168 = scmp.lt.s32.totalorder %s20, 0
        %s169 = scalar_select %p168, %s20, 0
        %s170 = scalar_lea.vmem %s2, %s169
      $region20: #{_conv3x3_direct.1} parent=11 // pred_fallthru
        _
    $region12: #{_conv3x3_direct.1} parent=5 // pred_fallthru
      _
    %p171 = scmp.lt.s32.totalorder %s9, 2
    // Predicated region
    $region21: #{_conv3x3_direct.1} parent=5 // pred_check
      %p172 = pneg %p171
    $region22: #{_conv3x3_direct.1} parent=5 // pred_check_branch
      %174 = sbr.rel (%p172) target = $region24
    $region23: #{_conv3x3_direct.1} parent=5 // pred_region
      // Predicated region
      $region25: #{_conv3x3_direct.1} parent=23 // pred_check
        %p175 = pneg %p50
      $region26: #{_conv3x3_direct.1} parent=23 // pred_check_branch
        %177 = sbr.rel (%p175) target = $region28
      $region27: #{_conv3x3_direct.1} parent=23 // pred_region
        %p178 = scmp.lt.s32.totalorder %s16, 1
        %s179 = scalar_select %p178, %s16, 1
        %p180 = scmp.lt.s32.totalorder %s18, 0
        %s181 = scalar_select %p180, %s18, 0
        %s182 = smul.addr %s179, 12
        %s183 = sadd.s32 %s181, %s182
        %s184 = smul.addr %s183, 4
        %s185 = scalar_lea.vmem %s0, %s184
      $region28: #{_conv3x3_direct.1} parent=23 // pred_fallthru
        _
    $region24: #{_conv3x3_direct.1} parent=5 // pred_fallthru
      _
    %p186 = scmp.le.s32.totalorder 1, %s9
    %p187 = scmp.lt.s32.totalorder %s9, 3
    %p188 = pnand %p186, %p187
    %p189 = pneg %p188
    // Predicated region
    $region29: #{_conv3x3_direct.1} parent=5 // pred_check
      _
    $region30: #{_conv3x3_direct.1} parent=5 // pred_check_branch
      %191 = sbr.rel (%p188) target = $region32
    $region31: #{_conv3x3_direct.1} parent=5 // pred_region
      %s192 = ssub.s32 %s9, 1
      %p193 = scmp.lt.s32.totalorder %s19, 1
      %s194 = scalar_select %p193, %s19, 1
      %p195 = scmp.lt.s32.totalorder %s21, 0
      %s196 = scalar_select %p195, %s21, 0
      %s197 = smul.addr %s194, 12
      %s198 = sadd.s32 %s196, %s197
      %s199 = smul.addr %s198, 4
      %s200 = scalar_lea.vmem %s0, %s199
      %p201 = pneg %p56
      %p202 = pneg %p53
      %s203 = smul.u32 2, %s21
      %p204 = scmp.lt.s32.totalorder %s203, 1
      %s205 = scalar_select %p204, %s203, 1
      %p206 = scmp.lt.s32.totalorder %s20, 0
      %s207 = scalar_select %p206, %s20, 0
      %s208 = sadd.s32 %s207, %s205
      %s209 = smul.addr %s208, 4
      %s210 = scalar_lea.vmem %s1, %s209
      %p211 = pneg %p84
      %p212 = pneg %p81
      %p213 = scmp.lt.s32.totalorder %s20, 0
      %s214 = scalar_select %p213, %s20, 0
      %s215 = scalar_lea.vmem %s2, %s214
      %p216 = pneg %p110
      %p217 = pneg %p107
      %p218 = pneg %p138
      %p219 = pneg %p135
      %p220 = scmp.lt.s32.totalorder %s19, 1
      %s221 = scalar_select %p220, %s19, 1
      %p222 = scmp.lt.s32.totalorder %s20, 0
      %s223 = scalar_select %p222, %s20, 0
      %s224 = smul.addr %s221, 4
      %s225 = sadd.s32 %s223, %s224
      %s226 = smul.addr %s225, 8
      %s227 = scalar_lea.vmem %s3, %s226
      %p228 = scmp.lt.s32.totalorder %s19, 1
      %s229 = scalar_select %p228, %s19, 1
      %p230 = scmp.lt.s32.totalorder %s21, 0
      %s231 = scalar_select %p230, %s21, 0
      %s232 = smul.addr %s229, 12
      %s233 = sadd.s32 %s231, %s232
      %s234 = smul.addr %s233, 4
      %s235 = scalar_lea.vmem %s0, %s234
      %s236 = smul.u32 2, %s21
      %p237 = scmp.lt.s32.totalorder %s236, 1
      %s238 = scalar_select %p237, %s236, 1
      %p239 = scmp.lt.s32.totalorder %s20, 0
      %s240 = scalar_select %p239, %s20, 0
      %s241 = sadd.s32 %s240, %s238
      %s242 = smul.addr %s241, 4
      %s243 = scalar_lea.vmem %s1, %s242
      %s244 = smul.u32 2, %s21
      %p245 = scmp.lt.s32.totalorder %s20, 0
      %s246 = scalar_select %p245, %s20, 0
      %s247 = scalar_lea.vmem %s2, %s246
      %p248 = scmp.lt.s32.totalorder %s19, 1
      %s249 = scalar_select %p248, %s19, 1
      %p250 = scmp.lt.s32.totalorder %s20, 0
      %s251 = scalar_select %p250, %s20, 0
      %s252 = smul.addr %s249, 4
      %s253 = sadd.s32 %s251, %s252
      %s254 = smul.addr %s253, 8
      %s255 = scalar_lea.vmem %s3, %s254
      %p257 = scmp.eq.s32.totalorder %s21, 0
      // Predicated region
      $region33: #{_conv3x3_direct.1} parent=31 // pred_check
        %p258 = pneg %p257
      $region34: #{_conv3x3_direct.1} parent=31 // pred_check_branch
        %260 = sbr.rel (%p258) target = $region36
      $region35: #{_conv3x3_direct.1} parent=31 // pred_region
        %vm261 = vcmask 64512
        %262 = vst.msk [vmem:[#allocation2] sm:$0xff] %vm261, 0.0
        %263 = vst.msk [vmem:[#allocation2 + $0x8] sm:$0xff] %vm261, 0.0
        %264 = vst.msk [vmem:[#allocation2 + $0x10] sm:$0xff] %vm261, 0.0
        %265 = vst.msk [vmem:[#allocation2 + $0x18] sm:$0xff] %vm261, 0.0
      $region36: #{_conv3x3_direct.1} parent=31 // pred_fallthru
        _
      %v266 = vld [vmem:[#allocation2] sm:$0xff]
      %v267 = vld [vmem:[#allocation2 + $0x8] sm:$0xff]
      %v268 = vld [vmem:[#allocation2 + $0x10] sm:$0xff]
      %v269 = vld [vmem:[#allocation2 + $0x18] sm:$0xff]
      %v270 = vld [vmem:[%s235] sm:$0xf]
      %v271 = vld [vmem:[%s235 + $0x8] sm:$0xf]
      %v272 = vld [vmem:[%s235 + $0x10] sm:$0xf]
      %v273 = vld [vmem:[%s235 + $0x18] sm:$0xf]
      %v274 = vld [vmem:[%s243] sm:$0xf]
      %v275 = vld [vmem:[%s243 + $0x4] sm:$0xf]
      %v280 = vunpack.c.l.b16 %v270
      %v281 = vunpack.c.l.b16 %v271
      %v282 = vunpack.c.l.b16 %v272
      %v283 = vunpack.c.l.b16 %v273
      %v284 = vpack.c.b16 %v281, %v280
      %v285 = vpack.c.b16 %v283, %v282
      %v288 = vunpack.c.l.b16 %v274
      %v289 = vunpack.c.l.b16 %v275
      %v290 = vpack.c.b16 %v289, %v288
      %vm292 = vcmask 130048
      %v294 = vsel %vm292, %v284, 0
      %v297 = vsel %vm292, %v285, 0
      %299 = vmatprep.subr.bf16.mxu0 0
      %300 = vmatpush1.bf16.msra.mxu0 %v290
      %301 = vmatprep.subr.bf16.mxu0 0
      %302 = vmatpush1.bf16.msra.mxu0 0
      %303 = vmatprep.subr.bf16.mxu0 0
      %304 = vmatpush1.bf16.msra.mxu0 0
      %305 = vmatprep.subr.bf16.mxu0 0
      %306 = vmatpush1.bf16.msra.mxu0 0
      %307 = vmatprep.subr.bf16.mxu0 0
      %308 = vmatpush1.bf16.msra.mxu0 0
      %309 = vmatprep.subr.bf16.mxu0 0
      %310 = vmatpush1.bf16.msra.mxu0 0
      %311 = vmatprep.subr.bf16.mxu0 0
      %312 = vmatpush1.bf16.msra.mxu0 0
      %313 = vmatprep.subr.bf16.mxu0 0
      %314 = vmatpush1.bf16.msra.mxu0 0
      %315 = vmatprep.subr.bf16.mxu0 0
      %316 = vmatpush1.bf16.msra.mxu0 0
      %317 = vmatprep.subr.bf16.mxu0 0
      %318 = vmatpush1.bf16.msra.mxu0 0
      %319 = vmatprep.subr.bf16.mxu0 0
      %320 = vmatpush1.bf16.msra.mxu0 0
      %321 = vmatprep.subr.bf16.mxu0 0
      %322 = vmatpush1.bf16.msra.mxu0 0
      %323 = vmatprep.subr.bf16.mxu0 0
      %324 = vmatpush1.bf16.msra.mxu0 0
      %325 = vmatprep.subr.bf16.mxu0 0
      %326 = vmatpush1.bf16.msra.mxu0 0
      %327 = vmatprep.subr.bf16.mxu0 0
      %328 = vmatpush1.bf16.msra.mxu0 0
      %329 = vmatprep.subr.bf16.mxu0 0
      %330 = vmatpush1.bf16.msra.mxu0 0
      %331 = vmatprep.mubr.bf16.mxu0 0
      %332 = vmatmul.mubr.bf16.gmra.mrb[0].mxu0 %v294
      %v333 = vpop.f32.mrb[0].mxu0
      %v334 = vadd.f32 0.0, %v333
      %v335 = vpop.f32.mrb[0].mxu0
      %v336 = vpop.f32.mrb[0].mxu0
      %v337 = vadd.f32 0.0, %v336
      %v338 = vpop.f32.mrb[0].mxu0
      %339 = vmatprep.mubr.bf16.mxu0 0
      %340 = vmatmul.mubr.bf16.gmra.mrb[0].mxu0 %v297
      %v341 = vpop.f32.mrb[0].mxu0
      %v342 = vadd.f32 0.0, %v341
      %v343 = vpop.f32.mrb[0].mxu0
      %v344 = vpop.f32.mrb[0].mxu0
      %v345 = vadd.f32 0.0, %v344
      %v346 = vpop.f32.mrb[0].mxu0
      %347 = vdwg.mxu0
      %v348 = vadd.f32 %v266, %v334
      %v349 = vadd.f32 %v267, %v337
      %v350 = vadd.f32 %v268, %v342
      %v351 = vadd.f32 %v269, %v345
      %v352 = vld [vmem:[%s235] sm:$0xf]
      %v353 = vld [vmem:[%s235 + $0x4] sm:$0x1]
      %v354 = vld [vmem:[%s235 + $0x8] sm:$0xf]
      %v355 = vld [vmem:[%s235 + $0xc] sm:$0x1]
      %v356 = vld [vmem:[%s235 + $0x10] sm:$0xf]
      %v357 = vld [vmem:[%s235 + $0x14] sm:$0x1]
      %v358 = vld [vmem:[%s235 + $0x18] sm:$0xf]
      %v359 = vld [vmem:[%s235 + $0x1c] sm:$0x1]
      %vm360 = vsmask.f32 3328
      %vm361 = vsmask.f32 7440
      %vm362 = vmor %vm360, %vm361
      %v364 = vshrl.u32 %v352, 16
      %v366 = vrot.slane %v364, 4
      %v367 = vshll.u32 %v352, 16
      %v369 = vrot.slane %v367, 5
      %v370 = vor.u32 %v366, %v369
      %v371 = vrot.slane %v370, 4
      %v373 = vshll.u32 %v353, 16
      %v375 = vrot.slane %v373, 5
      %v376 = vsel %vm362, %v371, %v375
      %v378 = vshrl.u32 %v354, 16
      %v380 = vrot.slane %v378, 4
      %v381 = vshll.u32 %v354, 16
      %v383 = vrot.slane %v381, 5
      %v384 = vor.u32 %v380, %v383
      %v385 = vrot.slane %v384, 4
      %v387 = vshll.u32 %v355, 16
      %v389 = vrot.slane %v387, 5
      %v390 = vsel %vm362, %v385, %v389
      %v392 = vshrl.u32 %v356, 16
      %v394 = vrot.slane %v392, 4
      %v395 = vshll.u32 %v356, 16
      %v397 = vrot.slane %v395, 5
      %v398 = vor.u32 %v394, %v397
      %v399 = vrot.slane %v398, 4
      %v401 = vshll.u32 %v357, 16
      %v403 = vrot.slane %v401, 5
      %v404 = vsel %vm362, %v399, %v403
      %v406 = vshrl.u32 %v358, 16
      %v408 = vrot.slane %v406, 4
      %v409 = vshll.u32 %v358, 16
      %v411 = vrot.slane %v409, 5
      %v412 = vor.u32 %v408, %v411
      %v413 = vrot.slane %v412, 4
      %v415 = vshll.u32 %v359, 16
      %v417 = vrot.slane %v415, 5
      %v418 = vsel %vm362, %v413, %v417
      %s419 = scalar_lea.vmem %s243, 8
      %v420 = vld [vmem:[%s419] sm:$0xf]
      %v421 = vld [vmem:[%s419 + $0x4] sm:$0xf]
      %v422 = vunpack.c.l.b16 %v376
      %v423 = vunpack.c.l.b16 %v390
      %v424 = vunpack.c.l.b16 %v404
      %v425 = vunpack.c.l.b16 %v418
      %v426 = vpack.c.b16 %v423, %v422
      %v427 = vpack.c.b16 %v425, %v424
      %v430 = vunpack.c.l.b16 %v420
      %v431 = vunpack.c.l.b16 %v421
      %v432 = vpack.c.b16 %v431, %v430
      %v435 = vsel %vm292, %v426, 0
      %v438 = vsel %vm292, %v427, 0
      %440 = vmatprep.subr.bf16.mxu0 0
      %441 = vmatpush1.bf16.msra.mxu0 %v432
      %442 = vmatprep.subr.bf16.mxu0 0
      %443 = vmatpush1.bf16.msra.mxu0 0
      %444 = vmatprep.subr.bf16.mxu0 0
      %445 = vmatpush1.bf16.msra.mxu0 0
      %446 = vmatprep.subr.bf16.mxu0 0
      %447 = vmatpush1.bf16.msra.mxu0 0
      %448 = vmatprep.subr.bf16.mxu0 0
      %449 = vmatpush1.bf16.msra.mxu0 0
      %450 = vmatprep.subr.bf16.mxu0 0
      %451 = vmatpush1.bf16.msra.mxu0 0
      %452 = vmatprep.subr.bf16.mxu0 0
      %453 = vmatpush1.bf16.msra.mxu0 0
      %454 = vmatprep.subr.bf16.mxu0 0
      %455 = vmatpush1.bf16.msra.mxu0 0
      %456 = vmatprep.subr.bf16.mxu0 0
      %457 = vmatpush1.bf16.msra.mxu0 0
      %458 = vmatprep.subr.bf16.mxu0 0
      %459 = vmatpush1.bf16.msra.mxu0 0
      %460 = vmatprep.subr.bf16.mxu0 0
      %461 = vmatpush1.bf16.msra.mxu0 0
      %462 = vmatprep.subr.bf16.mxu0 0
      %463 = vmatpush1.bf16.msra.mxu0 0
      %464 = vmatprep.subr.bf16.mxu0 0
      %465 = vmatpush1.bf16.msra.mxu0 0
      %466 = vmatprep.subr.bf16.mxu0 0
      %467 = vmatpush1.bf16.msra.mxu0 0
      %468 = vmatprep.subr.bf16.mxu0 0
      %469 = vmatpush1.bf16.msra.mxu0 0
      %470 = vmatprep.subr.bf16.mxu0 0
      %471 = vmatpush1.bf16.msra.mxu0 0
      %472 = vmatprep.mubr.bf16.mxu0 0
      %473 = vmatmul.mubr.bf16.gmra.mrb[0].mxu0 %v435
      %v474 = vpop.f32.mrb[0].mxu0
      %v475 = vadd.f32 0.0, %v474
      %v476 = vpop.f32.mrb[0].mxu0
      %v477 = vpop.f32.mrb[0].mxu0
      %v478 = vadd.f32 0.0, %v477
      %v479 = vpop.f32.mrb[0].mxu0
      %480 = vmatprep.mubr.bf16.mxu0 0
      %481 = vmatmul.mubr.bf16.gmra.mrb[0].mxu0 %v438
      %v482 = vpop.f32.mrb[0].mxu0
      %v483 = vadd.f32 0.0, %v482
      %v484 = vpop.f32.mrb[0].mxu0
      %v485 = vpop.f32.mrb[0].mxu0
      %v486 = vadd.f32 0.0, %v485
      %v487 = vpop.f32.mrb[0].mxu0
      %488 = vdwg.mxu0
      %v489 = vadd.f32 %v348, %v475
      %v490 = vadd.f32 %v349, %v478
      %v491 = vadd.f32 %v350, %v483
      %v492 = vadd.f32 %v351, %v486
      %v493 = vld [vmem:[%s235] sm:$0xe]
      %v494 = vld [vmem:[%s235 + $0x8] sm:$0xe]
      %v495 = vld [vmem:[%s235 + $0x10] sm:$0xe]
      %v496 = vld [vmem:[%s235 + $0x18] sm:$0xe]
      %vm505 = vcmask 1042432
      %vm506 = vcmask 1046532
      %vm507 = vmor %vm505, %vm506
      %v508 = vrot.slane %v493, 5
      %v509 = vrot.slane %v508, 4
      %v510 = vrot.slane %v353, 5
      %v511 = vsel %vm507, %v509, %v510
      %v512 = vrot.slane %v494, 5
      %v513 = vrot.slane %v512, 4
      %v514 = vrot.slane %v355, 5
      %v515 = vsel %vm507, %v513, %v514
      %v516 = vrot.slane %v495, 5
      %v517 = vrot.slane %v516, 4
      %v518 = vrot.slane %v357, 5
      %v519 = vsel %vm507, %v517, %v518
      %v520 = vrot.slane %v496, 5
      %v521 = vrot.slane %v520, 4
      %v522 = vrot.slane %v359, 5
      %v523 = vsel %vm507, %v521, %v522
      %s524 = scalar_lea.vmem %s243, 16
      %v525 = vld [vmem:[%s524] sm:$0xf]
      %v526 = vld [vmem:[%s524 + $0x4] sm:$0xf]
      %v527 = vunpack.c.l.b16 %v511
      %v528 = vunpack.c.l.b16 %v515
      %v529 = vunpack.c.l.b16 %v519
      %v530 = vunpack.c.l.b16 %v523
      %v531 = vpack.c.b16 %v528, %v527
      %v532 = vpack.c.b16 %v530, %v529
      %v535 = vunpack.c.l.b16 %v525
      %v536 = vunpack.c.l.b16 %v526
      %v537 = vpack.c.b16 %v536, %v535
      %v540 = vsel %vm292, %v531, 0
      %v543 = vsel %vm292, %v532, 0
      %545 = vmatprep.subr.bf16.mxu0 0
      %546 = vmatpush1.bf16.msra.mxu0 %v537
      %547 = vmatprep.subr.bf16.mxu0 0
      %548 = vmatpush1.bf16.msra.mxu0 0
      %549 = vmatprep.subr.bf16.mxu0 0
      %550 = vmatpush1.bf16.msra.mxu0 0
      %551 = vmatprep.subr.bf16.mxu0 0
      %552 = vmatpush1.bf16.msra.mxu0 0
      %553 = vmatprep.subr.bf16.mxu0 0
      %554 = vmatpush1.bf16.msra.mxu0 0
      %555 = vmatprep.subr.bf16.mxu0 0
      %556 = vmatpush1.bf16.msra.mxu0 0
      %557 = vmatprep.subr.bf16.mxu0 0
      %558 = vmatpush1.bf16.msra.mxu0 0
      %559 = vmatprep.subr.bf16.mxu0 0
      %560 = vmatpush1.bf16.msra.mxu0 0
      %561 = vmatprep.subr.bf16.mxu0 0
      %562 = vmatpush1.bf16.msra.mxu0 0
      %563 = vmatprep.subr.bf16.mxu0 0
      %564 = vmatpush1.bf16.msra.mxu0 0
      %565 = vmatprep.subr.bf16.mxu0 0
      %566 = vmatpush1.bf16.msra.mxu0 0
      %567 = vmatprep.subr.bf16.mxu0 0
      %568 = vmatpush1.bf16.msra.mxu0 0
      %569 = vmatprep.subr.bf16.mxu0 0
      %570 = vmatpush1.bf16.msra.mxu0 0
      %571 = vmatprep.subr.bf16.mxu0 0
      %572 = vmatpush1.bf16.msra.mxu0 0
      %573 = vmatprep.subr.bf16.mxu0 0
      %574 = vmatpush1.bf16.msra.mxu0 0
      %575 = vmatprep.subr.bf16.mxu0 0
      %576 = vmatpush1.bf16.msra.mxu0 0
      %577 = vmatprep.mubr.bf16.mxu0 0
      %578 = vmatmul.mubr.bf16.gmra.mrb[0].mxu0 %v540
      %v579 = vpop.f32.mrb[0].mxu0
      %v580 = vadd.f32 0.0, %v579
      %v581 = vpop.f32.mrb[0].mxu0
      %v582 = vpop.f32.mrb[0].mxu0
      %v583 = vadd.f32 0.0, %v582
      %v584 = vpop.f32.mrb[0].mxu0
      %585 = vmatprep.mubr.bf16.mxu0 0
      %586 = vmatmul.mubr.bf16.gmra.mrb[0].mxu0 %v543
      %v587 = vpop.f32.mrb[0].mxu0
      %v588 = vadd.f32 0.0, %v587
      %v589 = vpop.f32.mrb[0].mxu0
      %v590 = vpop.f32.mrb[0].mxu0
      %v591 = vadd.f32 0.0, %v590
      %v592 = vpop.f32.mrb[0].mxu0
      %593 = vdwg.mxu0
      %v594 = vadd.f32 %v489, %v580
      %v595 = vadd.f32 %v490, %v583
      %v596 = vadd.f32 %v491, %v588
      %v597 = vadd.f32 %v492, %v591
      %s598 = scalar_lea.vmem %s235, 8
      %v599 = vld [vmem:[%s598] sm:$0xf]
      %v600 = vld [vmem:[%s598 + $0x8] sm:$0xf]
      %v601 = vld [vmem:[%s598 + $0x10] sm:$0xf]
      %v602 = vld [vmem:[%s598 + $0x18] sm:$0xf]
      %s603 = scalar_lea.vmem %s243, 24
      %v604 = vld [vmem:[%s603] sm:$0xf]
      %v605 = vld [vmem:[%s603 + $0x4] sm:$0xf]
      %v610 = vunpack.c.l.b16 %v599
      %v611 = vunpack.c.l.b16 %v600
      %v612 = vunpack.c.l.b16 %v601
      %v613 = vunpack.c.l.b16 %v602
      %v614 = vpack.c.b16 %v611, %v610
      %v615 = vpack.c.b16 %v613, %v612
      %v618 = vunpack.c.l.b16 %v604
      %v619 = vunpack.c.l.b16 %v605
      %v620 = vpack.c.b16 %v619, %v618
      %v623 = vsel %vm292, %v614, 0
      %v626 = vsel %vm292, %v615, 0
      %628 = vmatprep.subr.bf16.mxu0 0
      %629 = vmatpush1.bf16.msra.mxu0 %v620
      %630 = vmatprep.subr.bf16.mxu0 0
      %631 = vmatpush1.bf16.msra.mxu0 0
      %632 = vmatprep.subr.bf16.mxu0 0
      %633 = vmatpush1.bf16.msra.mxu0 0
      %634 = vmatprep.subr.bf16.mxu0 0
      %635 = vmatpush1.bf16.msra.mxu0 0
      %636 = vmatprep.subr.bf16.mxu0 0
      %637 = vmatpush1.bf16.msra.mxu0 0
      %638 = vmatprep.subr.bf16.mxu0 0
      %639 = vmatpush1.bf16.msra.mxu0 0
      %640 = vmatprep.subr.bf16.mxu0 0
      %641 = vmatpush1.bf16.msra.mxu0 0
      %642 = vmatprep.subr.bf16.mxu0 0
      %643 = vmatpush1.bf16.msra.mxu0 0
      %644 = vmatprep.subr.bf16.mxu0 0
      %645 = vmatpush1.bf16.msra.mxu0 0
      %646 = vmatprep.subr.bf16.mxu0 0
      %647 = vmatpush1.bf16.msra.mxu0 0
      %648 = vmatprep.subr.bf16.mxu0 0
      %649 = vmatpush1.bf16.msra.mxu0 0
      %650 = vmatprep.subr.bf16.mxu0 0
      %651 = vmatpush1.bf16.msra.mxu0 0
      %652 = vmatprep.subr.bf16.mxu0 0
      %653 = vmatpush1.bf16.msra.mxu0 0
      %654 = vmatprep.subr.bf16.mxu0 0
      %655 = vmatpush1.bf16.msra.mxu0 0
      %656 = vmatprep.subr.bf16.mxu0 0
      %657 = vmatpush1.bf16.msra.mxu0 0
      %658 = vmatprep.subr.bf16.mxu0 0
      %659 = vmatpush1.bf16.msra.mxu0 0
      %660 = vmatprep.mubr.bf16.mxu0 0
      %661 = vmatmul.mubr.bf16.gmra.mrb[0].mxu0 %v623
      %v662 = vpop.f32.mrb[0].mxu0
      %v663 = vadd.f32 0.0, %v662
      %v664 = vpop.f32.mrb[0].mxu0
      %v665 = vpop.f32.mrb[0].mxu0
      %v666 = vadd.f32 0.0, %v665
      %v667 = vpop.f32.mrb[0].mxu0
      %668 = vmatprep.mubr.bf16.mxu0 0
      %669 = vmatmul.mubr.bf16.gmra.mrb[0].mxu0 %v626
      %v670 = vpop.f32.mrb[0].mxu0
      %v671 = vadd.f32 0.0, %v670
      %v672 = vpop.f32.mrb[0].mxu0
      %v673 = vpop.f32.mrb[0].mxu0
      %v674 = vadd.f32 0.0, %v673
      %v675 = vpop.f32.mrb[0].mxu0
      %676 = vdwg.mxu0
      %v677 = vadd.f32 %v594, %v663
      %v678 = vadd.f32 %v595, %v666
      %v679 = vadd.f32 %v596, %v671
      %v680 = vadd.f32 %v597, %v674
      %v681 = vld [vmem:[%s598] sm:$0xf]
      %v682 = vld [vmem:[%s598 + $0x4] sm:$0x1]
      %v683 = vld [vmem:[%s598 + $0x8] sm:$0xf]
      %v684 = vld [vmem:[%s598 + $0xc] sm:$0x1]
      %v685 = vld [vmem:[%s598 + $0x10] sm:$0xf]
      %v686 = vld [vmem:[%s598 + $0x14] sm:$0x1]
      %v687 = vld [vmem:[%s598 + $0x18] sm:$0xf]
      %v688 = vld [vmem:[%s598 + $0x1c] sm:$0x1]
      %v690 = vshrl.u32 %v681, 16
      %v692 = vrot.slane %v690, 4
      %v693 = vshll.u32 %v681, 16
      %v695 = vrot.slane %v693, 5
      %v696 = vor.u32 %v692, %v695
      %v697 = vrot.slane %v696, 4
      %v699 = vshll.u32 %v682, 16
      %v701 = vrot.slane %v699, 5
      %v702 = vsel %vm362, %v697, %v701
      %v704 = vshrl.u32 %v683, 16
      %v706 = vrot.slane %v704, 4
      %v707 = vshll.u32 %v683, 16
      %v709 = vrot.slane %v707, 5
      %v710 = vor.u32 %v706, %v709
      %v711 = vrot.slane %v710, 4
      %v713 = vshll.u32 %v684, 16
      %v715 = vrot.slane %v713, 5
      %v716 = vsel %vm362, %v711, %v715
      %v718 = vshrl.u32 %v685, 16
      %v720 = vrot.slane %v718, 4
      %v721 = vshll.u32 %v685, 16
      %v723 = vrot.slane %v721, 5
      %v724 = vor.u32 %v720, %v723
      %v725 = vrot.slane %v724, 4
      %v727 = vshll.u32 %v686, 16
      %v729 = vrot.slane %v727, 5
      %v730 = vsel %vm362, %v725, %v729
      %v732 = vshrl.u32 %v687, 16
      %v734 = vrot.slane %v732, 4
      %v735 = vshll.u32 %v687, 16
      %v737 = vrot.slane %v735, 5
      %v738 = vor.u32 %v734, %v737
      %v739 = vrot.slane %v738, 4
      %v741 = vshll.u32 %v688, 16
      %v743 = vrot.slane %v741, 5
      %v744 = vsel %vm362, %v739, %v743
      %s745 = scalar_lea.vmem %s243, 32
      %v746 = vld [vmem:[%s745] sm:$0xf]
      %v747 = vld [vmem:[%s745 + $0x4] sm:$0xf]
      %v748 = vunpack.c.l.b16 %v702
      %v749 = vunpack.c.l.b16 %v716
      %v750 = vunpack.c.l.b16 %v730
      %v751 = vunpack.c.l.b16 %v744
      %v752 = vpack.c.b16 %v749, %v748
      %v753 = vpack.c.b16 %v751, %v750
      %v756 = vunpack.c.l.b16 %v746
      %v757 = vunpack.c.l.b16 %v747
      %v758 = vpack.c.b16 %v757, %v756
      %v761 = vsel %vm292, %v752, 0
      %v764 = vsel %vm292, %v753, 0
      %766 = vmatprep.subr.bf16.mxu0 0
      %767 = vmatpush1.bf16.msra.mxu0 %v758
      %768 = vmatprep.subr.bf16.mxu0 0
      %769 = vmatpush1.bf16.msra.mxu0 0
      %770 = vmatprep.subr.bf16.mxu0 0
      %771 = vmatpush1.bf16.msra.mxu0 0
      %772 = vmatprep.subr.bf16.mxu0 0
      %773 = vmatpush1.bf16.msra.mxu0 0
      %774 = vmatprep.subr.bf16.mxu0 0
      %775 = vmatpush1.bf16.msra.mxu0 0
      %776 = vmatprep.subr.bf16.mxu0 0
      %777 = vmatpush1.bf16.msra.mxu0 0
      %778 = vmatprep.subr.bf16.mxu0 0
      %779 = vmatpush1.bf16.msra.mxu0 0
      %780 = vmatprep.subr.bf16.mxu0 0
      %781 = vmatpush1.bf16.msra.mxu0 0
      %782 = vmatprep.subr.bf16.mxu0 0
      %783 = vmatpush1.bf16.msra.mxu0 0
      %784 = vmatprep.subr.bf16.mxu0 0
      %785 = vmatpush1.bf16.msra.mxu0 0
      %786 = vmatprep.subr.bf16.mxu0 0
      %787 = vmatpush1.bf16.msra.mxu0 0
      %788 = vmatprep.subr.bf16.mxu0 0
      %789 = vmatpush1.bf16.msra.mxu0 0
      %790 = vmatprep.subr.bf16.mxu0 0
      %791 = vmatpush1.bf16.msra.mxu0 0
      %792 = vmatprep.subr.bf16.mxu0 0
      %793 = vmatpush1.bf16.msra.mxu0 0
      %794 = vmatprep.subr.bf16.mxu0 0
      %795 = vmatpush1.bf16.msra.mxu0 0
      %796 = vmatprep.subr.bf16.mxu0 0
      %797 = vmatpush1.bf16.msra.mxu0 0
      %798 = vmatprep.mubr.bf16.mxu0 0
      %799 = vmatmul.mubr.bf16.gmra.mrb[0].mxu0 %v761
      %v800 = vpop.f32.mrb[0].mxu0
      %v801 = vadd.f32 0.0, %v800
      %v802 = vpop.f32.mrb[0].mxu0
      %v803 = vpop.f32.mrb[0].mxu0
      %v804 = vadd.f32 0.0, %v803
      %v805 = vpop.f32.mrb[0].mxu0
      %806 = vmatprep.mubr.bf16.mxu0 0
      %807 = vmatmul.mubr.bf16.gmra.mrb[0].mxu0 %v764
      %v808 = vpop.f32.mrb[0].mxu0
      %v809 = vadd.f32 0.0, %v808
      %v810 = vpop.f32.mrb[0].mxu0
      %v811 = vpop.f32.mrb[0].mxu0
      %v812 = vadd.f32 0.0, %v811
      %v813 = vpop.f32.mrb[0].mxu0
      %814 = vdwg.mxu0
      %v815 = vadd.f32 %v677, %v801
      %v816 = vadd.f32 %v678, %v804
      %v817 = vadd.f32 %v679, %v809
      %v818 = vadd.f32 %v680, %v812
      %v819 = vld [vmem:[%s598] sm:$0xe]
      %v820 = vld [vmem:[%s598 + $0x8] sm:$0xe]
      %v821 = vld [vmem:[%s598 + $0x10] sm:$0xe]
      %v822 = vld [vmem:[%s598 + $0x18] sm:$0xe]
      %v831 = vrot.slane %v819, 5
      %v832 = vrot.slane %v831, 4
      %v833 = vrot.slane %v682, 5
      %v834 = vsel %vm507, %v832, %v833
      %v835 = vrot.slane %v820, 5
      %v836 = vrot.slane %v835, 4
      %v837 = vrot.slane %v684, 5
      %v838 = vsel %vm507, %v836, %v837
      %v839 = vrot.slane %v821, 5
      %v840 = vrot.slane %v839, 4
      %v841 = vrot.slane %v686, 5
      %v842 = vsel %vm507, %v840, %v841
      %v843 = vrot.slane %v822, 5
      %v844 = vrot.slane %v843, 4
      %v845 = vrot.slane %v688, 5
      %v846 = vsel %vm507, %v844, %v845
      %s847 = scalar_lea.vmem %s243, 40
      %v848 = vld [vmem:[%s847] sm:$0xf]
      %v849 = vld [vmem:[%s847 + $0x4] sm:$0xf]
      %v850 = vunpack.c.l.b16 %v834
      %v851 = vunpack.c.l.b16 %v838
      %v852 = vunpack.c.l.b16 %v842
      %v853 = vunpack.c.l.b16 %v846
      %v854 = vpack.c.b16 %v851, %v850
      %v855 = vpack.c.b16 %v853, %v852
      %v858 = vunpack.c.l.b16 %v848
      %v859 = vunpack.c.l.b16 %v849
      %v860 = vpack.c.b16 %v859, %v858
      %v863 = vsel %vm292, %v854, 0
      %v866 = vsel %vm292, %v855, 0
      %868 = vmatprep.subr.bf16.mxu0 0
      %869 = vmatpush1.bf16.msra.mxu0 %v860
      %870 = vmatprep.subr.bf16.mxu0 0
      %871 = vmatpush1.bf16.msra.mxu0 0
      %872 = vmatprep.subr.bf16.mxu0 0
      %873 = vmatpush1.bf16.msra.mxu0 0
      %874 = vmatprep.subr.bf16.mxu0 0
      %875 = vmatpush1.bf16.msra.mxu0 0
      %876 = vmatprep.subr.bf16.mxu0 0
      %877 = vmatpush1.bf16.msra.mxu0 0
      %878 = vmatprep.subr.bf16.mxu0 0
      %879 = vmatpush1.bf16.msra.mxu0 0
      %880 = vmatprep.subr.bf16.mxu0 0
      %881 = vmatpush1.bf16.msra.mxu0 0
      %882 = vmatprep.subr.bf16.mxu0 0
      %883 = vmatpush1.bf16.msra.mxu0 0
      %884 = vmatprep.subr.bf16.mxu0 0
      %885 = vmatpush1.bf16.msra.mxu0 0
      %886 = vmatprep.subr.bf16.mxu0 0
      %887 = vmatpush1.bf16.msra.mxu0 0
      %888 = vmatprep.subr.bf16.mxu0 0
      %889 = vmatpush1.bf16.msra.mxu0 0
      %890 = vmatprep.subr.bf16.mxu0 0
      %891 = vmatpush1.bf16.msra.mxu0 0
      %892 = vmatprep.subr.bf16.mxu0 0
      %893 = vmatpush1.bf16.msra.mxu0 0
      %894 = vmatprep.subr.bf16.mxu0 0
      %895 = vmatpush1.bf16.msra.mxu0 0
      %896 = vmatprep.subr.bf16.mxu0 0
      %897 = vmatpush1.bf16.msra.mxu0 0
      %898 = vmatprep.subr.bf16.mxu0 0
      %899 = vmatpush1.bf16.msra.mxu0 0
      %900 = vmatprep.mubr.bf16.mxu0 0
      %901 = vmatmul.mubr.bf16.gmra.mrb[0].mxu0 %v863
      %v902 = vpop.f32.mrb[0].mxu0
      %v903 = vadd.f32 0.0, %v902
      %v904 = vpop.f32.mrb[0].mxu0
      %v905 = vpop.f32.mrb[0].mxu0
      %v906 = vadd.f32 0.0, %v905
      %v907 = vpop.f32.mrb[0].mxu0
      %908 = vmatprep.mubr.bf16.mxu0 0
      %909 = vmatmul.mubr.bf16.gmra.mrb[0].mxu0 %v866
      %v910 = vpop.f32.mrb[0].mxu0
      %v911 = vadd.f32 0.0, %v910
      %v912 = vpop.f32.mrb[0].mxu0
      %v913 = vpop.f32.mrb[0].mxu0
      %v914 = vadd.f32 0.0, %v913
      %v915 = vpop.f32.mrb[0].mxu0
      %916 = vdwg.mxu0
      %v917 = vadd.f32 %v815, %v903
      %v918 = vadd.f32 %v816, %v906
      %v919 = vadd.f32 %v817, %v911
      %v920 = vadd.f32 %v818, %v914
      %s921 = scalar_lea.vmem %s235, 16
      %v922 = vld [vmem:[%s921] sm:$0xf]
      %v923 = vld [vmem:[%s921 + $0x8] sm:$0xf]
      %v924 = vld [vmem:[%s921 + $0x10] sm:$0xf]
      %v925 = vld [vmem:[%s921 + $0x18] sm:$0xf]
      %s926 = scalar_lea.vmem %s243, 48
      %v927 = vld [vmem:[%s926] sm:$0xf]
      %v928 = vld [vmem:[%s926 + $0x4] sm:$0xf]
      %v933 = vunpack.c.l.b16 %v922
      %v934 = vunpack.c.l.b16 %v923
      %v935 = vunpack.c.l.b16 %v924
      %v936 = vunpack.c.l.b16 %v925
      %v937 = vpack.c.b16 %v934, %v933
      %v938 = vpack.c.b16 %v936, %v935
      %v941 = vunpack.c.l.b16 %v927
      %v942 = vunpack.c.l.b16 %v928
      %v943 = vpack.c.b16 %v942, %v941
      %v946 = vsel %vm292, %v937, 0
      %v949 = vsel %vm292, %v938, 0
      %951 = vmatprep.subr.bf16.mxu0 0
      %952 = vmatpush1.bf16.msra.mxu0 %v943
      %953 = vmatprep.subr.bf16.mxu0 0
      %954 = vmatpush1.bf16.msra.mxu0 0
      %955 = vmatprep.subr.bf16.mxu0 0
      %956 = vmatpush1.bf16.msra.mxu0 0
      %957 = vmatprep.subr.bf16.mxu0 0
      %958 = vmatpush1.bf16.msra.mxu0 0
      %959 = vmatprep.subr.bf16.mxu0 0
      %960 = vmatpush1.bf16.msra.mxu0 0
      %961 = vmatprep.subr.bf16.mxu0 0
      %962 = vmatpush1.bf16.msra.mxu0 0
      %963 = vmatprep.subr.bf16.mxu0 0
      %964 = vmatpush1.bf16.msra.mxu0 0
      %965 = vmatprep.subr.bf16.mxu0 0
      %966 = vmatpush1.bf16.msra.mxu0 0
      %967 = vmatprep.subr.bf16.mxu0 0
      %968 = vmatpush1.bf16.msra.mxu0 0
      %969 = vmatprep.subr.bf16.mxu0 0
      %970 = vmatpush1.bf16.msra.mxu0 0
      %971 = vmatprep.subr.bf16.mxu0 0
      %972 = vmatpush1.bf16.msra.mxu0 0
      %973 = vmatprep.subr.bf16.mxu0 0
      %974 = vmatpush1.bf16.msra.mxu0 0
      %975 = vmatprep.subr.bf16.mxu0 0
      %976 = vmatpush1.bf16.msra.mxu0 0
      %977 = vmatprep.subr.bf16.mxu0 0
      %978 = vmatpush1.bf16.msra.mxu0 0
      %979 = vmatprep.subr.bf16.mxu0 0
      %980 = vmatpush1.bf16.msra.mxu0 0
      %981 = vmatprep.subr.bf16.mxu0 0
      %982 = vmatpush1.bf16.msra.mxu0 0
      %983 = vmatprep.mubr.bf16.mxu0 0
      %984 = vmatmul.mubr.bf16.gmra.mrb[0].mxu0 %v946
      %v985 = vpop.f32.mrb[0].mxu0
      %v986 = vadd.f32 0.0, %v985
      %v987 = vpop.f32.mrb[0].mxu0
      %v988 = vpop.f32.mrb[0].mxu0
      %v989 = vadd.f32 0.0, %v988
      %v990 = vpop.f32.mrb[0].mxu0
      %991 = vmatprep.mubr.bf16.mxu0 0
      %992 = vmatmul.mubr.bf16.gmra.mrb[0].mxu0 %v949
      %v993 = vpop.f32.mrb[0].mxu0
      %v994 = vadd.f32 0.0, %v993
      %v995 = vpop.f32.mrb[0].mxu0
      %v996 = vpop.f32.mrb[0].mxu0
      %v997 = vadd.f32 0.0, %v996
      %v998 = vpop.f32.mrb[0].mxu0
      %999 = vdwg.mxu0
      %v1000 = vadd.f32 %v917, %v986
      %v1001 = vadd.f32 %v918, %v989
      %v1002 = vadd.f32 %v919, %v994
      %v1003 = vadd.f32 %v920, %v997
      %v1004 = vld [vmem:[%s921] sm:$0xf]
      %v1005 = vld [vmem:[%s921 + $0x4] sm:$0x1]
      %v1006 = vld [vmem:[%s921 + $0x8] sm:$0xf]
      %v1007 = vld [vmem:[%s921 + $0xc] sm:$0x1]
      %v1008 = vld [vmem:[%s921 + $0x10] sm:$0xf]
      %v1009 = vld [vmem:[%s921 + $0x14] sm:$0x1]
      %v1010 = vld [vmem:[%s921 + $0x18] sm:$0xf]
      %v1011 = vld [vmem:[%s921 + $0x1c] sm:$0x1]
      %v1013 = vshrl.u32 %v1004, 16
      %v1015 = vrot.slane %v1013, 4
      %v1016 = vshll.u32 %v1004, 16
      %v1018 = vrot.slane %v1016, 5
      %v1019 = vor.u32 %v1015, %v1018
      %v1020 = vrot.slane %v1019, 4
      %v1022 = vshll.u32 %v1005, 16
      %v1024 = vrot.slane %v1022, 5
      %v1025 = vsel %vm362, %v1020, %v1024
      %v1027 = vshrl.u32 %v1006, 16
      %v1029 = vrot.slane %v1027, 4
      %v1030 = vshll.u32 %v1006, 16
      %v1032 = vrot.slane %v1030, 5
      %v1033 = vor.u32 %v1029, %v1032
      %v1034 = vrot.slane %v1033, 4
      %v1036 = vshll.u32 %v1007, 16
      %v1038 = vrot.slane %v1036, 5
      %v1039 = vsel %vm362, %v1034, %v1038
      %v1041 = vshrl.u32 %v1008, 16
      %v1043 = vrot.slane %v1041, 4
      %v1044 = vshll.u32 %v1008, 16
      %v1046 = vrot.slane %v1044, 5
      %v1047 = vor.u32 %v1043, %v1046
      %v1048 = vrot.slane %v1047, 4
      %v1050 = vshll.u32 %v1009, 16
      %v1052 = vrot.slane %v1050, 5
      %v1053 = vsel %vm362, %v1048, %v1052
      %v1055 = vshrl.u32 %v1010, 16
      %v1057 = vrot.slane %v1055, 4
      %v1058 = vshll.u32 %v1010, 16
      %v1060 = vrot.slane %v1058, 5
      %v1061 = vor.u32 %v1057, %v1060
      %v1062 = vrot.slane %v1061, 4
      %v1064 = vshll.u32 %v1011, 16
      %v1066 = vrot.slane %v1064, 5
      %v1067 = vsel %vm362, %v1062, %v1066
      %s1068 = scalar_lea.vmem %s243, 56
      %v1069 = vld [vmem:[%s1068] sm:$0xf]
      %v1070 = vld [vmem:[%s1068 + $0x4] sm:$0xf]
      %v1071 = vunpack.c.l.b16 %v1025
      %v1072 = vunpack.c.l.b16 %v1039
      %v1073 = vunpack.c.l.b16 %v1053
      %v1074 = vunpack.c.l.b16 %v1067
      %v1075 = vpack.c.b16 %v1072, %v1071
      %v1076 = vpack.c.b16 %v1074, %v1073
      %v1079 = vunpack.c.l.b16 %v1069
      %v1080 = vunpack.c.l.b16 %v1070
      %v1081 = vpack.c.b16 %v1080, %v1079
      %v1084 = vsel %vm292, %v1075, 0
      %v1087 = vsel %vm292, %v1076, 0
      %1089 = vmatprep.subr.bf16.mxu0 0
      %1090 = vmatpush1.bf16.msra.mxu0 %v1081
      %1091 = vmatprep.subr.bf16.mxu0 0
      %1092 = vmatpush1.bf16.msra.mxu0 0
      %1093 = vmatprep.subr.bf16.mxu0 0
      %1094 = vmatpush1.bf16.msra.mxu0 0
      %1095 = vmatprep.subr.bf16.mxu0 0
      %1096 = vmatpush1.bf16.msra.mxu0 0
      %1097 = vmatprep.subr.bf16.mxu0 0
      %1098 = vmatpush1.bf16.msra.mxu0 0
      %1099 = vmatprep.subr.bf16.mxu0 0
      %1100 = vmatpush1.bf16.msra.mxu0 0
      %1101 = vmatprep.subr.bf16.mxu0 0
      %1102 = vmatpush1.bf16.msra.mxu0 0
      %1103 = vmatprep.subr.bf16.mxu0 0
      %1104 = vmatpush1.bf16.msra.mxu0 0
      %1105 = vmatprep.subr.bf16.mxu0 0
      %1106 = vmatpush1.bf16.msra.mxu0 0
      %1107 = vmatprep.subr.bf16.mxu0 0
      %1108 = vmatpush1.bf16.msra.mxu0 0
      %1109 = vmatprep.subr.bf16.mxu0 0
      %1110 = vmatpush1.bf16.msra.mxu0 0
      %1111 = vmatprep.subr.bf16.mxu0 0
      %1112 = vmatpush1.bf16.msra.mxu0 0
      %1113 = vmatprep.subr.bf16.mxu0 0
      %1114 = vmatpush1.bf16.msra.mxu0 0
      %1115 = vmatprep.subr.bf16.mxu0 0
      %1116 = vmatpush1.bf16.msra.mxu0 0
      %1117 = vmatprep.subr.bf16.mxu0 0
      %1118 = vmatpush1.bf16.msra.mxu0 0
      %1119 = vmatprep.subr.bf16.mxu0 0
      %1120 = vmatpush1.bf16.msra.mxu0 0
      %1121 = vmatprep.mubr.bf16.mxu0 0
      %1122 = vmatmul.mubr.bf16.gmra.mrb[0].mxu0 %v1084
      %v1123 = vpop.f32.mrb[0].mxu0
      %v1124 = vadd.f32 0.0, %v1123
      %v1125 = vpop.f32.mrb[0].mxu0
      %v1126 = vpop.f32.mrb[0].mxu0
      %v1127 = vadd.f32 0.0, %v1126
      %v1128 = vpop.f32.mrb[0].mxu0
      %1129 = vmatprep.mubr.bf16.mxu0 0
      %1130 = vmatmul.mubr.bf16.gmra.mrb[0].mxu0 %v1087
      %v1131 = vpop.f32.mrb[0].mxu0
      %v1132 = vadd.f32 0.0, %v1131
      %v1133 = vpop.f32.mrb[0].mxu0
      %v1134 = vpop.f32.mrb[0].mxu0
      %v1135 = vadd.f32 0.0, %v1134
      %v1136 = vpop.f32.mrb[0].mxu0
      %1137 = vdwg.mxu0
      %v1138 = vadd.f32 %v1000, %v1124
      %v1139 = vadd.f32 %v1001, %v1127
      %v1140 = vadd.f32 %v1002, %v1132
      %v1141 = vadd.f32 %v1003, %v1135
      %v1142 = vld [vmem:[%s921] sm:$0xe]
      %v1143 = vld [vmem:[%s921 + $0x8] sm:$0xe]
      %v1144 = vld [vmem:[%s921 + $0x10] sm:$0xe]
      %v1145 = vld [vmem:[%s921 + $0x18] sm:$0xe]
      %v1154 = vrot.slane %v1142, 5
      %v1155 = vrot.slane %v1154, 4
      %v1156 = vrot.slane %v1005, 5
      %v1157 = vsel %vm507, %v1155, %v1156
      %v1158 = vrot.slane %v1143, 5
      %v1159 = vrot.slane %v1158, 4
      %v1160 = vrot.slane %v1007, 5
      %v1161 = vsel %vm507, %v1159, %v1160
      %v1162 = vrot.slane %v1144, 5
      %v1163 = vrot.slane %v1162, 4
      %v1164 = vrot.slane %v1009, 5
      %v1165 = vsel %vm507, %v1163, %v1164
      %v1166 = vrot.slane %v1145, 5
      %v1167 = vrot.slane %v1166, 4
      %v1168 = vrot.slane %v1011, 5
      %v1169 = vsel %vm507, %v1167, %v1168
      %s1170 = scalar_lea.vmem %s243, 64
      %v1171 = vld [vmem:[%s1170] sm:$0xf]
      %v1172 = vld [vmem:[%s1170 + $0x4] sm:$0xf]
      %v1173 = vunpack.c.l.b16 %v1157
      %v1174 = vunpack.c.l.b16 %v1161
      %v1175 = vunpack.c.l.b16 %v1165
      %v1176 = vunpack.c.l.b16 %v1169
      %v1177 = vpack.c.b16 %v1174, %v1173
      %v1178 = vpack.c.b16 %v1176, %v1175
      %v1181 = vunpack.c.l.b16 %v1171
      %v1182 = vunpack.c.l.b16 %v1172
      %v1183 = vpack.c.b16 %v1182, %v1181
      %v1186 = vsel %vm292, %v1177, 0
      %v1189 = vsel %vm292, %v1178, 0
      %1191 = vmatprep.subr.bf16.mxu0 0
      %1192 = vmatpush1.bf16.msra.mxu0 %v1183
      %1193 = vmatprep.subr.bf16.mxu0 0
      %1194 = vmatpush1.bf16.msra.mxu0 0
      %1195 = vmatprep.subr.bf16.mxu0 0
      %1196 = vmatpush1.bf16.msra.mxu0 0
      %1197 = vmatprep.subr.bf16.mxu0 0
      %1198 = vmatpush1.bf16.msra.mxu0 0
      %1199 = vmatprep.subr.bf16.mxu0 0
      %1200 = vmatpush1.bf16.msra.mxu0 0
      %1201 = vmatprep.subr.bf16.mxu0 0
      %1202 = vmatpush1.bf16.msra.mxu0 0
      %1203 = vmatprep.subr.bf16.mxu0 0
      %1204 = vmatpush1.bf16.msra.mxu0 0
      %1205 = vmatprep.subr.bf16.mxu0 0
      %1206 = vmatpush1.bf16.msra.mxu0 0
      %1207 = vmatprep.subr.bf16.mxu0 0
      %1208 = vmatpush1.bf16.msra.mxu0 0
      %1209 = vmatprep.subr.bf16.mxu0 0
      %1210 = vmatpush1.bf16.msra.mxu0 0
      %1211 = vmatprep.subr.bf16.mxu0 0
      %1212 = vmatpush1.bf16.msra.mxu0 0
      %1213 = vmatprep.subr.bf16.mxu0 0
      %1214 = vmatpush1.bf16.msra.mxu0 0
      %1215 = vmatprep.subr.bf16.mxu0 0
      %1216 = vmatpush1.bf16.msra.mxu0 0
      %1217 = vmatprep.subr.bf16.mxu0 0
      %1218 = vmatpush1.bf16.msra.mxu0 0
      %1219 = vmatprep.subr.bf16.mxu0 0
      %1220 = vmatpush1.bf16.msra.mxu0 0
      %1221 = vmatprep.subr.bf16.mxu0 0
      %1222 = vmatpush1.bf16.msra.mxu0 0
      %1223 = vmatprep.mubr.bf16.mxu0 0
      %1224 = vmatmul.mubr.bf16.gmra.mrb[0].mxu0 %v1186
      %v1225 = vpop.f32.mrb[0].mxu0
      %v1226 = vadd.f32 0.0, %v1225
      %v1227 = vpop.f32.mrb[0].mxu0
      %v1228 = vpop.f32.mrb[0].mxu0
      %v1229 = vadd.f32 0.0, %v1228
      %v1230 = vpop.f32.mrb[0].mxu0
      %1231 = vmatprep.mubr.bf16.mxu0 0
      %1232 = vmatmul.mubr.bf16.gmra.mrb[0].mxu0 %v1189
      %v1233 = vpop.f32.mrb[0].mxu0
      %v1234 = vadd.f32 0.0, %v1233
      %v1235 = vpop.f32.mrb[0].mxu0
      %v1236 = vpop.f32.mrb[0].mxu0
      %v1237 = vadd.f32 0.0, %v1236
      %v1238 = vpop.f32.mrb[0].mxu0
      %1239 = vdwg.mxu0
      %v1240 = vadd.f32 %v1138, %v1226
      %v1241 = vadd.f32 %v1139, %v1229
      %v1242 = vadd.f32 %v1140, %v1234
      %v1243 = vadd.f32 %v1141, %v1237
      %vm1244 = vcmask 64512
      %1245 = vst.msk [vmem:[#allocation2] sm:$0xff] %vm1244, %v1240
      %1246 = vst.msk [vmem:[#allocation2 + $0x8] sm:$0xff] %vm1244, %v1241
      %1247 = vst.msk [vmem:[#allocation2 + $0x10] sm:$0xff] %vm1244, %v1242
      %1248 = vst.msk [vmem:[#allocation2 + $0x18] sm:$0xff] %vm1244, %v1243
      // Predicated region
      $region37: #{_conv3x3_direct.1} parent=31 // pred_check
        %p1249 = pneg %p257
      $region38: #{_conv3x3_direct.1} parent=31 // pred_check_branch
        %1251 = sbr.rel (%p1249) target = $region40
      $region39: #{_conv3x3_direct.1} parent=31 // pred_region
        %v1252 = vld [vmem:[#allocation2] sm:$0xff]
        %v1253 = vld [vmem:[#allocation2 + $0x8] sm:$0xff]
        %v1254 = vld [vmem:[#allocation2 + $0x10] sm:$0xff]
        %v1255 = vld [vmem:[#allocation2 + $0x18] sm:$0xff]
        %v1256 = vld [vmem:[%s247] sm:$0x1]
        %v1258 = vlaneseq
        %v1259 = vshrl.u32 %v1258, 7
        %v1260 = vsub.s32 0, %v1259
        %v1261 = vrot.slane %v1256, %v1260
        %v1263 = vadd.f32 %v1252, %v1261
        %v1264 = vadd.f32 %v1253, %v1261
        %v1265 = vadd.f32 %v1254, %v1261
        %v1266 = vadd.f32 %v1255, %v1261
        %1267 = vst.msk [vmem:[%s255] sm:$0xff] %vm1244, %v1263
        %1268 = vst.msk [vmem:[%s255 + $0x8] sm:$0xff] %vm1244, %v1264
        %1269 = vst.msk [vmem:[%s255 + $0x10] sm:$0xff] %vm1244, %v1265
        %1270 = vst.msk [vmem:[%s255 + $0x18] sm:$0xff] %vm1244, %v1266
      $region40: #{_conv3x3_direct.1} parent=31 // pred_fallthru
        _
      %p1271 = scmp.lt.s32.totalorder %s19, 1
      %s1272 = scalar_select %p1271, %s19, 1
      %p1273 = scmp.lt.s32.totalorder %s20, 0
      %s1274 = scalar_select %p1273, %s20, 0
      %s1275 = smul.addr %s1272, 4
      %s1276 = sadd.s32 %s1274, %s1275
      %s1277 = smul.addr %s1276, 8
      %s1278 = scalar_lea.vmem %s3, %s1277
      // Predicated region
      $region41: #{_conv3x3_direct.1} parent=31 // pred_check
        %p1279 = pneg %p135
      $region42: #{_conv3x3_direct.1} parent=31 // pred_check_branch
        %1281 = sbr.rel (%p1279) target = $region44
      $region43: #{_conv3x3_direct.1} parent=31 // pred_region
        _
      $region44: #{_conv3x3_direct.1} parent=31 // pred_fallthru
        _
    $region32: #{_conv3x3_direct.1} parent=5 // pred_fallthru
      _
    %p1282 = scmp.le.s32.totalorder 2, %s9
    // Predicated region
    $region45: #{_conv3x3_direct.1} parent=5 // pred_check
      %p1283 = pneg %p1282
    $region46: #{_conv3x3_direct.1} parent=5 // pred_check_branch
      %1285 = sbr.rel (%p1283) target = $region48
    $region47: #{_conv3x3_direct.1} parent=5 // pred_region
      %s1286 = ssub.s32 %s9, 2
      // Predicated region
      $region49: #{_conv3x3_direct.1} parent=47 // pred_check
        %p1287 = pneg %p141
      $region50: #{_conv3x3_direct.1} parent=47 // pred_check_branch
        %1289 = sbr.rel (%p1287) target = $region52
      $region51: #{_conv3x3_direct.1} parent=47 // pred_region
        %p1290 = scmp.lt.s32.totalorder %s22, 1
        %s1291 = scalar_select %p1290, %s22, 1
        %p1292 = scmp.lt.s32.totalorder %s23, 0
        %s1293 = scalar_select %p1292, %s23, 0
        %s1294 = smul.addr %s1291, 4
        %s1295 = sadd.s32 %s1293, %s1294
        %s1296 = smul.addr %s1295, 8
        %s1297 = scalar_lea.vmem %s3, %s1296
      $region52: #{_conv3x3_direct.1} parent=47 // pred_fallthru
        _
    $region48: #{_conv3x3_direct.1} parent=5 // pred_fallthru
      _
  $region6: #{_conv3x3_direct.1} parent=0 // loop_footer
    %s13 = sadd.s32 1, %s9
  $region7: #{_conv3x3_direct.1} parent=0 // loop_footer_branch
    %8 = sbr.rel target = $region3
  $region8: #{_conv3x3_direct.1} parent=0 // loop_exit
    _

// kernel: matmul_bias.1
$region0: #{matmul_bias.1}
  #allocation0 [shape = 'u32[]', space=smem, size = 0x4, offset = 0x4, fixed_abs, tag = 'smem constant byte address 0x4 - core index']
  #allocation1 [shape = 'u32[144,128]{1,0:T(1,128)}', space=vmem, size = 0x12000, scoped, tag = 'internal scratch']
  #allocation2 [shape = 'f32[8,512]{1,0:T(8,128)}', space=vmem, size = 0x4000, scoped, tag = 'scratch operand']
  %s0 = inlined_call_operand.vmem [shape: bf16[8,1024], index: 0, kind: input, shape index: {}]
  %s1 = inlined_call_operand.hbm [shape: bf16[1024,512], index: 1, kind: input, shape index: {}]
  %s2 = inlined_call_operand.vmem [shape: f32[1,512], index: 2, kind: input, shape index: {}]
  %s3 = inlined_call_operand.hbm [shape: f32[8,512], index: 3, kind: output, shape index: {}]
  %s4 = sld [smem:[#allocation0]]
  $region34: #{matmul_bias.1} parent=0
    _
  %s6 = ssub.s32 1, %s4
  %s7 = scalar_select 0, %s6, %s4
  $region1: #{matmul_bias.1} parent=0
    #allocation3 [shape = 'u8[1048576]{0}', space=vmem, size = 0x100000, scoped, tag = 'input window, operand 1, single buffered']
    #allocation4 [shape = 's32[1]{0}', space=sflag, size = 0x4, scoped, tag = 'scoped memory for matmul_bias.1']
    #allocation5 [shape = 's32[1]{0}', space=sflag, size = 0x4, scoped, tag = 'scoped memory for matmul_bias.1']
    #allocation6 [shape = 'u8[16384]{0}', space=vmem, size = 0x4000, scoped, tag = 'output window, operand 0, single buffered']
    %8 = vsyncpa [#allocation4], 0
    %9 = vsyncpa [#allocation5], 0
    // Predicated region
    $region2: #{matmul_bias.1} parent=1 // pred_check
      _
    $region3: #{matmul_bias.1} parent=1 // pred_check_branch
      %11 = sbr.rel (0) target = $region5
    $region4: #{matmul_bias.1} parent=1 // pred_region
      _
    $region5: #{matmul_bias.1} parent=1 // pred_fallthru
      _
    // Predicated region
    $region6: #{matmul_bias.1} parent=1 // pred_check
      _
    $region7: #{matmul_bias.1} parent=1 // pred_check_branch
      %13 = sbr.rel (0) target = $region9
    $region8: #{matmul_bias.1} parent=1 // pred_region
      %s15 = ssub.s32 32768, 32768
      %16 = vsyncadd [#allocation4], %s15
      %s17 = sshll.u32 [#allocation3], 4
      %s18 = int_to_ptr.vmem [resolvable:$true] %s17
      %23 = dma.hbm_to_vmem [thread:$0]  %s1, 32768, %s18, [#allocation4], 256, 256, 16
    $region9: #{matmul_bias.1} parent=1 // pred_fallthru
      _
    // Predicated region
    $region10: #{matmul_bias.1} parent=1 // pred_check
      _
    $region11: #{matmul_bias.1} parent=1 // pred_check_branch
      %25 = sbr.rel (0) target = $region13
    $region12: #{matmul_bias.1} parent=1 // pred_region
      _
    $region13: #{matmul_bias.1} parent=1 // pred_fallthru
      _
    // Predicated region
    $region14: #{matmul_bias.1} parent=1 // pred_check
      _
    $region15: #{matmul_bias.1} parent=1 // pred_check_branch
      %27 = sbr.rel (0) target = $region17
    $region16: #{matmul_bias.1} parent=1 // pred_region
      %28 = dma.done [#allocation4], 32768
    $region17: #{matmul_bias.1} parent=1 // pred_fallthru
      _
    %p29 = scmp.eq.s32.totalorder 0, 0
    // Predicated region
    $region18: #{matmul_bias.1} parent=1 // pred_check
      %p30 = pneg %p29
    $region19: #{matmul_bias.1} parent=1 // pred_check_branch
      %32 = sbr.rel (%p30) target = $region21
    $region20: #{matmul_bias.1} parent=1 // pred_region
      %33 = vst [vmem:[#allocation2] sm:$0xff] 0.0
      %34 = vst [vmem:[#allocation2 + $0x8] sm:$0xff] 0.0
      %35 = vst [vmem:[#allocation2 + $0x10] sm:$0xff] 0.0
      %36 = vst [vmem:[#allocation2 + $0x18] sm:$0xff] 0.0
    $region21: #{matmul_bias.1} parent=1 // pred_fallthru
      _
    %v37 = vld [vmem:[#allocation2] sm:$0xff]
    %v38 = vld [vmem:[#allocation2 + $0x8] sm:$0xff]
    %v39 = vld [vmem:[#allocation2 + $0x10] sm:$0xff]
    %v40 = vld [vmem:[#allocation2 + $0x18] sm:$0xff]
    %v41 = vld [vmem:[%s0] sm:$0xff]
    %v42 = vld [vmem:[%s0 + $0x8] sm:$0xff]
    %v43 = vld [vmem:[%s0 + $0x10] sm:$0xff]
    %v44 = vld [vmem:[%s0 + $0x18] sm:$0xff]
    %v45 = vld [vmem:[#allocation3] sm:$0xff]
    %v46 = vld [vmem:[#allocation3 + $0x8] sm:$0xff]
    %v47 = vld [vmem:[#allocation3 + $0x10] sm:$0xff]
    %v48 = vld [vmem:[#allocation3 + $0x18] sm:$0xff]
    %v49 = vld [vmem:[#allocation3 + $0x20] sm:$0xff]
    %v50 = vld [vmem:[#allocation3 + $0x28] sm:$0xff]
    %v51 = vld [vmem:[#allocation3 + $0x30] sm:$0xff]
    %v52 = vld [vmem:[#allocation3 + $0x38] sm:$0xff]
    %v53 = vld [vmem:[#allocation3 + $0x40] sm:$0xff]
    %v54 = vld [vmem:[#allocation3 + $0x48] sm:$0xff]
    %v55 = vld [vmem:[#allocation3 + $0x50] sm:$0xff]
    %v56 = vld [vmem:[#allocation3 + $0x58] sm:$0xff]
    %v57 = vld [vmem:[#allocation3 + $0x60] sm:$0xff]
    %v58 = vld [vmem:[#allocation3 + $0x68] sm:$0xff]
    %v59 = vld [vmem:[#allocation3 + $0x70] sm:$0xff]
    %v60 = vld [vmem:[#allocation3 + $0x78] sm:$0xff]
    %v61 = vld [vmem:[#allocation3 + $0x80] sm:$0xff]
    %v62 = vld [vmem:[#allocation3 + $0x88] sm:$0xff]
    %v63 = vld [vmem:[#allocation3 + $0x90] sm:$0xff]
    %v64 = vld [vmem:[#allocation3 + $0x98] sm:$0xff]
    %v65 = vld [vmem:[#allocation3 + $0xa0] sm:$0xff]
    %v66 = vld [vmem:[#allocation3 + $0xa8] sm:$0xff]
    %v67 = vld [vmem:[#allocation3 + $0xb0] sm:$0xff]
    %v68 = vld [vmem:[#allocation3 + $0xb8] sm:$0xff]
    %v69 = vld [vmem:[#allocation3 + $0xc0] sm:$0xff]
    %v70 = vld [vmem:[#allocation3 + $0xc8] sm:$0xff]
    %v71 = vld [vmem:[#allocation3 + $0xd0] sm:$0xff]
    %v72 = vld [vmem:[#allocation3 + $0xd8] sm:$0xff]
    %v73 = vld [vmem:[#allocation3 + $0xe0] sm:$0xff]
    %v74 = vld [vmem:[#allocation3 + $0xe8] sm:$0xff]
    %v75 = vld [vmem:[#allocation3 + $0xf0] sm:$0xff]
    %v76 = vld [vmem:[#allocation3 + $0xf8] sm:$0xff]
    %v77 = vld [vmem:[#allocation3 + $0x100] sm:$0xff]
    %v78 = vld [vmem:[#allocation3 + $0x108] sm:$0xff]
    %v79 = vld [vmem:[#allocation3 + $0x110] sm:$0xff]
    %v80 = vld [vmem:[#allocation3 + $0x118] sm:$0xff]
    %v81 = vld [vmem:[#allocation3 + $0x120] sm:$0xff]
    %v82 = vld [vmem:[#allocation3 + $0x128] sm:$0xff]
    %v83 = vld [vmem:[#allocation3 + $0x130] sm:$0xff]
    %v84 = vld [vmem:[#allocation3 + $0x138] sm:$0xff]
    %v85 = vld [vmem:[#allocation3 + $0x140] sm:$0xff]
    %v86 = vld [vmem:[#allocation3 + $0x148] sm:$0xff]
    %v87 = vld [vmem:[#allocation3 + $0x150] sm:$0xff]
    %v88 = vld [vmem:[#allocation3 + $0x158] sm:$0xff]
    %v89 = vld [vmem:[#allocation3 + $0x160] sm:$0xff]
    %v90 = vld [vmem:[#allocation3 + $0x168] sm:$0xff]
    %v91 = vld [vmem:[#allocation3 + $0x170] sm:$0xff]
    %v92 = vld [vmem:[#allocation3 + $0x178] sm:$0xff]
    %v93 = vld [vmem:[#allocation3 + $0x180] sm:$0xff]
    %v94 = vld [vmem:[#allocation3 + $0x188] sm:$0xff]
    %v95 = vld [vmem:[#allocation3 + $0x190] sm:$0xff]
    %v96 = vld [vmem:[#allocation3 + $0x198] sm:$0xff]
    %v97 = vld [vmem:[#allocation3 + $0x1a0] sm:$0xff]
    %v98 = vld [vmem:[#allocation3 + $0x1a8] sm:$0xff]
    %v99 = vld [vmem:[#allocation3 + $0x1b0] sm:$0xff]
    %v100 = vld [vmem:[#allocation3 + $0x1b8] sm:$0xff]
    %v101 = vld [vmem:[#allocation3 + $0x1c0] sm:$0xff]
    %v102 = vld [vmem:[#allocation3 + $0x1c8] sm:$0xff]
    %v103 = vld [vmem:[#allocation3 + $0x1d0] sm:$0xff]
    %v104 = vld [vmem:[#allocation3 + $0x1d8] sm:$0xff]
    %v105 = vld [vmem:[#allocation3 + $0x1e0] sm:$0xff]
    %v106 = vld [vmem:[#allocation3 + $0x1e8] sm:$0xff]
    %v107 = vld [vmem:[#allocation3 + $0x1f0] sm:$0xff]
    %v108 = vld [vmem:[#allocation3 + $0x1f8] sm:$0xff]
    %v109 = vld [vmem:[#allocation3 + $0x200] sm:$0xff]
    %v110 = vld [vmem:[#allocation3 + $0x208] sm:$0xff]
    %v111 = vld [vmem:[#allocation3 + $0x210] sm:$0xff]
    %v112 = vld [vmem:[#allocation3 + $0x218] sm:$0xff]
    %v113 = vld [vmem:[#allocation3 + $0x220] sm:$0xff]
    %v114 = vld [vmem:[#allocation3 + $0x228] sm:$0xff]
    %v115 = vld [vmem:[#allocation3 + $0x230] sm:$0xff]
    %v116 = vld [vmem:[#allocation3 + $0x238] sm:$0xff]
    %v117 = vld [vmem:[#allocation3 + $0x240] sm:$0xff]
    %v118 = vld [vmem:[#allocation3 + $0x248] sm:$0xff]
    %v119 = vld [vmem:[#allocation3 + $0x250] sm:$0xff]
    %v120 = vld [vmem:[#allocation3 + $0x258] sm:$0xff]
    %v121 = vld [vmem:[#allocation3 + $0x260] sm:$0xff]
    %v122 = vld [vmem:[#allocation3 + $0x268] sm:$0xff]
    %v123 = vld [vmem:[#allocation3 + $0x270] sm:$0xff]
    %v124 = vld [vmem:[#allocation3 + $0x278] sm:$0xff]
    %v125 = vld [vmem:[#allocation3 + $0x280] sm:$0xff]
    %v126 = vld [vmem:[#allocation3 + $0x288] sm:$0xff]
    %v127 = vld [vmem:[#allocation3 + $0x290] sm:$0xff]
    %v128 = vld [vmem:[#allocation3 + $0x298] sm:$0xff]
    %v129 = vld [vmem:[#allocation3 + $0x2a0] sm:$0xff]
    %v130 = vld [vmem:[#allocation3 + $0x2a8] sm:$0xff]
    %v131 = vld [vmem:[#allocation3 + $0x2b0] sm:$0xff]
    %v132 = vld [vmem:[#allocation3 + $0x2b8] sm:$0xff]
    %v133 = vld [vmem:[#allocation3 + $0x2c0] sm:$0xff]
    %v134 = vld [vmem:[#allocation3 + $0x2c8] sm:$0xff]
    %v135 = vld [vmem:[#allocation3 + $0x2d0] sm:$0xff]
    %v136 = vld [vmem:[#allocation3 + $0x2d8] sm:$0xff]
    %v137 = vld [vmem:[#allocation3 + $0x2e0] sm:$0xff]
    %v138 = vld [vmem:[#allocation3 + $0x2e8] sm:$0xff]
    %v139 = vld [vmem:[#allocation3 + $0x2f0] sm:$0xff]
    %v140 = vld [vmem:[#allocation3 + $0x2f8] sm:$0xff]
    %v141 = vld [vmem:[#allocation3 + $0x300] sm:$0xff]
    %v142 = vld [vmem:[#allocation3 + $0x308] sm:$0xff]
    %v143 = vld [vmem:[#allocation3 + $0x310] sm:$0xff]
    %v144 = vld [vmem:[#allocation3 + $0x318] sm:$0xff]
    %v145 = vld [vmem:[#allocation3 + $0x320] sm:$0xff]
    %v146 = vld [vmem:[#allocation3 + $0x328] sm:$0xff]
    %v147 = vld [vmem:[#allocation3 + $0x330] sm:$0xff]
    %v148 = vld [vmem:[#allocation3 + $0x338] sm:$0xff]
    %v149 = vld [vmem:[#allocation3 + $0x340] sm:$0xff]
    %v150 = vld [vmem:[#allocation3 + $0x348] sm:$0xff]
    %v151 = vld [vmem:[#allocation3 + $0x350] sm:$0xff]
    %v152 = vld [vmem:[#allocation3 + $0x358] sm:$0xff]
    %v153 = vld [vmem:[#allocation3 + $0x360] sm:$0xff]
    %v154 = vld [vmem:[#allocation3 + $0x368] sm:$0xff]
    %v155 = vld [vmem:[#allocation3 + $0x370] sm:$0xff]
    %v156 = vld [vmem:[#allocation3 + $0x378] sm:$0xff]
    %v157 = vld [vmem:[#allocation3 + $0x380] sm:$0xff]
    %v158 = vld [vmem:[#allocation3 + $0x388] sm:$0xff]
    %v159 = vld [vmem:[#allocation3 + $0x390] sm:$0xff]
    %v160 = vld [vmem:[#allocation3 + $0x398] sm:$0xff]
    %v161 = vld [vmem:[#allocation3 + $0x3a0] sm:$0xff]
    %v162 = vld [vmem:[#allocation3 + $0x3a8] sm:$0xff]
    %v163 = vld [vmem:[#allocation3 + $0x3b0] sm:$0xff]
    %v164 = vld [vmem:[#allocation3 + $0x3b8] sm:$0xff]
    %v165 = vld [vmem:[#allocation3 + $0x3c0] sm:$0xff]
    %v166 = vld [vmem:[#allocation3 + $0x3c8] sm:$0xff]
    %v167 = vld [vmem:[#allocation3 + $0x3d0] sm:$0xff]
    %v168 = vld [vmem:[#allocation3 + $0x3d8] sm:$0xff]
    %v169 = vld [vmem:[#allocation3 + $0x3e0] sm:$0xff]
    %v170 = vld [vmem:[#allocation3 + $0x3e8] sm:$0xff]
    %v171 = vld [vmem:[#allocation3 + $0x3f0] sm:$0xff]
    %v172 = vld [vmem:[#allocation3 + $0x3f8] sm:$0xff]
    %v173 = vld [vmem:[#allocation3 + $0x400] sm:$0xff]
    %v174 = vld [vmem:[#allocation3 + $0x408] sm:$0xff]
    %v175 = vld [vmem:[#allocation3 + $0x410] sm:$0xff]
    %v176 = vld [vmem:[#allocation3 + $0x418] sm:$0xff]
    %v177 = vld [vmem:[#allocation3 + $0x420] sm:$0xff]
    %v178 = vld [vmem:[#allocation3 + $0x428] sm:$0xff]
    %v179 = vld [vmem:[#allocation3 + $0x430] sm:$0xff]
    %v180 = vld [vmem:[#allocation3 + $0x438] sm:$0xff]
    %v181 = vld [vmem:[#allocation3 + $0x440] sm:$0xff]
    %v182 = vld [vmem:[#allocation3 + $0x448] sm:$0xff]
    %v183 = vld [vmem:[#allocation3 + $0x450] sm:$0xff]
    %v184 = vld [vmem:[#allocation3 + $0x458] sm:$0xff]
    %v185 = vld [vmem:[#allocation3 + $0x460] sm:$0xff]
    %v186 = vld [vmem:[#allocation3 + $0x468] sm:$0xff]
    %v187 = vld [vmem:[#allocation3 + $0x470] sm:$0xff]
    %v188 = vld [vmem:[#allocation3 + $0x478] sm:$0xff]
    %v189 = vld [vmem:[#allocation3 + $0x480] sm:$0xff]
    %v190 = vld [vmem:[#allocation3 + $0x488] sm:$0xff]
    %v191 = vld [vmem:[#allocation3 + $0x490] sm:$0xff]
    %v192 = vld [vmem:[#allocation3 + $0x498] sm:$0xff]
    %v193 = vld [vmem:[#allocation3 + $0x4a0] sm:$0xff]
    %v194 = vld [vmem:[#allocation3 + $0x4a8] sm:$0xff]
    %v195 = vld [vmem:[#allocation3 + $0x4b0] sm:$0xff]
    %v196 = vld [vmem:[#allocation3 + $0x4b8] sm:$0xff]
    %v197 = vld [vmem:[#allocation3 + $0x4c0] sm:$0xff]
    %v198 = vld [vmem:[#allocation3 + $0x4c8] sm:$0xff]
    %v199 = vld [vmem:[#allocation3 + $0x4d0] sm:$0xff]
    %v200 = vld [vmem:[#allocation3 + $0x4d8] sm:$0xff]
    %v201 = vld [vmem:[#allocation3 + $0x4e0] sm:$0xff]
    %v202 = vld [vmem:[#allocation3 + $0x4e8] sm:$0xff]
    %v203 = vld [vmem:[#allocation3 + $0x4f0] sm:$0xff]
    %v204 = vld [vmem:[#allocation3 + $0x4f8] sm:$0xff]
    %v205 = vld [vmem:[#allocation3 + $0x500] sm:$0xff]
    %v206 = vld [vmem:[#allocation3 + $0x508] sm:$0xff]
    %v207 = vld [vmem:[#allocation3 + $0x510] sm:$0xff]
    %v208 = vld [vmem:[#allocation3 + $0x518] sm:$0xff]
    %v209 = vld [vmem:[#allocation3 + $0x520] sm:$0xff]
    %v210 = vld [vmem:[#allocation3 + $0x528] sm:$0xff]
    %v211 = vld [vmem:[#allocation3 + $0x530] sm:$0xff]
    %v212 = vld [vmem:[#allocation3 + $0x538] sm:$0xff]
    %v213 = vld [vmem:[#allocation3 + $0x540] sm:$0xff]
    %v214 = vld [vmem:[#allocation3 + $0x548] sm:$0xff]
    %v215 = vld [vmem:[#allocation3 + $0x550] sm:$0xff]
    %v216 = vld [vmem:[#allocation3 + $0x558] sm:$0xff]
    %v217 = vld [vmem:[#allocation3 + $0x560] sm:$0xff]
    %v218 = vld [vmem:[#allocation3 + $0x568] sm:$0xff]
    %v219 = vld [vmem:[#allocation3 + $0x570] sm:$0xff]
    %v220 = vld [vmem:[#allocation3 + $0x578] sm:$0xff]
    %v221 = vld [vmem:[#allocation3 + $0x580] sm:$0xff]
    %v222 = vld [vmem:[#allocation3 + $0x588] sm:$0xff]
    %v223 = vld [vmem:[#allocation3 + $0x590] sm:$0xff]
    %v224 = vld [vmem:[#allocation3 + $0x598] sm:$0xff]
    %v225 = vld [vmem:[#allocation3 + $0x5a0] sm:$0xff]
    %v226 = vld [vmem:[#allocation3 + $0x5a8] sm:$0xff]
    %v227 = vld [vmem:[#allocation3 + $0x5b0] sm:$0xff]
    %v228 = vld [vmem:[#allocation3 + $0x5b8] sm:$0xff]
    %v229 = vld [vmem:[#allocation3 + $0x5c0] sm:$0xff]
    %v230 = vld [vmem:[#allocation3 + $0x5c8] sm:$0xff]
    %v231 = vld [vmem:[#allocation3 + $0x5d0] sm:$0xff]
    %v232 = vld [vmem:[#allocation3 + $0x5d8] sm:$0xff]
    %v233 = vld [vmem:[#allocation3 + $0x5e0] sm:$0xff]
    %v234 = vld [vmem:[#allocation3 + $0x5e8] sm:$0xff]
    %v235 = vld [vmem:[#allocation3 + $0x5f0] sm:$0xff]
    %v236 = vld [vmem:[#allocation3 + $0x5f8] sm:$0xff]
    %v237 = vld [vmem:[#allocation3 + $0x600] sm:$0xff]
    %v238 = vld [vmem:[#allocation3 + $0x608] sm:$0xff]
    %v239 = vld [vmem:[#allocation3 + $0x610] sm:$0xff]
    %v240 = vld [vmem:[#allocation3 + $0x618] sm:$0xff]
    %v241 = vld [vmem:[#allocation3 + $0x620] sm:$0xff]
    %v242 = vld [vmem:[#allocation3 + $0x628] sm:$0xff]
    %v243 = vld [vmem:[#allocation3 + $0x630] sm:$0xff]
    %v244 = vld [vmem:[#allocation3 + $0x638] sm:$0xff]
    %v245 = vld [vmem:[#allocation3 + $0x640] sm:$0xff]
    %v246 = vld [vmem:[#allocation3 + $0x648] sm:$0xff]
    %v247 = vld [vmem:[#allocation3 + $0x650] sm:$0xff]
    %v248 = vld [vmem:[#allocation3 + $0x658] sm:$0xff]
    %v249 = vld [vmem:[#allocation3 + $0x660] sm:$0xff]
    %v250 = vld [vmem:[#allocation3 + $0x668] sm:$0xff]
    %v251 = vld [vmem:[#allocation3 + $0x670] sm:$0xff]
    %v252 = vld [vmem:[#allocation3 + $0x678] sm:$0xff]
    %v253 = vld [vmem:[#allocation3 + $0x680] sm:$0xff]
    %v254 = vld [vmem:[#allocation3 + $0x688] sm:$0xff]
    %v255 = vld [vmem:[#allocation3 + $0x690] sm:$0xff]
    %v256 = vld [vmem:[#allocation3 + $0x698] sm:$0xff]
    %v257 = vld [vmem:[#allocation3 + $0x6a0] sm:$0xff]
    %v258 = vld [vmem:[#allocation3 + $0x6a8] sm:$0xff]
    %v259 = vld [vmem:[#allocation3 + $0x6b0] sm:$0xff]
    %v260 = vld [vmem:[#allocation3 + $0x6b8] sm:$0xff]
    %v261 = vld [vmem:[#allocation3 + $0x6c0] sm:$0xff]
    %v262 = vld [vmem:[#allocation3 + $0x6c8] sm:$0xff]
    %v263 = vld [vmem:[#allocation3 + $0x6d0] sm:$0xff]
    %v264 = vld [vmem:[#allocation3 + $0x6d8] sm:$0xff]
    %v265 = vld [vmem:[#allocation3 + $0x6e0] sm:$0xff]
    %v266 = vld [vmem:[#allocation3 + $0x6e8] sm:$0xff]
    %v267 = vld [vmem:[#allocation3 + $0x6f0] sm:$0xff]
    %v268 = vld [vmem:[#allocation3 + $0x6f8] sm:$0xff]
    %v269 = vld [vmem:[#allocation3 + $0x700] sm:$0xff]
    %v270 = vld [vmem:[#allocation3 + $0x708] sm:$0xff]
    %v271 = vld [vmem:[#allocation3 + $0x710] sm:$0xff]
    %v272 = vld [vmem:[#allocation3 + $0x718] sm:$0xff]
    %v273 = vld [vmem:[#allocation3 + $0x720] sm:$0xff]
    %v274 = vld [vmem:[#allocation3 + $0x728] sm:$0xff]
    %v275 = vld [vmem:[#allocation3 + $0x730] sm:$0xff]
    %v276 = vld [vmem:[#allocation3 + $0x738] sm:$0xff]
    %v277 = vld [vmem:[#allocation3 + $0x740] sm:$0xff]
    %v278 = vld [vmem:[#allocation3 + $0x748] sm:$0xff]
    %v279 = vld [vmem:[#allocation3 + $0x750] sm:$0xff]
    %v280 = vld [vmem:[#allocation3 + $0x758] sm:$0xff]
    %v281 = vld [vmem:[#allocation3 + $0x760] sm:$0xff]
    %v282 = vld [vmem:[#allocation3 + $0x768] sm:$0xff]
    %v283 = vld [vmem:[#allocation3 + $0x770] sm:$0xff]
    %v284 = vld [vmem:[#allocation3 + $0x778] sm:$0xff]
    %v285 = vld [vmem:[#allocation3 + $0x780] sm:$0xff]
    %v286 = vld [vmem:[#allocation3 + $0x788] sm:$0xff]
    %v287 = vld [vmem:[#allocation3 + $0x790] sm:$0xff]
    %v288 = vld [vmem:[#allocation3 + $0x798] sm:$0xff]
    %v289 = vld [vmem:[#allocation3 + $0x7a0] sm:$0xff]
    %v290 = vld [vmem:[#allocation3 + $0x7a8] sm:$0xff]
    %v291 = vld [vmem:[#allocation3 + $0x7b0] sm:$0xff]
    %v292 = vld [vmem:[#allocation3 + $0x7b8] sm:$0xff]
    %v293 = vld [vmem:[#allocation3 + $0x7c0] sm:$0xff]
    %v294 = vld [vmem:[#allocation3 + $0x7c8] sm:$0xff]
    %v295 = vld [vmem:[#allocation3 + $0x7d0] sm:$0xff]
    %v296 = vld [vmem:[#allocation3 + $0x7d8] sm:$0xff]
    %v297 = vld [vmem:[#allocation3 + $0x7e0] sm:$0xff]
    %v298 = vld [vmem:[#allocation3 + $0x7e8] sm:$0xff]
    %v299 = vld [vmem:[#allocation3 + $0x7f0] sm:$0xff]
    %v300 = vld [vmem:[#allocation3 + $0x7f8] sm:$0xff]
    %v305 = vunpack.c.l.b16 %v41
    %v306 = vunpack.c.h.b16 %v41
    %v307 = vunpack.c.l.b16 %v42
    %v308 = vunpack.c.h.b16 %v42
    %v309 = vunpack.c.l.b16 %v43
    %v310 = vunpack.c.h.b16 %v43
    %v311 = vunpack.c.l.b16 %v44
    %v312 = vunpack.c.h.b16 %v44
    %v313 = vpack.c.b16 %v305, %v305
    %v314 = vpack.c.b16 %v306, %v306
    %v315 = vpack.c.b16 %v307, %v307
    %v316 = vpack.c.b16 %v308, %v308
    %v317 = vpack.c.b16 %v309, %v309
    %v318 = vpack.c.b16 %v310, %v310
    %v319 = vpack.c.b16 %v311, %v311
    %v320 = vpack.c.b16 %v312, %v312
    %v585 = vunpack.c.l.b16 %v45
    %v586 = vunpack.c.h.b16 %v45
    %v587 = vunpack.c.l.b16 %v46
    %v588 = vunpack.c.h.b16 %v46
    %v589 = vunpack.c.l.b16 %v47
    %v590 = vunpack.c.h.b16 %v47
    %v591 = vunpack.c.l.b16 %v48
    %v592 = vunpack.c.h.b16 %v48
    %v593 = vunpack.c.l.b16 %v49
    %v594 = vunpack.c.h.b16 %v49
    %v595 = vunpack.c.l.b16 %v50
    %v596 = vunpack.c.h.b16 %v50
    %v597 = vunpack.c.l.b16 %v51
    %v598 = vunpack.c.h.b16 %v51
    %v599 = vunpack.c.l.b16 %v52
    %v600 = vunpack.c.h.b16 %v52
    %v601 = vunpack.c.l.b16 %v53
    %v602 = vunpack.c.h.b16 %v53
    %v603 = vunpack.c.l.b16 %v54
    %v604 = vunpack.c.h.b16 %v54
    %v605 = vunpack.c.l.b16 %v55
    %v606 = vunpack.c.h.b16 %v55
    %v607 = vunpack.c.l.b16 %v56
    %v608 = vunpack.c.h.b16 %v56
    %v609 = vunpack.c.l.b16 %v57
    %v610 = vunpack.c.h.b16 %v57
    %v611 = vunpack.c.l.b16 %v58
    %v612 = vunpack.c.h.b16 %v58
    %v613 = vunpack.c.l.b16 %v59
    %v614 = vunpack.c.h.b16 %v59
    %v615 = vunpack.c.l.b16 %v60
    %v616 = vunpack.c.h.b16 %v60
    %v617 = vunpack.c.l.b16 %v61
    %v618 = vunpack.c.h.b16 %v61
    %v619 = vunpack.c.l.b16 %v62
    %v620 = vunpack.c.h.b16 %v62
    %v621 = vunpack.c.l.b16 %v63
    %v622 = vunpack.c.h.b16 %v63
    %v623 = vunpack.c.l.b16 %v64
    %v624 = vunpack.c.h.b16 %v64
    %v625 = vunpack.c.l.b16 %v65
    %v626 = vunpack.c.h.b16 %v65
    %v627 = vunpack.c.l.b16 %v66
    %v628 = vunpack.c.h.b16 %v66
    %v629 = vunpack.c.l.b16 %v67
    %v630 = vunpack.c.h.b16 %v67
    %v631 = vunpack.c.l.b16 %v68
    %v632 = vunpack.c.h.b16 %v68
    %v633 = vunpack.c.l.b16 %v69
    %v634 = vunpack.c.h.b16 %v69
    %v635 = vunpack.c.l.b16 %v70
    %v636 = vunpack.c.h.b16 %v70
    %v637 = vunpack.c.l.b16 %v71
    %v638 = vunpack.c.h.b16 %v71
    %v639 = vunpack.c.l.b16 %v72
    %v640 = vunpack.c.h.b16 %v72
    %v641 = vunpack.c.l.b16 %v73
    %v642 = vunpack.c.h.b16 %v73
    %v643 = vunpack.c.l.b16 %v74
    %v644 = vunpack.c.h.b16 %v74
    %v645 = vunpack.c.l.b16 %v75
    %v646 = vunpack.c.h.b16 %v75
    %v647 = vunpack.c.l.b16 %v76
    %v648 = vunpack.c.h.b16 %v76
    %v649 = vunpack.c.l.b16 %v77
    %v650 = vunpack.c.h.b16 %v77
    %v651 = vunpack.c.l.b16 %v78
    %v652 = vunpack.c.h.b16 %v78
    %v653 = vunpack.c.l.b16 %v79
    %v654 = vunpack.c.h.b16 %v79
    %v655 = vunpack.c.l.b16 %v80
    %v656 = vunpack.c.h.b16 %v80
    %v657 = vunpack.c.l.b16 %v81
    %v658 = vunpack.c.h.b16 %v81
    %v659 = vunpack.c.l.b16 %v82
    %v660 = vunpack.c.h.b16 %v82
    %v661 = vunpack.c.l.b16 %v83
    %v662 = vunpack.c.h.b16 %v83
    %v663 = vunpack.c.l.b16 %v84
    %v664 = vunpack.c.h.b16 %v84
    %v665 = vunpack.c.l.b16 %v85
    %v666 = vunpack.c.h.b16 %v85
    %v667 = vunpack.c.l.b16 %v86
    %v668 = vunpack.c.h.b16 %v86
    %v669 = vunpack.c.l.b16 %v87
    %v670 = vunpack.c.h.b16 %v87
    %v671 = vunpack.c.l.b16 %v88
    %v672 = vunpack.c.h.b16 %v88
    %v673 = vunpack.c.l.b16 %v89
    %v674 = vunpack.c.h.b16 %v89
    %v675 = vunpack.c.l.b16 %v90
    %v676 = vunpack.c.h.b16 %v90
    %v677 = vunpack.c.l.b16 %v91
    %v678 = vunpack.c.h.b16 %v91
    %v679 = vunpack.c.l.b16 %v92
    %v680 = vunpack.c.h.b16 %v92
    %v681 = vunpack.c.l.b16 %v93
    %v682 = vunpack.c.h.b16 %v93
    %v683 = vunpack.c.l.b16 %v94
    %v684 = vunpack.c.h.b16 %v94
    %v685 = vunpack.c.l.b16 %v95
    %v686 = vunpack.c.h.b16 %v95
    %v687 = vunpack.c.l.b16 %v96
    %v688 = vunpack.c.h.b16 %v96
    %v689 = vunpack.c.l.b16 %v97
    %v690 = vunpack.c.h.b16 %v97
    %v691 = vunpack.c.l.b16 %v98
    %v692 = vunpack.c.h.b16 %v98
    %v693 = vunpack.c.l.b16 %v99
    %v694 = vunpack.c.h.b16 %v99
    %v695 = vunpack.c.l.b16 %v100
    %v696 = vunpack.c.h.b16 %v100
    %v697 = vunpack.c.l.b16 %v101
    %v698 = vunpack.c.h.b16 %v101
    %v699 = vunpack.c.l.b16 %v102
    %v700 = vunpack.c.h.b16 %v102
    %v701 = vunpack.c.l.b16 %v103
    %v702 = vunpack.c.h.b16 %v103
    %v703 = vunpack.c.l.b16 %v104
    %v704 = vunpack.c.h.b16 %v104
    %v705 = vunpack.c.l.b16 %v105
    %v706 = vunpack.c.h.b16 %v105
    %v707 = vunpack.c.l.b16 %v106
    %v708 = vunpack.c.h.b16 %v106
    %v709 = vunpack.c.l.b16 %v107
    %v710 = vunpack.c.h.b16 %v107
    %v711 = vunpack.c.l.b16 %v108
    %v712 = vunpack.c.h.b16 %v108
    %v713 = vunpack.c.l.b16 %v109
    %v714 = vunpack.c.h.b16 %v109
    %v715 = vunpack.c.l.b16 %v110
    %v716 = vunpack.c.h.b16 %v110
    %v717 = vunpack.c.l.b16 %v111
    %v718 = vunpack.c.h.b16 %v111
    %v719 = vunpack.c.l.b16 %v112
    %v720 = vunpack.c.h.b16 %v112
    %v721 = vunpack.c.l.b16 %v113
    %v722 = vunpack.c.h.b16 %v113
    %v723 = vunpack.c.l.b16 %v114
    %v724 = vunpack.c.h.b16 %v114
    %v725 = vunpack.c.l.b16 %v115
    %v726 = vunpack.c.h.b16 %v115
    %v727 = vunpack.c.l.b16 %v116
    %v728 = vunpack.c.h.b16 %v116
    %v729 = vunpack.c.l.b16 %v117
    %v730 = vunpack.c.h.b16 %v117
    %v731 = vunpack.c.l.b16 %v118
    %v732 = vunpack.c.h.b16 %v118
    %v733 = vunpack.c.l.b16 %v119
    %v734 = vunpack.c.h.b16 %v119
    %v735 = vunpack.c.l.b16 %v120
    %v736 = vunpack.c.h.b16 %v120
    %v737 = vunpack.c.l.b16 %v121
    %v738 = vunpack.c.h.b16 %v121
    %v739 = vunpack.c.l.b16 %v122
    %v740 = vunpack.c.h.b16 %v122
    %v741 = vunpack.c.l.b16 %v123
    %v742 = vunpack.c.h.b16 %v123
    %v743 = vunpack.c.l.b16 %v124
    %v744 = vunpack.c.h.b16 %v124
    %v745 = vunpack.c.l.b16 %v125
    %v746 = vunpack.c.h.b16 %v125
    %v747 = vunpack.c.l.b16 %v126
    %v748 = vunpack.c.h.b16 %v126
    %v749 = vunpack.c.l.b16 %v127
    %v750 = vunpack.c.h.b16 %v127
    %v751 = vunpack.c.l.b16 %v128
    %v752 = vunpack.c.h.b16 %v128
    %v753 = vunpack.c.l.b16 %v129
    %v754 = vunpack.c.h.b16 %v129
    %v755 = vunpack.c.l.b16 %v130
    %v756 = vunpack.c.h.b16 %v130
    %v757 = vunpack.c.l.b16 %v131
    %v758 = vunpack.c.h.b16 %v131
    %v759 = vunpack.c.l.b16 %v132
    %v760 = vunpack.c.h.b16 %v132
    %v761 = vunpack.c.l.b16 %v133
    %v762 = vunpack.c.h.b16 %v133
    %v763 = vunpack.c.l.b16 %v134
    %v764 = vunpack.c.h.b16 %v134
    %v765 = vunpack.c.l.b16 %v135
    %v766 = vunpack.c.h.b16 %v135
    %v767 = vunpack.c.l.b16 %v136
    %v768 = vunpack.c.h.b16 %v136
    %v769 = vunpack.c.l.b16 %v137
    %v770 = vunpack.c.h.b16 %v137
    %v771 = vunpack.c.l.b16 %v138
    %v772 = vunpack.c.h.b16 %v138
    %v773 = vunpack.c.l.b16 %v139
    %v774 = vunpack.c.h.b16 %v139
    %v775 = vunpack.c.l.b16 %v140
    %v776 = vunpack.c.h.b16 %v140
    %v777 = vunpack.c.l.b16 %v141
    %v778 = vunpack.c.h.b16 %v141
    %v779 = vunpack.c.l.b16 %v142
    %v780 = vunpack.c.h.b16 %v142
    %v781 = vunpack.c.l.b16 %v143
    %v782 = vunpack.c.h.b16 %v143
    %v783 = vunpack.c.l.b16 %v144
    %v784 = vunpack.c.h.b16 %v144
    %v785 = vunpack.c.l.b16 %v145
    %v786 = vunpack.c.h.b16 %v145
    %v787 = vunpack.c.l.b16 %v146
    %v788 = vunpack.c.h.b16 %v146
    %v789 = vunpack.c.l.b16 %v147
    %v790 = vunpack.c.h.b16 %v147
    %v791 = vunpack.c.l.b16 %v148
    %v792 = vunpack.c.h.b16 %v148
    %v793 = vunpack.c.l.b16 %v149
    %v794 = vunpack.c.h.b16 %v149
    %v795 = vunpack.c.l.b16 %v150
    %v796 = vunpack.c.h.b16 %v150
    %v797 = vunpack.c.l.b16 %v151
    %v798 = vunpack.c.h.b16 %v151
    %v799 = vunpack.c.l.b16 %v152
    %v800 = vunpack.c.h.b16 %v152
    %v801 = vunpack.c.l.b16 %v153
    %v802 = vunpack.c.h.b16 %v153
    %v803 = vunpack.c.l.b16 %v154
    %v804 = vunpack.c.h.b16 %v154
    %v805 = vunpack.c.l.b16 %v155
    %v806 = vunpack.c.h.b16 %v155
    %v807 = vunpack.c.l.b16 %v156
    %v808 = vunpack.c.h.b16 %v156
    %v809 = vunpack.c.l.b16 %v157
    %v810 = vunpack.c.h.b16 %v157
    %v811 = vunpack.c.l.b16 %v158
    %v812 = vunpack.c.h.b16 %v158
    %v813 = vunpack.c.l.b16 %v159
    %v814 = vunpack.c.h.b16 %v159
    %v815 = vunpack.c.l.b16 %v160
    %v816 = vunpack.c.h.b16 %v160
    %v817 = vunpack.c.l.b16 %v161
    %v818 = vunpack.c.h.b16 %v161
    %v819 = vunpack.c.l.b16 %v162
    %v820 = vunpack.c.h.b16 %v162
    %v821 = vunpack.c.l.b16 %v163
    %v822 = vunpack.c.h.b16 %v163
    %v823 = vunpack.c.l.b16 %v164
    %v824 = vunpack.c.h.b16 %v164
    %v825 = vunpack.c.l.b16 %v165
    %v826 = vunpack.c.h.b16 %v165
    %v827 = vunpack.c.l.b16 %v166
    %v828 = vunpack.c.h.b16 %v166
    %v829 = vunpack.c.l.b16 %v167
    %v830 = vunpack.c.h.b16 %v167
    %v831 = vunpack.c.l.b16 %v168
    %v832 = vunpack.c.h.b16 %v168
    %v833 = vunpack.c.l.b16 %v169
    %v834 = vunpack.c.h.b16 %v169
    %v835 = vunpack.c.l.b16 %v170
    %v836 = vunpack.c.h.b16 %v170
    %v837 = vunpack.c.l.b16 %v171
    %v838 = vunpack.c.h.b16 %v171
    %v839 = vunpack.c.l.b16 %v172
    %v840 = vunpack.c.h.b16 %v172
    %v841 = vunpack.c.l.b16 %v173
    %v842 = vunpack.c.h.b16 %v173
    %v843 = vunpack.c.l.b16 %v174
    %v844 = vunpack.c.h.b16 %v174
    %v845 = vunpack.c.l.b16 %v175
    %v846 = vunpack.c.h.b16 %v175
    %v847 = vunpack.c.l.b16 %v176
    %v848 = vunpack.c.h.b16 %v176
    %v849 = vunpack.c.l.b16 %v177
    %v850 = vunpack.c.h.b16 %v177
    %v851 = vunpack.c.l.b16 %v178
    %v852 = vunpack.c.h.b16 %v178
    %v853 = vunpack.c.l.b16 %v179
    %v854 = vunpack.c.h.b16 %v179
    %v855 = vunpack.c.l.b16 %v180
    %v856 = vunpack.c.h.b16 %v180
    %v857 = vunpack.c.l.b16 %v181
    %v858 = vunpack.c.h.b16 %v181
    %v859 = vunpack.c.l.b16 %v182
    %v860 = vunpack.c.h.b16 %v182
    %v861 = vunpack.c.l.b16 %v183
    %v862 = vunpack.c.h.b16 %v183
    %v863 = vunpack.c.l.b16 %v184
    %v864 = vunpack.c.h.b16 %v184
    %v865 = vunpack.c.l.b16 %v185
    %v866 = vunpack.c.h.b16 %v185
    %v867 = vunpack.c.l.b16 %v186
    %v868 = vunpack.c.h.b16 %v186
    %v869 = vunpack.c.l.b16 %v187
    %v870 = vunpack.c.h.b16 %v187
    %v871 = vunpack.c.l.b16 %v188
    %v872 = vunpack.c.h.b16 %v188
    %v873 = vunpack.c.l.b16 %v189
    %v874 = vunpack.c.h.b16 %v189
    %v875 = vunpack.c.l.b16 %v190
    %v876 = vunpack.c.h.b16 %v190
    %v877 = vunpack.c.l.b16 %v191
    %v878 = vunpack.c.h.b16 %v191
    %v879 = vunpack.c.l.b16 %v192
    %v880 = vunpack.c.h.b16 %v192
    %v881 = vunpack.c.l.b16 %v193
    %v882 = vunpack.c.h.b16 %v193
    %v883 = vunpack.c.l.b16 %v194
    %v884 = vunpack.c.h.b16 %v194
    %v885 = vunpack.c.l.b16 %v195
    %v886 = vunpack.c.h.b16 %v195
    %v887 = vunpack.c.l.b16 %v196
    %v888 = vunpack.c.h.b16 %v196
    %v889 = vunpack.c.l.b16 %v197
    %v890 = vunpack.c.h.b16 %v197
    %v891 = vunpack.c.l.b16 %v198
    %v892 = vunpack.c.h.b16 %v198
    %v893 = vunpack.c.l.b16 %v199
    %v894 = vunpack.c.h.b16 %v199
    %v895 = vunpack.c.l.b16 %v200
    %v896 = vunpack.c.h.b16 %v200
    %v897 = vunpack.c.l.b16 %v201
    %v898 = vunpack.c.h.b16 %v201
    %v899 = vunpack.c.l.b16 %v202
    %v900 = vunpack.c.h.b16 %v202
    %v901 = vunpack.c.l.b16 %v203
    %v902 = vunpack.c.h.b16 %v203
    %v903 = vunpack.c.l.b16 %v204
    %v904 = vunpack.c.h.b16 %v204
    %v905 = vunpack.c.l.b16 %v205
    %v906 = vunpack.c.h.b16 %v205
    %v907 = vunpack.c.l.b16 %v206
    %v908 = vunpack.c.h.b16 %v206
    %v909 = vunpack.c.l.b16 %v207
    %v910 = vunpack.c.h.b16 %v207
    %v911 = vunpack.c.l.b16 %v208
    %v912 = vunpack.c.h.b16 %v208
    %v913 = vunpack.c.l.b16 %v209
    %v914 = vunpack.c.h.b16 %v209
    %v915 = vunpack.c.l.b16 %v210
    %v916 = vunpack.c.h.b16 %v210
    %v917 = vunpack.c.l.b16 %v211
    %v918 = vunpack.c.h.b16 %v211
    %v919 = vunpack.c.l.b16 %v212
    %v920 = vunpack.c.h.b16 %v212
    %v921 = vunpack.c.l.b16 %v213
    %v922 = vunpack.c.h.b16 %v213
    %v923 = vunpack.c.l.b16 %v214
    %v924 = vunpack.c.h.b16 %v214
    %v925 = vunpack.c.l.b16 %v215
    %v926 = vunpack.c.h.b16 %v215
    %v927 = vunpack.c.l.b16 %v216
    %v928 = vunpack.c.h.b16 %v216
    %v929 = vunpack.c.l.b16 %v217
    %v930 = vunpack.c.h.b16 %v217
    %v931 = vunpack.c.l.b16 %v218
    %v932 = vunpack.c.h.b16 %v218
    %v933 = vunpack.c.l.b16 %v219
    %v934 = vunpack.c.h.b16 %v219
    %v935 = vunpack.c.l.b16 %v220
    %v936 = vunpack.c.h.b16 %v220
    %v937 = vunpack.c.l.b16 %v221
    %v938 = vunpack.c.h.b16 %v221
    %v939 = vunpack.c.l.b16 %v222
    %v940 = vunpack.c.h.b16 %v222
    %v941 = vunpack.c.l.b16 %v223
    %v942 = vunpack.c.h.b16 %v223
    %v943 = vunpack.c.l.b16 %v224
    %v944 = vunpack.c.h.b16 %v224
    %v945 = vunpack.c.l.b16 %v225
    %v946 = vunpack.c.h.b16 %v225
    %v947 = vunpack.c.l.b16 %v226
    %v948 = vunpack.c.h.b16 %v226
    %v949 = vunpack.c.l.b16 %v227
    %v950 = vunpack.c.h.b16 %v227
    %v951 = vunpack.c.l.b16 %v228
    %v952 = vunpack.c.h.b16 %v228
    %v953 = vunpack.c.l.b16 %v229
    %v954 = vunpack.c.h.b16 %v229
    %v955 = vunpack.c.l.b16 %v230
    %v956 = vunpack.c.h.b16 %v230
    %v957 = vunpack.c.l.b16 %v231
    %v958 = vunpack.c.h.b16 %v231
    %v959 = vunpack.c.l.b16 %v232
    %v960 = vunpack.c.h.b16 %v232
    %v961 = vunpack.c.l.b16 %v233
    %v962 = vunpack.c.h.b16 %v233
    %v963 = vunpack.c.l.b16 %v234
    %v964 = vunpack.c.h.b16 %v234
    %v965 = vunpack.c.l.b16 %v235
    %v966 = vunpack.c.h.b16 %v235
    %v967 = vunpack.c.l.b16 %v236
    %v968 = vunpack.c.h.b16 %v236
    %v969 = vunpack.c.l.b16 %v237
    %v970 = vunpack.c.h.b16 %v237
    %v971 = vunpack.c.l.b16 %v238
    %v972 = vunpack.c.h.b16 %v238
    %v973 = vunpack.c.l.b16 %v239
    %v974 = vunpack.c.h.b16 %v239
    %v975 = vunpack.c.l.b16 %v240
    %v976 = vunpack.c.h.b16 %v240
    %v977 = vunpack.c.l.b16 %v241
    %v978 = vunpack.c.h.b16 %v241
    %v979 = vunpack.c.l.b16 %v242
    %v980 = vunpack.c.h.b16 %v242
    %v981 = vunpack.c.l.b16 %v243
    %v982 = vunpack.c.h.b16 %v243
    %v983 = vunpack.c.l.b16 %v244
    %v984 = vunpack.c.h.b16 %v244
    %v985 = vunpack.c.l.b16 %v245
    %v986 = vunpack.c.h.b16 %v245
    %v987 = vunpack.c.l.b16 %v246
    %v988 = vunpack.c.h.b16 %v246
    %v989 = vunpack.c.l.b16 %v247
    %v990 = vunpack.c.h.b16 %v247
    %v991 = vunpack.c.l.b16 %v248
    %v992 = vunpack.c.h.b16 %v248
    %v993 = vunpack.c.l.b16 %v249
    %v994 = vunpack.c.h.b16 %v249
    %v995 = vunpack.c.l.b16 %v250
    %v996 = vunpack.c.h.b16 %v250
    %v997 = vunpack.c.l.b16 %v251
    %v998 = vunpack.c.h.b16 %v251
    %v999 = vunpack.c.l.b16 %v252
    %v1000 = vunpack.c.h.b16 %v252
    %v1001 = vunpack.c.l.b16 %v253
    %v1002 = vunpack.c.h.b16 %v253
    %v1003 = vunpack.c.l.b16 %v254
    %v1004 = vunpack.c.h.b16 %v254
    %v1005 = vunpack.c.l.b16 %v255
    %v1006 = vunpack.c.h.b16 %v255
    %v1007 = vunpack.c.l.b16 %v256
    %v1008 = vunpack.c.h.b16 %v256
    %v1009 = vunpack.c.l.b16 %v257
    %v1010 = vunpack.c.h.b16 %v257
    %v1011 = vunpack.c.l.b16 %v258
    %v1012 = vunpack.c.h.b16 %v258
    %v1013 = vunpack.c.l.b16 %v259
    %v1014 = vunpack.c.h.b16 %v259
    %v1015 = vunpack.c.l.b16 %v260
    %v1016 = vunpack.c.h.b16 %v260
    %v1017 = vunpack.c.l.b16 %v261
    %v1018 = vunpack.c.h.b16 %v261
    %v1019 = vunpack.c.l.b16 %v262
    %v1020 = vunpack.c.h.b16 %v262
    %v1021 = vunpack.c.l.b16 %v263
    %v1022 = vunpack.c.h.b16 %v263
    %v1023 = vunpack.c.l.b16 %v264
    %v1024 = vunpack.c.h.b16 %v264
    %v1025 = vunpack.c.l.b16 %v265
    %v1026 = vunpack.c.h.b16 %v265
    %v1027 = vunpack.c.l.b16 %v266
    %v1028 = vunpack.c.h.b16 %v266
    %v1029 = vunpack.c.l.b16 %v267
    %v1030 = vunpack.c.h.b16 %v267
    %v1031 = vunpack.c.l.b16 %v268
    %v1032 = vunpack.c.h.b16 %v268
    %v1033 = vunpack.c.l.b16 %v269
    %v1034 = vunpack.c.h.b16 %v269
    %v1035 = vunpack.c.l.b16 %v270
    %v1036 = vunpack.c.h.b16 %v270
    %v1037 = vunpack.c.l.b16 %v271
    %v1038 = vunpack.c.h.b16 %v271
    %v1039 = vunpack.c.l.b16 %v272
    %v1040 = vunpack.c.h.b16 %v272
    %v1041 = vunpack.c.l.b16 %v273
    %v1042 = vunpack.c.h.b16 %v273
    %v1043 = vunpack.c.l.b16 %v274
    %v1044 = vunpack.c.h.b16 %v274
    %v1045 = vunpack.c.l.b16 %v275
    %v1046 = vunpack.c.h.b16 %v275
    %v1047 = vunpack.c.l.b16 %v276
    %v1048 = vunpack.c.h.b16 %v276
    %v1049 = vunpack.c.l.b16 %v277
    %v1050 = vunpack.c.h.b16 %v277
    %v1051 = vunpack.c.l.b16 %v278
    %v1052 = vunpack.c.h.b16 %v278
    %v1053 = vunpack.c.l.b16 %v279
    %v1054 = vunpack.c.h.b16 %v279
    %v1055 = vunpack.c.l.b16 %v280
    %v1056 = vunpack.c.h.b16 %v280
    %v1057 = vunpack.c.l.b16 %v281
    %v1058 = vunpack.c.h.b16 %v281
    %v1059 = vunpack.c.l.b16 %v282
    %v1060 = vunpack.c.h.b16 %v282
    %v1061 = vunpack.c.l.b16 %v283
    %v1062 = vunpack.c.h.b16 %v283
    %v1063 = vunpack.c.l.b16 %v284
    %v1064 = vunpack.c.h.b16 %v284
    %v1065 = vunpack.c.l.b16 %v285
    %v1066 = vunpack.c.h.b16 %v285
    %v1067 = vunpack.c.l.b16 %v286
    %v1068 = vunpack.c.h.b16 %v286
    %v1069 = vunpack.c.l.b16 %v287
    %v1070 = vunpack.c.h.b16 %v287
    %v1071 = vunpack.c.l.b16 %v288
    %v1072 = vunpack.c.h.b16 %v288
    %v1073 = vunpack.c.l.b16 %v289
    %v1074 = vunpack.c.h.b16 %v289
    %v1075 = vunpack.c.l.b16 %v290
    %v1076 = vunpack.c.h.b16 %v290
    %v1077 = vunpack.c.l.b16 %v291
    %v1078 = vunpack.c.h.b16 %v291
    %v1079 = vunpack.c.l.b16 %v292
    %v1080 = vunpack.c.h.b16 %v292
    %v1081 = vunpack.c.l.b16 %v293
    %v1082 = vunpack.c.h.b16 %v293
    %v1083 = vunpack.c.l.b16 %v294
    %v1084 = vunpack.c.h.b16 %v294
    %v1085 = vunpack.c.l.b16 %v295
    %v1086 = vunpack.c.h.b16 %v295
    %v1087 = vunpack.c.l.b16 %v296
    %v1088 = vunpack.c.h.b16 %v296
    %v1089 = vunpack.c.l.b16 %v297
    %v1090 = vunpack.c.h.b16 %v297
    %v1091 = vunpack.c.l.b16 %v298
    %v1092 = vunpack.c.h.b16 %v298
    %v1093 = vunpack.c.l.b16 %v299
    %v1094 = vunpack.c.h.b16 %v299
    %v1095 = vunpack.c.l.b16 %v300
    %v1096 = vunpack.c.h.b16 %v300
    %v1097 = vpack.c.b16 %v589, %v585
    %v1098 = vpack.c.b16 %v590, %v586
    %v1099 = vpack.c.b16 %v591, %v587
    %v1100 = vpack.c.b16 %v592, %v588
    %v1101 = vpack.c.b16 %v597, %v593
    %v1102 = vpack.c.b16 %v598, %v594
    %v1103 = vpack.c.b16 %v599, %v595
    %v1104 = vpack.c.b16 %v600, %v596
    %v1105 = vpack.c.b16 %v605, %v601
    %v1106 = vpack.c.b16 %v606, %v602
    %v1107 = vpack.c.b16 %v607, %v603
    %v1108 = vpack.c.b16 %v608, %v604
    %v1109 = vpack.c.b16 %v613, %v609
    %v1110 = vpack.c.b16 %v614, %v610
    %v1111 = vpack.c.b16 %v615, %v611
    %v1112 = vpack.c.b16 %v616, %v612
    %v1113 = vpack.c.b16 %v621, %v617
    %v1114 = vpack.c.b16 %v622, %v618
    %v1115 = vpack.c.b16 %v623, %v619
    %v1116 = vpack.c.b16 %v624, %v620
    %v1117 = vpack.c.b16 %v629, %v625
    %v1118 = vpack.c.b16 %v630, %v626
    %v1119 = vpack.c.b16 %v631, %v627
    %v1120 = vpack.c.b16 %v632, %v628
    %v1121 = vpack.c.b16 %v637, %v633
    %v1122 = vpack.c.b16 %v638, %v634
    %v1123 = vpack.c.b16 %v639, %v635
    %v1124 = vpack.c.b16 %v640, %v636
    %v1125 = vpack.c.b16 %v645, %v641
    %v1126 = vpack.c.b16 %v646, %v642
    %v1127 = vpack.c.b16 %v647, %v643
    %v1128 = vpack.c.b16 %v648, %v644
    %v1129 = vpack.c.b16 %v653, %v649
    %v1130 = vpack.c.b16 %v654, %v650
    %v1131 = vpack.c.b16 %v655, %v651
    %v1132 = vpack.c.b16 %v656, %v652
    %v1133 = vpack.c.b16 %v661, %v657
    %v1134 = vpack.c.b16 %v662, %v658
    %v1135 = vpack.c.b16 %v663, %v659
    %v1136 = vpack.c.b16 %v664, %v660
    %v1137 = vpack.c.b16 %v669, %v665
    %v1138 = vpack.c.b16 %v670, %v666
    %v1139 = vpack.c.b16 %v671, %v667
    %v1140 = vpack.c.b16 %v672, %v668
    %v1141 = vpack.c.b16 %v677, %v673
    %v1142 = vpack.c.b16 %v678, %v674
    %v1143 = vpack.c.b16 %v679, %v675
    %v1144 = vpack.c.b16 %v680, %v676
    %v1145 = vpack.c.b16 %v685, %v681
    %v1146 = vpack.c.b16 %v686, %v682
    %v1147 = vpack.c.b16 %v687, %v683
    %v1148 = vpack.c.b16 %v688, %v684
    %v1149 = vpack.c.b16 %v693, %v689
    %v1150 = vpack.c.b16 %v694, %v690
    %v1151 = vpack.c.b16 %v695, %v691
    %v1152 = vpack.c.b16 %v696, %v692
    %v1153 = vpack.c.b16 %v701, %v697
    %v1154 = vpack.c.b16 %v702, %v698
    %v1155 = vpack.c.b16 %v703, %v699
    %v1156 = vpack.c.b16 %v704, %v700
    %v1157 = vpack.c.b16 %v709, %v705
    %v1158 = vpack.c.b16 %v710, %v706
    %v1159 = vpack.c.b16 %v711, %v707
    %v1160 = vpack.c.b16 %v712, %v708
    %v1161 = vpack.c.b16 %v717, %v713
    %v1162 = vpack.c.b16 %v718, %v714
    %v1163 = vpack.c.b16 %v719, %v715
    %v1164 = vpack.c.b16 %v720, %v716
    %v1165 = vpack.c.b16 %v725, %v721
    %v1166 = vpack.c.b16 %v726, %v722
    %v1167 = vpack.c.b16 %v727, %v723
    %v1168 = vpack.c.b16 %v728, %v724
    %v1169 = vpack.c.b16 %v733, %v729
    %v1170 = vpack.c.b16 %v734, %v730
    %v1171 = vpack.c.b16 %v735, %v731
    %v1172 = vpack.c.b16 %v736, %v732
    %v1173 = vpack.c.b16 %v741, %v737
    %v1174 = vpack.c.b16 %v742, %v738
    %v1175 = vpack.c.b16 %v743, %v739
    %v1176 = vpack.c.b16 %v744, %v740
    %v1177 = vpack.c.b16 %v749, %v745
    %v1178 = vpack.c.b16 %v750, %v746
    %v1179 = vpack.c.b16 %v751, %v747
    %v1180 = vpack.c.b16 %v752, %v748
    %v1181 = vpack.c.b16 %v757, %v753
    %v1182 = vpack.c.b16 %v758, %v754
    %v1183 = vpack.c.b16 %v759, %v755
    %v1184 = vpack.c.b16 %v760, %v756
    %v1185 = vpack.c.b16 %v765, %v761
    %v1186 = vpack.c.b16 %v766, %v762
    %v1187 = vpack.c.b16 %v767, %v763
    %v1188 = vpack.c.b16 %v768, %v764
    %v1189 = vpack.c.b16 %v773, %v769
    %v1190 = vpack.c.b16 %v774, %v770
    %v1191 = vpack.c.b16 %v775, %v771
    %v1192 = vpack.c.b16 %v776, %v772
    %v1193 = vpack.c.b16 %v781, %v777
    %v1194 = vpack.c.b16 %v782, %v778
    %v1195 = vpack.c.b16 %v783, %v779
    %v1196 = vpack.c.b16 %v784, %v780
    %v1197 = vpack.c.b16 %v789, %v785
    %v1198 = vpack.c.b16 %v790, %v786
    %v1199 = vpack.c.b16 %v791, %v787
    %v1200 = vpack.c.b16 %v792, %v788
    %v1201 = vpack.c.b16 %v797, %v793
    %v1202 = vpack.c.b16 %v798, %v794
    %v1203 = vpack.c.b16 %v799, %v795
    %v1204 = vpack.c.b16 %v800, %v796
    %v1205 = vpack.c.b16 %v805, %v801
    %v1206 = vpack.c.b16 %v806, %v802
    %v1207 = vpack.c.b16 %v807, %v803
    %v1208 = vpack.c.b16 %v808, %v804
    %v1209 = vpack.c.b16 %v813, %v809
    %v1210 = vpack.c.b16 %v814, %v810
    %v1211 = vpack.c.b16 %v815, %v811
    %v1212 = vpack.c.b16 %v816, %v812
    %v1213 = vpack.c.b16 %v821, %v817
    %v1214 = vpack.c.b16 %v822, %v818
    %v1215 = vpack.c.b16 %v823, %v819
    %v1216 = vpack.c.b16 %v824, %v820
    %v1217 = vpack.c.b16 %v829, %v825
    %v1218 = vpack.c.b16 %v830, %v826
    %v1219 = vpack.c.b16 %v831, %v827
    %v1220 = vpack.c.b16 %v832, %v828
    %v1221 = vpack.c.b16 %v837, %v833
    %v1222 = vpack.c.b16 %v838, %v834
    %v1223 = vpack.c.b16 %v839, %v835
    %v1224 = vpack.c.b16 %v840, %v836
    %v1225 = vpack.c.b16 %v845, %v841
    %v1226 = vpack.c.b16 %v846, %v842
    %v1227 = vpack.c.b16 %v847, %v843
    %v1228 = vpack.c.b16 %v848, %v844
    %v1229 = vpack.c.b16 %v853, %v849
    %v1230 = vpack.c.b16 %v854, %v850
    %v1231 = vpack.c.b16 %v855, %v851
    %v1232 = vpack.c.b16 %v856, %v852
    %v1233 = vpack.c.b16 %v861, %v857
    %v1234 = vpack.c.b16 %v862, %v858
    %v1235 = vpack.c.b16 %v863, %v859
    %v1236 = vpack.c.b16 %v864, %v860
    %v1237 = vpack.c.b16 %v869, %v865
    %v1238 = vpack.c.b16 %v870, %v866
    %v1239 = vpack.c.b16 %v871, %v867
    %v1240 = vpack.c.b16 %v872, %v868
    %v1241 = vpack.c.b16 %v877, %v873
    %v1242 = vpack.c.b16 %v878, %v874
    %v1243 = vpack.c.b16 %v879, %v875
    %v1244 = vpack.c.b16 %v880, %v876
    %v1245 = vpack.c.b16 %v885, %v881
    %v1246 = vpack.c.b16 %v886, %v882
    %v1247 = vpack.c.b16 %v887, %v883
    %v1248 = vpack.c.b16 %v888, %v884
    %v1249 = vpack.c.b16 %v893, %v889
    %v1250 = vpack.c.b16 %v894, %v890
    %v1251 = vpack.c.b16 %v895, %v891
    %v1252 = vpack.c.b16 %v896, %v892
    %v1253 = vpack.c.b16 %v901, %v897
    %v1254 = vpack.c.b16 %v902, %v898
    %v1255 = vpack.c.b16 %v903, %v899
    %v1256 = vpack.c.b16 %v904, %v900
    %v1257 = vpack.c.b16 %v909, %v905
    %v1258 = vpack.c.b16 %v910, %v906
    %v1259 = vpack.c.b16 %v911, %v907
    %v1260 = vpack.c.b16 %v912, %v908
    %v1261 = vpack.c.b16 %v917, %v913
    %v1262 = vpack.c.b16 %v918, %v914
    %v1263 = vpack.c.b16 %v919, %v915
    %v1264 = vpack.c.b16 %v920, %v916
    %v1265 = vpack.c.b16 %v925, %v921
    %v1266 = vpack.c.b16 %v926, %v922
    %v1267 = vpack.c.b16 %v927, %v923
    %v1268 = vpack.c.b16 %v928, %v924
    %v1269 = vpack.c.b16 %v933, %v929
    %v1270 = vpack.c.b16 %v934, %v930
    %v1271 = vpack.c.b16 %v935, %v931
    %v1272 = vpack.c.b16 %v936, %v932
    %v1273 = vpack.c.b16 %v941, %v937
    %v1274 = vpack.c.b16 %v942, %v938
    %v1275 = vpack.c.b16 %v943, %v939
    %v1276 = vpack.c.b16 %v944, %v940
    %v1277 = vpack.c.b16 %v949, %v945
    %v1278 = vpack.c.b16 %v950, %v946
    %v1279 = vpack.c.b16 %v951, %v947
    %v1280 = vpack.c.b16 %v952, %v948
    %v1281 = vpack.c.b16 %v957, %v953
    %v1282 = vpack.c.b16 %v958, %v954
    %v1283 = vpack.c.b16 %v959, %v955
    %v1284 = vpack.c.b16 %v960, %v956
    %v1285 = vpack.c.b16 %v965, %v961
    %v1286 = vpack.c.b16 %v966, %v962
    %v1287 = vpack.c.b16 %v967, %v963
    %v1288 = vpack.c.b16 %v968, %v964
    %v1289 = vpack.c.b16 %v973, %v969
    %v1290 = vpack.c.b16 %v974, %v970
    %v1291 = vpack.c.b16 %v975, %v971
    %v1292 = vpack.c.b16 %v976, %v972
    %v1293 = vpack.c.b16 %v981, %v977
    %v1294 = vpack.c.b16 %v982, %v978
    %v1295 = vpack.c.b16 %v983, %v979
    %v1296 = vpack.c.b16 %v984, %v980
    %v1297 = vpack.c.b16 %v989, %v985
    %v1298 = vpack.c.b16 %v990, %v986
    %v1299 = vpack.c.b16 %v991, %v987
    %v1300 = vpack.c.b16 %v992, %v988
    %v1301 = vpack.c.b16 %v997, %v993
    %v1302 = vpack.c.b16 %v998, %v994
    %v1303 = vpack.c.b16 %v999, %v995
    %v1304 = vpack.c.b16 %v1000, %v996
    %v1305 = vpack.c.b16 %v1005, %v1001
    %v1306 = vpack.c.b16 %v1006, %v1002
    %v1307 = vpack.c.b16 %v1007, %v1003
    %v1308 = vpack.c.b16 %v1008, %v1004
    %v1309 = vpack.c.b16 %v1013, %v1009
    %v1310 = vpack.c.b16 %v1014, %v1010
    %v1311 = vpack.c.b16 %v1015, %v1011
    %v1312 = vpack.c.b16 %v1016, %v1012
    %v1313 = vpack.c.b16 %v1021, %v1017
    %v1314 = vpack.c.b16 %v1022, %v1018
    %v1315 = vpack.c.b16 %v1023, %v1019
    %v1316 = vpack.c.b16 %v1024, %v1020
    %v1317 = vpack.c.b16 %v1029, %v1025
    %v1318 = vpack.c.b16 %v1030, %v1026
    %v1319 = vpack.c.b16 %v1031, %v1027
    %v1320 = vpack.c.b16 %v1032, %v1028
    %v1321 = vpack.c.b16 %v1037, %v1033
    %v1322 = vpack.c.b16 %v1038, %v1034
    %v1323 = vpack.c.b16 %v1039, %v1035
    %v1324 = vpack.c.b16 %v1040, %v1036
    %v1325 = vpack.c.b16 %v1045, %v1041
    %v1326 = vpack.c.b16 %v1046, %v1042
    %v1327 = vpack.c.b16 %v1047, %v1043
    %v1328 = vpack.c.b16 %v1048, %v1044
    %v1329 = vpack.c.b16 %v1053, %v1049
    %v1330 = vpack.c.b16 %v1054, %v1050
    %v1331 = vpack.c.b16 %v1055, %v1051
    %v1332 = vpack.c.b16 %v1056, %v1052
    %v1333 = vpack.c.b16 %v1061, %v1057
    %v1334 = vpack.c.b16 %v1062, %v1058
    %v1335 = vpack.c.b16 %v1063, %v1059
    %v1336 = vpack.c.b16 %v1064, %v1060
    %v1337 = vpack.c.b16 %v1069, %v1065
    %v1338 = vpack.c.b16 %v1070, %v1066
    %v1339 = vpack.c.b16 %v1071, %v1067
    %v1340 = vpack.c.b16 %v1072, %v1068
    %v1341 = vpack.c.b16 %v1077, %v1073
    %v1342 = vpack.c.b16 %v1078, %v1074
    %v1343 = vpack.c.b16 %v1079, %v1075
    %v1344 = vpack.c.b16 %v1080, %v1076
    %v1345 = vpack.c.b16 %v1085, %v1081
    %v1346 = vpack.c.b16 %v1086, %v1082
    %v1347 = vpack.c.b16 %v1087, %v1083
    %v1348 = vpack.c.b16 %v1088, %v1084
    %v1349 = vpack.c.b16 %v1093, %v1089
    %v1350 = vpack.c.b16 %v1094, %v1090
    %v1351 = vpack.c.b16 %v1095, %v1091
    %v1352 = vpack.c.b16 %v1096, %v1092
    %1609 = vmatprep.subr.bf16.mxu0 %v1098
    %1610 = vmatpush1.bf16.msra.mxu0 %v1097
    %1611 = vmatprep.subr.bf16.mxu0 %v1102
    %1612 = vmatpush1.bf16.msra.mxu0 %v1101
    %1613 = vmatprep.subr.bf16.mxu0 %v1106
    %1614 = vmatpush1.bf16.msra.mxu0 %v1105
    %1615 = vmatprep.subr.bf16.mxu0 %v1110
    %1616 = vmatpush1.bf16.msra.mxu0 %v1109
    %1617 = vmatprep.subr.bf16.mxu0 %v1114
    %1618 = vmatpush1.bf16.msra.mxu0 %v1113
    %1619 = vmatprep.subr.bf16.mxu0 %v1118
    %1620 = vmatpush1.bf16.msra.mxu0 %v1117
    %1621 = vmatprep.subr.bf16.mxu0 %v1122
    %1622 = vmatpush1.bf16.msra.mxu0 %v1121
    %1623 = vmatprep.subr.bf16.mxu0 %v1126
    %1624 = vmatpush1.bf16.msra.mxu0 %v1125
    %1625 = vmatprep.subr.bf16.mxu0 %v1130
    %1626 = vmatpush1.bf16.msra.mxu0 %v1129
    %1627 = vmatprep.subr.bf16.mxu0 %v1134
    %1628 = vmatpush1.bf16.msra.mxu0 %v1133
    %1629 = vmatprep.subr.bf16.mxu0 %v1138
    %1630 = vmatpush1.bf16.msra.mxu0 %v1137
    %1631 = vmatprep.subr.bf16.mxu0 %v1142
    %1632 = vmatpush1.bf16.msra.mxu0 %v1141
    %1633 = vmatprep.subr.bf16.mxu0 %v1146
    %1634 = vmatpush1.bf16.msra.mxu0 %v1145
    %1635 = vmatprep.subr.bf16.mxu0 %v1150
    %1636 = vmatpush1.bf16.msra.mxu0 %v1149
    %1637 = vmatprep.subr.bf16.mxu0 %v1154
    %1638 = vmatpush1.bf16.msra.mxu0 %v1153
    %1639 = vmatprep.subr.bf16.mxu0 %v1158
    %1640 = vmatpush1.bf16.msra.mxu0 %v1157
    %1641 = vmatprep.mubr.bf16.mxu0 %v314
    %1642 = vmatmul.mubr.bf16.gmra.mrb[0].mxu0 %v313
    %v1643 = vpop.f32.mrb[0].mxu0
    %v1644 = vadd.f32 0.0, %v1643
    %v1645 = vpop.f32.mrb[0].mxu0
    %v1646 = vadd.f32 0.0, %v1645
    %v1647 = vpop.f32.mrb[0].mxu0
    %v1648 = vpop.f32.mrb[0].mxu0
    %1649 = vdwg.mxu0
    %1650 = vmatprep.subr.bf16.mxu0 %v1162
    %1651 = vmatpush1.bf16.msra.mxu0 %v1161
    %1652 = vmatprep.subr.bf16.mxu0 %v1166
    %1653 = vmatpush1.bf16.msra.mxu0 %v1165
    %1654 = vmatprep.subr.bf16.mxu0 %v1170
    %1655 = vmatpush1.bf16.msra.mxu0 %v1169
    %1656 = vmatprep.subr.bf16.mxu0 %v1174
    %1657 = vmatpush1.bf16.msra.mxu0 %v1173
    %1658 = vmatprep.subr.bf16.mxu0 %v1178
    %1659 = vmatpush1.bf16.msra.mxu0 %v1177
    %1660 = vmatprep.subr.bf16.mxu0 %v1182
    %1661 = vmatpush1.bf16.msra.mxu0 %v1181
    %1662 = vmatprep.subr.bf16.mxu0 %v1186
    %1663 = vmatpush1.bf16.msra.mxu0 %v1185
    %1664 = vmatprep.subr.bf16.mxu0 %v1190
    %1665 = vmatpush1.bf16.msra.mxu0 %v1189
    %1666 = vmatprep.subr.bf16.mxu0 %v1194
    %1667 = vmatpush1.bf16.msra.mxu0 %v1193
    %1668 = vmatprep.subr.bf16.mxu0 %v1198
    %1669 = vmatpush1.bf16.msra.mxu0 %v1197
    %1670 = vmatprep.subr.bf16.mxu0 %v1202
    %1671 = vmatpush1.bf16.msra.mxu0 %v1201
    %1672 = vmatprep.subr.bf16.mxu0 %v1206
    %1673 = vmatpush1.bf16.msra.mxu0 %v1205
    %1674 = vmatprep.subr.bf16.mxu0 %v1210
    %1675 = vmatpush1.bf16.msra.mxu0 %v1209
    %1676 = vmatprep.subr.bf16.mxu0 %v1214
    %1677 = vmatpush1.bf16.msra.mxu0 %v1213
    %1678 = vmatprep.subr.bf16.mxu0 %v1218
    %1679 = vmatpush1.bf16.msra.mxu0 %v1217
    %1680 = vmatprep.subr.bf16.mxu0 %v1222
    %1681 = vmatpush1.bf16.msra.mxu0 %v1221
    %1682 = vmatprep.mubr.bf16.mxu0 %v316
    %1683 = vmatmul.mubr.bf16.gmra.mrb[0].mxu0 %v315
    %v1684 = vpop.f32.mrb[0].mxu0
    %v1685 = vadd.f32 %v1644, %v1684
    %v1686 = vpop.f32.mrb[0].mxu0
    %v1687 = vadd.f32 %v1646, %v1686
    %v1688 = vpop.f32.mrb[0].mxu0
    %v1689 = vpop.f32.mrb[0].mxu0
    %1690 = vdwg.mxu0
    %1691 = vmatprep.subr.bf16.mxu0 %v1226
    %1692 = vmatpush1.bf16.msra.mxu0 %v1225
    %1693 = vmatprep.subr.bf16.mxu0 %v1230
    %1694 = vmatpush1.bf16.msra.mxu0 %v1229
    %1695 = vmatprep.subr.bf16.mxu0 %v1234
    %1696 = vmatpush1.bf16.msra.mxu0 %v1233
    %1697 = vmatprep.subr.bf16.mxu0 %v1238
    %1698 = vmatpush1.bf16.msra.mxu0 %v1237
    %1699 = vmatprep.subr.bf16.mxu0 %v1242
    %1700 = vmatpush1.bf16.msra.mxu0 %v1241
    %1701 = vmatprep.subr.bf16.mxu0 %v1246
    %1702 = vmatpush1.bf16.msra.mxu0 %v1245
    %1703 = vmatprep.subr.bf16.mxu0 %v1250
    %1704 = vmatpush1.bf16.msra.mxu0 %v1249
    %1705 = vmatprep.subr.bf16.mxu0 %v1254
    %1706 = vmatpush1.bf16.msra.mxu0 %v1253
    %1707 = vmatprep.subr.bf16.mxu0 %v1258
    %1708 = vmatpush1.bf16.msra.mxu0 %v1257
    %1709 = vmatprep.subr.bf16.mxu0 %v1262
    %1710 = vmatpush1.bf16.msra.mxu0 %v1261
    %1711 = vmatprep.subr.bf16.mxu0 %v1266
    %1712 = vmatpush1.bf16.msra.mxu0 %v1265
    %1713 = vmatprep.subr.bf16.mxu0 %v1270
    %1714 = vmatpush1.bf16.msra.mxu0 %v1269
    %1715 = vmatprep.subr.bf16.mxu0 %v1274
    %1716 = vmatpush1.bf16.msra.mxu0 %v1273
    %1717 = vmatprep.subr.bf16.mxu0 %v1278
    %1718 = vmatpush1.bf16.msra.mxu0 %v1277
    %1719 = vmatprep.subr.bf16.mxu0 %v1282
    %1720 = vmatpush1.bf16.msra.mxu0 %v1281
    %1721 = vmatprep.subr.bf16.mxu0 %v1286
    %1722 = vmatpush1.bf16.msra.mxu0 %v1285
    %1723 = vmatprep.mubr.bf16.mxu0 %v318
    %1724 = vmatmul.mubr.bf16.gmra.mrb[0].mxu0 %v317
    %v1725 = vpop.f32.mrb[0].mxu0
    %v1726 = vadd.f32 %v1685, %v1725
    %v1727 = vpop.f32.mrb[0].mxu0
    %v1728 = vadd.f32 %v1687, %v1727
    %v1729 = vpop.f32.mrb[0].mxu0
    %v1730 = vpop.f32.mrb[0].mxu0
    %1731 = vdwg.mxu0
    %1732 = vmatprep.subr.bf16.mxu0 %v1290
    %1733 = vmatpush1.bf16.msra.mxu0 %v1289
    %1734 = vmatprep.subr.bf16.mxu0 %v1294
    %1735 = vmatpush1.bf16.msra.mxu0 %v1293
    %1736 = vmatprep.subr.bf16.mxu0 %v1298
    %1737 = vmatpush1.bf16.msra.mxu0 %v1297
    %1738 = vmatprep.subr.bf16.mxu0 %v1302
    %1739 = vmatpush1.bf16.msra.mxu0 %v1301
    %1740 = vmatprep.subr.bf16.mxu0 %v1306
    %1741 = vmatpush1.bf16.msra.mxu0 %v1305
    %1742 = vmatprep.subr.bf16.mxu0 %v1310
    %1743 = vmatpush1.bf16.msra.mxu0 %v1309
    %1744 = vmatprep.subr.bf16.mxu0 %v1314
    %1745 = vmatpush1.bf16.msra.mxu0 %v1313
    %1746 = vmatprep.subr.bf16.mxu0 %v1318
    %1747 = vmatpush1.bf16.msra.mxu0 %v1317
    %1748 = vmatprep.subr.bf16.mxu0 %v1322
    %1749 = vmatpush1.bf16.msra.mxu0 %v1321
    %1750 = vmatprep.subr.bf16.mxu0 %v1326
    %1751 = vmatpush1.bf16.msra.mxu0 %v1325
    %1752 = vmatprep.subr.bf16.mxu0 %v1330
    %1753 = vmatpush1.bf16.msra.mxu0 %v1329
    %1754 = vmatprep.subr.bf16.mxu0 %v1334
    %1755 = vmatpush1.bf16.msra.mxu0 %v1333
    %1756 = vmatprep.subr.bf16.mxu0 %v1338
    %1757 = vmatpush1.bf16.msra.mxu0 %v1337
    %1758 = vmatprep.subr.bf16.mxu0 %v1342
    %1759 = vmatpush1.bf16.msra.mxu0 %v1341
    %1760 = vmatprep.subr.bf16.mxu0 %v1346
    %1761 = vmatpush1.bf16.msra.mxu0 %v1345
    %1762 = vmatprep.subr.bf16.mxu0 %v1350
    %1763 = vmatpush1.bf16.msra.mxu0 %v1349
    %1764 = vmatprep.mubr.bf16.mxu0 %v320
    %1765 = vmatmul.mubr.bf16.gmra.mrb[0].mxu0 %v319
    %v1766 = vpop.f32.mrb[0].mxu0
    %v1767 = vadd.f32 %v1726, %v1766
    %v1768 = vpop.f32.mrb[0].mxu0
    %v1769 = vadd.f32 %v1728, %v1768
    %v1770 = vpop.f32.mrb[0].mxu0
    %v1771 = vpop.f32.mrb[0].mxu0
    %1772 = vdwg.mxu0
    %1773 = vmatprep.subr.bf16.mxu0 %v1100
    %1774 = vmatpush1.bf16.msra.mxu0 %v1099
    %1775 = vmatprep.subr.bf16.mxu0 %v1104
    %1776 = vmatpush1.bf16.msra.mxu0 %v1103
    %1777 = vmatprep.subr.bf16.mxu0 %v1108
    %1778 = vmatpush1.bf16.msra.mxu0 %v1107
    %1779 = vmatprep.subr.bf16.mxu0 %v1112
    %1780 = vmatpush1.bf16.msra.mxu0 %v1111
    %1781 = vmatprep.subr.bf16.mxu0 %v1116
    %1782 = vmatpush1.bf16.msra.mxu0 %v1115
    %1783 = vmatprep.subr.bf16.mxu0 %v1120
    %1784 = vmatpush1.bf16.msra.mxu0 %v1119
    %1785 = vmatprep.subr.bf16.mxu0 %v1124
    %1786 = vmatpush1.bf16.msra.mxu0 %v1123
    %1787 = vmatprep.subr.bf16.mxu0 %v1128
    %1788 = vmatpush1.bf16.msra.mxu0 %v1127
    %1789 = vmatprep.subr.bf16.mxu0 %v1132
    %1790 = vmatpush1.bf16.msra.mxu0 %v1131
    %1791 = vmatprep.subr.bf16.mxu0 %v1136
    %1792 = vmatpush1.bf16.msra.mxu0 %v1135
    %1793 = vmatprep.subr.bf16.mxu0 %v1140
    %1794 = vmatpush1.bf16.msra.mxu0 %v1139
    %1795 = vmatprep.subr.bf16.mxu0 %v1144
    %1796 = vmatpush1.bf16.msra.mxu0 %v1143
    %1797 = vmatprep.subr.bf16.mxu0 %v1148
    %1798 = vmatpush1.bf16.msra.mxu0 %v1147
    %1799 = vmatprep.subr.bf16.mxu0 %v1152
    %1800 = vmatpush1.bf16.msra.mxu0 %v1151
    %1801 = vmatprep.subr.bf16.mxu0 %v1156
    %1802 = vmatpush1.bf16.msra.mxu0 %v1155
    %1803 = vmatprep.subr.bf16.mxu0 %v1160
    %1804 = vmatpush1.bf16.msra.mxu0 %v1159
    %1805 = vmatprep.mubr.bf16.mxu0 %v314
    %1806 = vmatmul.mubr.bf16.gmra.mrb[0].mxu0 %v313
    %v1807 = vpop.f32.mrb[0].mxu0
    %v1808 = vadd.f32 0.0, %v1807
    %v1809 = vpop.f32.mrb[0].mxu0
    %v1810 = vadd.f32 0.0, %v1809
    %v1811 = vpop.f32.mrb[0].mxu0
    %v1812 = vpop.f32.mrb[0].mxu0
    %1813 = vdwg.mxu0
    %1814 = vmatprep.subr.bf16.mxu0 %v1164
    %1815 = vmatpush1.bf16.msra.mxu0 %v1163
    %1816 = vmatprep.subr.bf16.mxu0 %v1168
    %1817 = vmatpush1.bf16.msra.mxu0 %v1167
    %1818 = vmatprep.subr.bf16.mxu0 %v1172
    %1819 = vmatpush1.bf16.msra.mxu0 %v1171
    %1820 = vmatprep.subr.bf16.mxu0 %v1176
    %1821 = vmatpush1.bf16.msra.mxu0 %v1175
    %1822 = vmatprep.subr.bf16.mxu0 %v1180
    %1823 = vmatpush1.bf16.msra.mxu0 %v1179
    %1824 = vmatprep.subr.bf16.mxu0 %v1184
    %1825 = vmatpush1.bf16.msra.mxu0 %v1183
    %1826 = vmatprep.subr.bf16.mxu0 %v1188
    %1827 = vmatpush1.bf16.msra.mxu0 %v1187
    %1828 = vmatprep.subr.bf16.mxu0 %v1192
    %1829 = vmatpush1.bf16.msra.mxu0 %v1191
    %1830 = vmatprep.subr.bf16.mxu0 %v1196
    %1831 = vmatpush1.bf16.msra.mxu0 %v1195
    %1832 = vmatprep.subr.bf16.mxu0 %v1200
    %1833 = vmatpush1.bf16.msra.mxu0 %v1199
    %1834 = vmatprep.subr.bf16.mxu0 %v1204
    %1835 = vmatpush1.bf16.msra.mxu0 %v1203
    %1836 = vmatprep.subr.bf16.mxu0 %v1208
    %1837 = vmatpush1.bf16.msra.mxu0 %v1207
    %1838 = vmatprep.subr.bf16.mxu0 %v1212
    %1839 = vmatpush1.bf16.msra.mxu0 %v1211
    %1840 = vmatprep.subr.bf16.mxu0 %v1216
    %1841 = vmatpush1.bf16.msra.mxu0 %v1215
    %1842 = vmatprep.subr.bf16.mxu0 %v1220
    %1843 = vmatpush1.bf16.msra.mxu0 %v1219
    %1844 = vmatprep.subr.bf16.mxu0 %v1224
    %1845 = vmatpush1.bf16.msra.mxu0 %v1223
    %1846 = vmatprep.mubr.bf16.mxu0 %v316
    %1847 = vmatmul.mubr.bf16.gmra.mrb[0].mxu0 %v315
    %v1848 = vpop.f32.mrb[0].mxu0
    %v1849 = vadd.f32 %v1808, %v1848
    %v1850 = vpop.f32.mrb[0].mxu0
    %v1851 = vadd.f32 %v1810, %v1850
    %v1852 = vpop.f32.mrb[0].mxu0
    %v1853 = vpop.f32.mrb[0].mxu0
    %1854 = vdwg.mxu0
    %1855 = vmatprep.subr.bf16.mxu0 %v1228
    %1856 = vmatpush1.bf16.msra.mxu0 %v1227
    %1857 = vmatprep.subr.bf16.mxu0 %v1232
    %1858 = vmatpush1.bf16.msra.mxu0 %v1231
    %1859 = vmatprep.subr.bf16.mxu0 %v1236
    %1860 = vmatpush1.bf16.msra.mxu0 %v1235
    %1861 = vmatprep.subr.bf16.mxu0 %v1240
    %1862 = vmatpush1.bf16.msra.mxu0 %v1239
    %1863 = vmatprep.subr.bf16.mxu0 %v1244
    %1864 = vmatpush1.bf16.msra.mxu0 %v1243
    %1865 = vmatprep.subr.bf16.mxu0 %v1248
    %1866 = vmatpush1.bf16.msra.mxu0 %v1247
    %1867 = vmatprep.subr.bf16.mxu0 %v1252
    %1868 = vmatpush1.bf16.msra.mxu0 %v1251
    %1869 = vmatprep.subr.bf16.mxu0 %v1256
    %1870 = vmatpush1.bf16.msra.mxu0 %v1255
    %1871 = vmatprep.subr.bf16.mxu0 %v1260
    %1872 = vmatpush1.bf16.msra.mxu0 %v1259
    %1873 = vmatprep.subr.bf16.mxu0 %v1264
    %1874 = vmatpush1.bf16.msra.mxu0 %v1263
    %1875 = vmatprep.subr.bf16.mxu0 %v1268
    %1876 = vmatpush1.bf16.msra.mxu0 %v1267
    %1877 = vmatprep.subr.bf16.mxu0 %v1272
    %1878 = vmatpush1.bf16.msra.mxu0 %v1271
    %1879 = vmatprep.subr.bf16.mxu0 %v1276
    %1880 = vmatpush1.bf16.msra.mxu0 %v1275
    %1881 = vmatprep.subr.bf16.mxu0 %v1280
    %1882 = vmatpush1.bf16.msra.mxu0 %v1279
    %1883 = vmatprep.subr.bf16.mxu0 %v1284
    %1884 = vmatpush1.bf16.msra.mxu0 %v1283
    %1885 = vmatprep.subr.bf16.mxu0 %v1288
    %1886 = vmatpush1.bf16.msra.mxu0 %v1287
    %1887 = vmatprep.mubr.bf16.mxu0 %v318
    %1888 = vmatmul.mubr.bf16.gmra.mrb[0].mxu0 %v317
    %v1889 = vpop.f32.mrb[0].mxu0
    %v1890 = vadd.f32 %v1849, %v1889
    %v1891 = vpop.f32.mrb[0].mxu0
    %v1892 = vadd.f32 %v1851, %v1891
    %v1893 = vpop.f32.mrb[0].mxu0
    %v1894 = vpop.f32.mrb[0].mxu0
    %1895 = vdwg.mxu0
    %1896 = vmatprep.subr.bf16.mxu0 %v1292
    %1897 = vmatpush1.bf16.msra.mxu0 %v1291
    %1898 = vmatprep.subr.bf16.mxu0 %v1296
    %1899 = vmatpush1.bf16.msra.mxu0 %v1295
    %1900 = vmatprep.subr.bf16.mxu0 %v1300
    %1901 = vmatpush1.bf16.msra.mxu0 %v1299
    %1902 = vmatprep.subr.bf16.mxu0 %v1304
    %1903 = vmatpush1.bf16.msra.mxu0 %v1303
    %1904 = vmatprep.subr.bf16.mxu0 %v1308
    %1905 = vmatpush1.bf16.msra.mxu0 %v1307
    %1906 = vmatprep.subr.bf16.mxu0 %v1312
    %1907 = vmatpush1.bf16.msra.mxu0 %v1311
    %1908 = vmatprep.subr.bf16.mxu0 %v1316
    %1909 = vmatpush1.bf16.msra.mxu0 %v1315
    %1910 = vmatprep.subr.bf16.mxu0 %v1320
    %1911 = vmatpush1.bf16.msra.mxu0 %v1319
    %1912 = vmatprep.subr.bf16.mxu0 %v1324
    %1913 = vmatpush1.bf16.msra.mxu0 %v1323
    %1914 = vmatprep.subr.bf16.mxu0 %v1328
    %1915 = vmatpush1.bf16.msra.mxu0 %v1327
    %1916 = vmatprep.subr.bf16.mxu0 %v1332
    %1917 = vmatpush1.bf16.msra.mxu0 %v1331
    %1918 = vmatprep.subr.bf16.mxu0 %v1336
    %1919 = vmatpush1.bf16.msra.mxu0 %v1335
    %1920 = vmatprep.subr.bf16.mxu0 %v1340
    %1921 = vmatpush1.bf16.msra.mxu0 %v1339
    %1922 = vmatprep.subr.bf16.mxu0 %v1344
    %1923 = vmatpush1.bf16.msra.mxu0 %v1343
    %1924 = vmatprep.subr.bf16.mxu0 %v1348
    %1925 = vmatpush1.bf16.msra.mxu0 %v1347
    %1926 = vmatprep.subr.bf16.mxu0 %v1352
    %1927 = vmatpush1.bf16.msra.mxu0 %v1351
    %1928 = vmatprep.mubr.bf16.mxu0 %v320
    %1929 = vmatmul.mubr.bf16.gmra.mrb[0].mxu0 %v319
    %v1930 = vpop.f32.mrb[0].mxu0
    %v1931 = vadd.f32 %v1890, %v1930
    %v1932 = vpop.f32.mrb[0].mxu0
    %v1933 = vadd.f32 %v1892, %v1932
    %v1934 = vpop.f32.mrb[0].mxu0
    %v1935 = vpop.f32.mrb[0].mxu0
    %1936 = vdwg.mxu0
    %v1937 = vadd.f32 %v37, %v1767
    %v1938 = vadd.f32 %v38, %v1769
    %v1939 = vadd.f32 %v39, %v1931
    %v1940 = vadd.f32 %v40, %v1933
    %1941 = vst [vmem:[#allocation2] sm:$0xff] %v1937
    %1942 = vst [vmem:[#allocation2 + $0x8] sm:$0xff] %v1938
    %1943 = vst [vmem:[#allocation2 + $0x10] sm:$0xff] %v1939
    %1944 = vst [vmem:[#allocation2 + $0x18] sm:$0xff] %v1940
    // Predicated region
    $region22: #{matmul_bias.1} parent=1 // pred_check
      %p1945 = pneg %p29
    $region23: #{matmul_bias.1} parent=1 // pred_check_branch
      %1947 = sbr.rel (%p1945) target = $region25
    $region24: #{matmul_bias.1} parent=1 // pred_region
      %v1948 = vld [vmem:[#allocation2] sm:$0xff]
      %v1949 = vld [vmem:[#allocation2 + $0x8] sm:$0xff]
      %v1950 = vld [vmem:[#allocation2 + $0x10] sm:$0xff]
      %v1951 = vld [vmem:[#allocation2 + $0x18] sm:$0xff]
      %v1952 = vld [vmem:[%s2] sm:$0xf]
      %v1954 = vlaneseq
      %v1955 = vshrl.u32 %v1954, 7
      %v1956 = vsub.s32 0, %v1955
      %v1957 = vrot.slane %v1952, %v1956
      %v1958 = vlaneseq
      %v1959 = vshrl.u32 %v1958, 7
      %v1960 = vsub.s32 1, %v1959
      %v1961 = vrot.slane %v1952, %v1960
      %v1962 = vlaneseq
      %v1963 = vshrl.u32 %v1962, 7
      %v1964 = vsub.s32 2, %v1963
      %v1965 = vrot.slane %v1952, %v1964
      %v1966 = vlaneseq
      %v1967 = vshrl.u32 %v1966, 7
      %v1968 = vsub.s32 3, %v1967
      %v1969 = vrot.slane %v1952, %v1968
      %v1974 = vadd.f32 %v1948, %v1957
      %v1975 = vadd.f32 %v1949, %v1961
      %v1976 = vadd.f32 %v1950, %v1965
      %v1977 = vadd.f32 %v1951, %v1969
      %1978 = vst [vmem:[#allocation6] sm:$0xff] %v1974
      %1979 = vst [vmem:[#allocation6 + $0x8] sm:$0xff] %v1975
      %1980 = vst [vmem:[#allocation6 + $0x10] sm:$0xff] %v1976
      %1981 = vst [vmem:[#allocation6 + $0x18] sm:$0xff] %v1977
    $region25: #{matmul_bias.1} parent=1 // pred_fallthru
      _
    // Predicated region
    $region26: #{matmul_bias.1} parent=1 // pred_check
      _
    $region27: #{matmul_bias.1} parent=1 // pred_check_branch
      %1983 = sbr.rel (0) target = $region29
    $region28: #{matmul_bias.1} parent=1 // pred_region
      %s1985 = ssub.s32 512, 512
      %1986 = vsyncadd [#allocation5], %s1985
      %s1988 = sshll.u32 [#allocation6], 4
      %s1989 = int_to_ptr.vmem [resolvable:$true] %s1988
      %1991 = dma.vmem_to_hbm [thread:$0]  %s1989, 512, %s3, [#allocation5]
    $region29: #{matmul_bias.1} parent=1 // pred_fallthru
      _
    // Predicated region
    $region30: #{matmul_bias.1} parent=1 // pred_check
      _
    $region31: #{matmul_bias.1} parent=1 // pred_check_branch
      %1993 = sbr.rel (0) target = $region33
    $region32: #{matmul_bias.1} parent=1 // pred_region
      %1994 = dma.done [#allocation5], 512
    $region33: #{matmul_bias.1} parent=1 // pred_fallthru
      _
    %1995 = vsyncpa [#allocation4], 1
    %1996 = vsyncpa [#allocation5], 1

</llo_original>
